<compile_context>
chip_gen: v7x
topology: tpu7x:2x2x1
jax: 0.10.0
libtpu: 0.0.40
codegen_flags: <defaults>
</compile_context>

<pallas_src>
from math import sqrt

import numpy as np
import jax
import jax.numpy as jnp
from jax import lax
from jax.experimental import pallas as pl
from jax.experimental.pallas import tpu as pltpu


# ---------------------------------------------------------------------------
# Host-side constant conv-structure matrices (pure 0/1 layout data).
# ---------------------------------------------------------------------------
def _conv_select_mats(batch, h, w, kh, kw, pad):
    """Per-tap selection matrices for a stride-1 conv, block-diagonal over batch.

    S[k] : (batch*Ho*Wo, batch*h*w) with (S[k] @ act)[b*Po+po, :] = the input pixel
           read by tap k of output pixel po (all-zero row for zero padding).
    M[po, k] = 1 iff tap k of output pixel po lands inside the image.
    """
    ho, wo = h + 2 * pad - kh + 1, w + 2 * pad - kw + 1
    p_in, p_out = h * w, ho * wo
    taps = kh * kw
    S = np.zeros((taps, batch * p_out, batch * p_in), np.float32)
    M = np.zeros((p_out, taps), np.float32)
    for k in range(taps):
        dy, dx = k // kw, k % kw
        for po in range(p_out):
            yo, xo = po // wo, po % wo
            yi, xi = yo + dy - pad, xo + dx - pad
            if 0 <= yi < h and 0 <= xi < w:
                qi = yi * w + xi
                M[po, k] = 1.0
                for b in range(batch):
                    S[k, b * p_out + po, b * p_in + qi] = 1.0
    return S, M


# ---------------------------------------------------------------------------
# Fused Pallas kernel (whole step-0 forward).
# ---------------------------------------------------------------------------
def _disc_step0_kernel(x_ref, wrgb_ref, brgb_ref, s1_ref, m64_ref, w1f_ref,
                       w1x_ref, b1_ref, s2_ref, w2_ref, b2_ref, wlin_ref,
                       blin_ref, o_ref):
    f32, bf16 = jnp.float32, jnp.bfloat16
    B = s2_ref.shape[1]               # batch
    C = wrgb_ref.shape[1]             # feat_dim (128)
    P = x_ref.shape[0] // B           # spatial positions (16)
    taps1 = s1_ref.shape[0]           # 9  (3x3)
    taps2 = s2_ref.shape[0]           # 16 (4x4)

    def mm(a, b):  # bf16 x bf16 MXU matmul, f32 accumulation
        return jnp.dot(a.astype(bf16), b.astype(bf16), preferred_element_type=f32)

    # ---- from_rgb[6]: 1x1 conv == (B*P, 3) @ (3, C) ----
    h = mm(x_ref[...], wrgb_ref[...]) + brgb_ref[...]                 # (B*P, C) f32

    # ---- minibatch stddev: var over batch per (pixel, channel), then global mean ----
    mu = jnp.zeros((P, C), f32)
    for b in range(B):
        mu = mu + h[b * P:(b + 1) * P, :]
    mu = mu * (1.0 / B)
    var = jnp.zeros((P, C), f32)
    for b in range(B):
        d = h[b * P:(b + 1) * P, :] - mu
        var = var + d * d
    var = var * (1.0 / B)
    out_std = jnp.sqrt(var + 1e-8)
    ms = jnp.sum(out_std, axis=1, keepdims=True)
    ms = jnp.sum(ms, axis=0, keepdims=True) * (1.0 / (P * C))         # (1, 1)
    ms = ms.astype(bf16).astype(f32)  # the concat'd channel feeds a bf16 conv

    # ---- conv1: 3x3 pad 1 -- 9 shifted-select matmuls; stddev channel folded in as a
    #      separate rank-9 correction (keeps every operand 128-lane aligned) ----
    h_b = h.astype(bf16)
    acc = jnp.zeros((B * P, C), f32)
    for k in range(taps1):
        acc = acc + mm(mm(s1_ref[k], h_b), w1f_ref[k])
    acc = acc + ms * mm(m64_ref[...], w1x_ref[...]) + b1_ref[...]
    acc = acc * lax.rsqrt(jnp.mean(acc * acc, axis=1, keepdims=True) + 1e-8)  # PixelNorm
    a1 = jnp.maximum(acc, 0.1 * acc)                                           # LeakyReLU

    # ---- conv2: 4x4 valid (4x4 -> 1x1) -- 16 row-select matmuls ----
    a1_b = a1.astype(bf16)
    acc2 = jnp.zeros((B, C), f32)
    for k in range(taps2):
        acc2 = acc2 + mm(mm(s2_ref[k], a1_b), w2_ref[k])
    acc2 = acc2 + b2_ref[...]
    acc2 = acc2 * lax.rsqrt(jnp.mean(acc2 * acc2, axis=1, keepdims=True) + 1e-8)
    feat = jnp.maximum(acc2, 0.1 * acc2)                              # (B, C)

    # ---- EqualLinear(C, 1): single-output head on VPU/XLU (no N=1 MXU matmul) ----
    w = wlin_ref[...].astype(f32)                                     # (1, C)
    logit = jnp.sum(feat * w, axis=1, keepdims=True) + blin_ref[...]  # (B, 1)
    o_ref[...] = logit.astype(o_ref.dtype)


# ---------------------------------------------------------------------------
# Wrapper: layout prep + pallas_call.
# ---------------------------------------------------------------------------
def _full_spec(shape):
    n = len(shape)
    return pl.BlockSpec(shape, lambda i, _n=n: (0,) * _n)


def discriminator_forward(x, params, step=0, alpha=-1.0):
    """ProGAN Discriminator forward (default step=0, alpha=-1 path) as one Pallas kernel."""
    assert step == 0, "only the module's default step=0 forward is implemented"
    B, cin, H, W = x.shape
    assert (cin, H, W) == (3, 4, 4), "step=0 operates on (B, 3, 4, 4) inputs"
    C = params["w_rgb"].shape[0]
    bf16 = jnp.bfloat16

    # activations as (B*H*W, channels), rows ordered (b, y, x)
    x2 = jnp.transpose(x, (0, 2, 3, 1)).reshape(B * H * W, cin)

    # weight repacking (layout only): conv weights -> per-tap (Cin, Cout) matrices
    w_rgb_t = jnp.transpose(params["w_rgb"][:, :, 0, 0], (1, 0))            # (3, C)
    w1 = params["w1"]                                                       # (C, C+1, 3, 3)
    w1f = jnp.transpose(w1[:, :C, :, :], (2, 3, 1, 0)).reshape(9, C, C)     # tap, Cin, Cout
    w1x = jnp.transpose(w1[:, C, :, :], (1, 2, 0)).reshape(9, C)            # tap, Cout
    w2 = jnp.transpose(params["w2"], (2, 3, 1, 0)).reshape(16, C, C)        # tap, Cin, Cout

    # constant conv-structure matrices (0/1 -> exact in bf16)
    s1_np, m_np = _conv_select_mats(B, H, W, 3, 3, 1)
    s2_np, _ = _conv_select_mats(B, H, W, 4, 4, 0)
    s1 = jnp.asarray(s1_np, dtype=bf16)                                     # (9, B*16, B*16)
    s2 = jnp.asarray(s2_np, dtype=bf16)                                     # (16, B, B*16)
    m64 = jnp.asarray(np.tile(m_np, (B, 1)), dtype=bf16)                    # (B*16, 9)

    operands = (x2, w_rgb_t, params["b_rgb"], s1, m64, w1f, w1x,
                params["b1"], s2, w2, params["b2"], params["w_lin"],
                params["b_lin"])

    return pl.pallas_call(
        _disc_step0_kernel,
        out_shape=jax.ShapeDtypeStruct((B, 1), jnp.float32),
        grid=(1,),
        in_specs=[_full_spec(op.shape) for op in operands],
        out_specs=pl.BlockSpec((B, 1), lambda i: (0, 0)),
        compiler_params=pltpu.CompilerParams(
            dimension_semantics=("arbitrary",),
            vmem_limit_bytes=32 * 1024 * 1024,
        ),
    )(*operands)


# ---------------------------------------------------------------------------
# Parameters + pure-JAX reference.
# ---------------------------------------------------------------------------
def init_discriminator_params(key, feat_dim=128):
    """bf16 weights pre-scaled by the EqualLR factor sqrt(2 / fan_in); f32 biases.

    Biases get small random values (the PyTorch module zero-inits them before training)
    so the bias-add path is actually exercised.
    """
    C = feat_dim
    ks = jax.random.split(key, 8)

    def conv_w(k, cout, cin, ksz):
        w = jax.random.normal(k, (cout, cin, ksz, ksz), jnp.float32)
        return (w * sqrt(2.0 / (cin * ksz * ksz))).astype(jnp.bfloat16)

    def bias(k, n):
        return 0.1 * jax.random.normal(k, (1, n), jnp.float32)

    return dict(
        w_rgb=conv_w(ks[0], C, 3, 1), b_rgb=bias(ks[1], C),
        w1=conv_w(ks[2], C, C + 1, 3), b1=bias(ks[3], C),
        w2=conv_w(ks[4], C, C, 4), b2=bias(ks[5], C),
        w_lin=(jax.random.normal(ks[6], (1, C), jnp.float32)
               * sqrt(2.0 / C)).astype(jnp.bfloat16),
        b_lin=0.1 * jax.random.normal(ks[7], (1, 1), jnp.float32),
    )


def discriminator_reference(x, params):
    """Plain-JAX NCHW reference with the same bf16-weight / f32-accumulate numerics."""
    f32, bf16 = jnp.float32, jnp.bfloat16

    def conv(inp, w, b, pad):
        y = lax.conv_general_dilated(
            inp.astype(bf16), w, window_strides=(1, 1),
            padding=((pad, pad), (pad, pad)),
            dimension_numbers=("NCHW", "OIHW", "NCHW"),
            preferred_element_type=f32)
        return y + b.reshape(1, -1, 1, 1)

    def pixel_norm(a):
        return a * lax.rsqrt(jnp.mean(a * a, axis=1, keepdims=True) + 1e-8)

    def leaky(a):
        return jnp.maximum(a, 0.1 * a)

    h = conv(x, params["w_rgb"], params["b_rgb"], 0)                    # from_rgb[6]
    out_std = jnp.sqrt(jnp.var(h, axis=0) + 1e-8)                       # minibatch stddev
    ms = jnp.mean(out_std)
    hcat = jnp.concatenate([h, jnp.full((x.shape[0], 1, 4, 4), ms, f32)], axis=1)
    a = leaky(pixel_norm(conv(hcat, params["w1"], params["b1"], 1)))    # ConvBlock conv1
    a = leaky(pixel_norm(conv(a, params["w2"], params["b2"], 0)))       # ConvBlock conv2
    feat = a[:, :, 0, 0]
    w = params["w_lin"].astype(f32)
    return jnp.sum(feat * w, axis=1, keepdims=True) + params["b_lin"]   # EqualLinear


if __name__ == "__main__":
    key = jax.random.PRNGKey(0)
    kx, kp = jax.random.split(key)

    B, FEAT = 4, 128                    # step=0 -> 4x4 spatial resolution
    x = jax.random.normal(kx, (B, 3, 4, 4), dtype=jnp.float32)
    params = init_discriminator_params(kp, FEAT)

    out = discriminator_forward(x, params, step=0, alpha=-1.0)
    out = jax.block_until_ready(out)

    ref = discriminator_reference(x, params)
    assert out.shape == (B, 1)
    assert jnp.allclose(out, ref, atol=5e-3, rtol=5e-3), (out, ref)
    print("KERNEL_OK")
</pallas_src>

<mosaic_0001>
module attributes {stable_mosaic.version = 11 : i64} {
  func.func @_disc_step0_kernel(%arg0: i32, %arg1: memref<64x3xf32, #tpu.memory_space<vmem>>, %arg2: memref<3x128xbf16, #tpu.memory_space<vmem>>, %arg3: memref<1x128xf32, #tpu.memory_space<vmem>>, %arg4: memref<9x64x64xbf16, #tpu.memory_space<vmem>>, %arg5: memref<64x9xbf16, #tpu.memory_space<vmem>>, %arg6: memref<9x128x128xbf16, #tpu.memory_space<vmem>>, %arg7: memref<9x128xbf16, #tpu.memory_space<vmem>>, %arg8: memref<1x128xf32, #tpu.memory_space<vmem>>, %arg9: memref<16x4x64xbf16, #tpu.memory_space<vmem>>, %arg10: memref<16x128x128xbf16, #tpu.memory_space<vmem>>, %arg11: memref<1x128xf32, #tpu.memory_space<vmem>>, %arg12: memref<1x128xbf16, #tpu.memory_space<vmem>>, %arg13: memref<1x1xf32, #tpu.memory_space<vmem>>, %arg14: memref<4x1xf32, #tpu.memory_space<vmem>>) attributes {dimension_semantics = [#tpu.dimension_semantics<arbitrary>], iteration_bounds = array<i64: 1>, scalar_prefetch = 0 : i64, scratch_operands = 0 : i64, tpu.core_type = #tpu.core_type<tc>, window_params = [{pipeline_mode = #tpu.pipeline_mode<synchronous>, transform_indices = @transform_0, window_bounds = array<i64: 64, 3>}, {pipeline_mode = #tpu.pipeline_mode<synchronous>, transform_indices = @transform_1, window_bounds = array<i64: 3, 128>}, {pipeline_mode = #tpu.pipeline_mode<synchronous>, transform_indices = @transform_2, window_bounds = array<i64: 1, 128>}, {pipeline_mode = #tpu.pipeline_mode<synchronous>, transform_indices = @transform_3, window_bounds = array<i64: 9, 64, 64>}, {pipeline_mode = #tpu.pipeline_mode<synchronous>, transform_indices = @transform_4, window_bounds = array<i64: 64, 9>}, {pipeline_mode = #tpu.pipeline_mode<synchronous>, transform_indices = @transform_5, window_bounds = array<i64: 9, 128, 128>}, {pipeline_mode = #tpu.pipeline_mode<synchronous>, transform_indices = @transform_6, window_bounds = array<i64: 9, 128>}, {pipeline_mode = #tpu.pipeline_mode<synchronous>, transform_indices = @transform_7, window_bounds = array<i64: 1, 128>}, {pipeline_mode = #tpu.pipeline_mode<synchronous>, transform_indices = @transform_8, window_bounds = array<i64: 16, 4, 64>}, {pipeline_mode = #tpu.pipeline_mode<synchronous>, transform_indices = @transform_9, window_bounds = array<i64: 16, 128, 128>}, {pipeline_mode = #tpu.pipeline_mode<synchronous>, transform_indices = @transform_10, window_bounds = array<i64: 1, 128>}, {pipeline_mode = #tpu.pipeline_mode<synchronous>, transform_indices = @transform_11, window_bounds = array<i64: 1, 128>}, {pipeline_mode = #tpu.pipeline_mode<synchronous>, transform_indices = @transform_12, window_bounds = array<i64: 1, 1>}, {pipeline_mode = #tpu.pipeline_mode<synchronous>, transform_indices = @transform_13, window_bounds = array<i64: 4, 1>}]} {
    %c0 = arith.constant 0 : index
    %c0_0 = arith.constant 0 : index
    %0 = vector.load %arg1[%c0, %c0_0] : memref<64x3xf32, #tpu.memory_space<vmem>>, vector<64x3xf32>
    %c0_1 = arith.constant 0 : index
    %c0_2 = arith.constant 0 : index
    %1 = vector.load %arg2[%c0_1, %c0_2] : memref<3x128xbf16, #tpu.memory_space<vmem>>, vector<3x128xbf16>
    %2 = arith.truncf %0 : vector<64x3xf32> to vector<64x3xbf16>
    %cst = arith.constant dense<0.000000e+00> : vector<64x128xf32>
    %3 = tpu.matmul %2, %1, %cst {dimension_numbers = #tpu.dot_dimension_numbers<[1], [0], [0], [1], [0, 0, 1, 1], [], []>} : vector<64x3xbf16>, vector<3x128xbf16>, vector<64x128xf32> -> vector<64x128xf32>
    %c0_3 = arith.constant 0 : index
    %c0_4 = arith.constant 0 : index
    %4 = vector.load %arg3[%c0_3, %c0_4] : memref<1x128xf32, #tpu.memory_space<vmem>>, vector<1x128xf32>
    %5 = vector.broadcast %4 : vector<1x128xf32> to vector<64x128xf32>
    %6 = arith.addf %3, %5 : vector<64x128xf32>
    %cst_5 = arith.constant 0.000000e+00 : f32
    %7 = vector.broadcast %cst_5 : f32 to vector<16x128xf32>
    %8 = vector.extract_strided_slice %6 {offsets = [0, 0], sizes = [16, 128], strides = [1, 1]} : vector<64x128xf32> to vector<16x128xf32>
    %9 = arith.addf %7, %8 : vector<16x128xf32>
    %10 = vector.extract_strided_slice %6 {offsets = [16, 0], sizes = [16, 128], strides = [1, 1]} : vector<64x128xf32> to vector<16x128xf32>
    %11 = arith.addf %9, %10 : vector<16x128xf32>
    %12 = vector.extract_strided_slice %6 {offsets = [32, 0], sizes = [16, 128], strides = [1, 1]} : vector<64x128xf32> to vector<16x128xf32>
    %13 = arith.addf %11, %12 : vector<16x128xf32>
    %14 = vector.extract_strided_slice %6 {offsets = [48, 0], sizes = [16, 128], strides = [1, 1]} : vector<64x128xf32> to vector<16x128xf32>
    %15 = arith.addf %13, %14 : vector<16x128xf32>
    %cst_6 = arith.constant 2.500000e-01 : f32
    %16 = vector.broadcast %cst_6 : f32 to vector<16x128xf32>
    %17 = arith.mulf %15, %16 : vector<16x128xf32>
    %cst_7 = arith.constant 0.000000e+00 : f32
    %18 = vector.broadcast %cst_7 : f32 to vector<16x128xf32>
    %19 = vector.extract_strided_slice %6 {offsets = [0, 0], sizes = [16, 128], strides = [1, 1]} : vector<64x128xf32> to vector<16x128xf32>
    %20 = arith.subf %19, %17 : vector<16x128xf32>
    %21 = arith.mulf %20, %20 : vector<16x128xf32>
    %22 = arith.addf %18, %21 : vector<16x128xf32>
    %23 = vector.extract_strided_slice %6 {offsets = [16, 0], sizes = [16, 128], strides = [1, 1]} : vector<64x128xf32> to vector<16x128xf32>
    %24 = arith.subf %23, %17 : vector<16x128xf32>
    %25 = arith.mulf %24, %24 : vector<16x128xf32>
    %26 = arith.addf %22, %25 : vector<16x128xf32>
    %27 = vector.extract_strided_slice %6 {offsets = [32, 0], sizes = [16, 128], strides = [1, 1]} : vector<64x128xf32> to vector<16x128xf32>
    %28 = arith.subf %27, %17 : vector<16x128xf32>
    %29 = arith.mulf %28, %28 : vector<16x128xf32>
    %30 = arith.addf %26, %29 : vector<16x128xf32>
    %31 = vector.extract_strided_slice %6 {offsets = [48, 0], sizes = [16, 128], strides = [1, 1]} : vector<64x128xf32> to vector<16x128xf32>
    %32 = arith.subf %31, %17 : vector<16x128xf32>
    %33 = arith.mulf %32, %32 : vector<16x128xf32>
    %34 = arith.addf %30, %33 : vector<16x128xf32>
    %cst_8 = arith.constant 2.500000e-01 : f32
    %35 = vector.broadcast %cst_8 : f32 to vector<16x128xf32>
    %36 = arith.mulf %34, %35 : vector<16x128xf32>
    %cst_9 = arith.constant 9.99999993E-9 : f32
    %37 = vector.broadcast %cst_9 : f32 to vector<16x128xf32>
    %38 = arith.addf %36, %37 : vector<16x128xf32>
    %39 = math.sqrt %38 : vector<16x128xf32>
    %cst_10 = arith.constant dense<0.000000e+00> : vector<16xf32>
    %40 = vector.multi_reduction <add>, %39, %cst_10 [1] : vector<16x128xf32> to vector<16xf32>
    %41 = vector.shape_cast %40 : vector<16xf32> to vector<16x1xf32>
    %cst_11 = arith.constant dense<0.000000e+00> : vector<1xf32>
    %42 = vector.multi_reduction <add>, %41, %cst_11 [0] : vector<16x1xf32> to vector<1xf32>
    %43 = vector.shape_cast %42 : vector<1xf32> to vector<1x1xf32>
    %cst_12 = arith.constant 4.8828125E-4 : f32
    %44 = vector.broadcast %cst_12 : f32 to vector<1x1xf32>
    %45 = arith.mulf %43, %44 : vector<1x1xf32>
    %46 = arith.truncf %45 : vector<1x1xf32> to vector<1x1xbf16>
    %47 = arith.extf %46 : vector<1x1xbf16> to vector<1x1xf32>
    %48 = arith.truncf %6 : vector<64x128xf32> to vector<64x128xbf16>
    %cst_13 = arith.constant 0.000000e+00 : f32
    %49 = vector.broadcast %cst_13 : f32 to vector<64x128xf32>
    %c0_14 = arith.constant 0 : index
    %c0_15 = arith.constant 0 : index
    %c0_16 = arith.constant 0 : index
    %50 = vector.load %arg4[%c0_14, %c0_15, %c0_16] : memref<9x64x64xbf16, #tpu.memory_space<vmem>>, vector<1x64x64xbf16>
    %51 = vector.shape_cast %50 : vector<1x64x64xbf16> to vector<64x64xbf16>
    %cst_17 = arith.constant dense<0.000000e+00> : vector<64x128xf32>
    %52 = tpu.matmul %51, %48, %cst_17 {dimension_numbers = #tpu.dot_dimension_numbers<[1], [0], [0], [1], [0, 0, 1, 1], [], []>} : vector<64x64xbf16>, vector<64x128xbf16>, vector<64x128xf32> -> vector<64x128xf32>
    %c0_18 = arith.constant 0 : index
    %c0_19 = arith.constant 0 : index
    %c0_20 = arith.constant 0 : index
    %53 = vector.load %arg6[%c0_18, %c0_19, %c0_20] : memref<9x128x128xbf16, #tpu.memory_space<vmem>>, vector<1x128x128xbf16>
    %54 = vector.shape_cast %53 : vector<1x128x128xbf16> to vector<128x128xbf16>
    %55 = arith.truncf %52 : vector<64x128xf32> to vector<64x128xbf16>
    %cst_21 = arith.constant dense<0.000000e+00> : vector<64x128xf32>
    %56 = tpu.matmul %55, %54, %cst_21 {dimension_numbers = #tpu.dot_dimension_numbers<[1], [0], [0], [1], [0, 0, 1, 1], [], []>} : vector<64x128xbf16>, vector<128x128xbf16>, vector<64x128xf32> -> vector<64x128xf32>
    %57 = arith.addf %49, %56 : vector<64x128xf32>
    %c1 = arith.constant 1 : index
    %c0_22 = arith.constant 0 : index
    %c0_23 = arith.constant 0 : index
    %58 = vector.load %arg4[%c1, %c0_22, %c0_23] : memref<9x64x64xbf16, #tpu.memory_space<vmem>>, vector<1x64x64xbf16>
    %59 = vector.shape_cast %58 : vector<1x64x64xbf16> to vector<64x64xbf16>
    %cst_24 = arith.constant dense<0.000000e+00> : vector<64x128xf32>
    %60 = tpu.matmul %59, %48, %cst_24 {dimension_numbers = #tpu.dot_dimension_numbers<[1], [0], [0], [1], [0, 0, 1, 1], [], []>} : vector<64x64xbf16>, vector<64x128xbf16>, vector<64x128xf32> -> vector<64x128xf32>
    %c1_25 = arith.constant 1 : index
    %c0_26 = arith.constant 0 : index
    %c0_27 = arith.constant 0 : index
    %61 = vector.load %arg6[%c1_25, %c0_26, %c0_27] : memref<9x128x128xbf16, #tpu.memory_space<vmem>>, vector<1x128x128xbf16>
    %62 = vector.shape_cast %61 : vector<1x128x128xbf16> to vector<128x128xbf16>
    %63 = arith.truncf %60 : vector<64x128xf32> to vector<64x128xbf16>
    %cst_28 = arith.constant dense<0.000000e+00> : vector<64x128xf32>
    %64 = tpu.matmul %63, %62, %cst_28 {dimension_numbers = #tpu.dot_dimension_numbers<[1], [0], [0], [1], [0, 0, 1, 1], [], []>} : vector<64x128xbf16>, vector<128x128xbf16>, vector<64x128xf32> -> vector<64x128xf32>
    %65 = arith.addf %57, %64 : vector<64x128xf32>
    %c2 = arith.constant 2 : index
    %c0_29 = arith.constant 0 : index
    %c0_30 = arith.constant 0 : index
    %66 = vector.load %arg4[%c2, %c0_29, %c0_30] : memref<9x64x64xbf16, #tpu.memory_space<vmem>>, vector<1x64x64xbf16>
    %67 = vector.shape_cast %66 : vector<1x64x64xbf16> to vector<64x64xbf16>
    %cst_31 = arith.constant dense<0.000000e+00> : vector<64x128xf32>
    %68 = tpu.matmul %67, %48, %cst_31 {dimension_numbers = #tpu.dot_dimension_numbers<[1], [0], [0], [1], [0, 0, 1, 1], [], []>} : vector<64x64xbf16>, vector<64x128xbf16>, vector<64x128xf32> -> vector<64x128xf32>
    %c2_32 = arith.constant 2 : index
    %c0_33 = arith.constant 0 : index
    %c0_34 = arith.constant 0 : index
    %69 = vector.load %arg6[%c2_32, %c0_33, %c0_34] : memref<9x128x128xbf16, #tpu.memory_space<vmem>>, vector<1x128x128xbf16>
    %70 = vector.shape_cast %69 : vector<1x128x128xbf16> to vector<128x128xbf16>
    %71 = arith.truncf %68 : vector<64x128xf32> to vector<64x128xbf16>
    %cst_35 = arith.constant dense<0.000000e+00> : vector<64x128xf32>
    %72 = tpu.matmul %71, %70, %cst_35 {dimension_numbers = #tpu.dot_dimension_numbers<[1], [0], [0], [1], [0, 0, 1, 1], [], []>} : vector<64x128xbf16>, vector<128x128xbf16>, vector<64x128xf32> -> vector<64x128xf32>
    %73 = arith.addf %65, %72 : vector<64x128xf32>
    %c3 = arith.constant 3 : index
    %c0_36 = arith.constant 0 : index
    %c0_37 = arith.constant 0 : index
    %74 = vector.load %arg4[%c3, %c0_36, %c0_37] : memref<9x64x64xbf16, #tpu.memory_space<vmem>>, vector<1x64x64xbf16>
    %75 = vector.shape_cast %74 : vector<1x64x64xbf16> to vector<64x64xbf16>
    %cst_38 = arith.constant dense<0.000000e+00> : vector<64x128xf32>
    %76 = tpu.matmul %75, %48, %cst_38 {dimension_numbers = #tpu.dot_dimension_numbers<[1], [0], [0], [1], [0, 0, 1, 1], [], []>} : vector<64x64xbf16>, vector<64x128xbf16>, vector<64x128xf32> -> vector<64x128xf32>
    %c3_39 = arith.constant 3 : index
    %c0_40 = arith.constant 0 : index
    %c0_41 = arith.constant 0 : index
    %77 = vector.load %arg6[%c3_39, %c0_40, %c0_41] : memref<9x128x128xbf16, #tpu.memory_space<vmem>>, vector<1x128x128xbf16>
    %78 = vector.shape_cast %77 : vector<1x128x128xbf16> to vector<128x128xbf16>
    %79 = arith.truncf %76 : vector<64x128xf32> to vector<64x128xbf16>
    %cst_42 = arith.constant dense<0.000000e+00> : vector<64x128xf32>
    %80 = tpu.matmul %79, %78, %cst_42 {dimension_numbers = #tpu.dot_dimension_numbers<[1], [0], [0], [1], [0, 0, 1, 1], [], []>} : vector<64x128xbf16>, vector<128x128xbf16>, vector<64x128xf32> -> vector<64x128xf32>
    %81 = arith.addf %73, %80 : vector<64x128xf32>
    %c4 = arith.constant 4 : index
    %c0_43 = arith.constant 0 : index
    %c0_44 = arith.constant 0 : index
    %82 = vector.load %arg4[%c4, %c0_43, %c0_44] : memref<9x64x64xbf16, #tpu.memory_space<vmem>>, vector<1x64x64xbf16>
    %83 = vector.shape_cast %82 : vector<1x64x64xbf16> to vector<64x64xbf16>
    %cst_45 = arith.constant dense<0.000000e+00> : vector<64x128xf32>
    %84 = tpu.matmul %83, %48, %cst_45 {dimension_numbers = #tpu.dot_dimension_numbers<[1], [0], [0], [1], [0, 0, 1, 1], [], []>} : vector<64x64xbf16>, vector<64x128xbf16>, vector<64x128xf32> -> vector<64x128xf32>
    %c4_46 = arith.constant 4 : index
    %c0_47 = arith.constant 0 : index
    %c0_48 = arith.constant 0 : index
    %85 = vector.load %arg6[%c4_46, %c0_47, %c0_48] : memref<9x128x128xbf16, #tpu.memory_space<vmem>>, vector<1x128x128xbf16>
    %86 = vector.shape_cast %85 : vector<1x128x128xbf16> to vector<128x128xbf16>
    %87 = arith.truncf %84 : vector<64x128xf32> to vector<64x128xbf16>
    %cst_49 = arith.constant dense<0.000000e+00> : vector<64x128xf32>
    %88 = tpu.matmul %87, %86, %cst_49 {dimension_numbers = #tpu.dot_dimension_numbers<[1], [0], [0], [1], [0, 0, 1, 1], [], []>} : vector<64x128xbf16>, vector<128x128xbf16>, vector<64x128xf32> -> vector<64x128xf32>
    %89 = arith.addf %81, %88 : vector<64x128xf32>
    %c5 = arith.constant 5 : index
    %c0_50 = arith.constant 0 : index
    %c0_51 = arith.constant 0 : index
    %90 = vector.load %arg4[%c5, %c0_50, %c0_51] : memref<9x64x64xbf16, #tpu.memory_space<vmem>>, vector<1x64x64xbf16>
    %91 = vector.shape_cast %90 : vector<1x64x64xbf16> to vector<64x64xbf16>
    %cst_52 = arith.constant dense<0.000000e+00> : vector<64x128xf32>
    %92 = tpu.matmul %91, %48, %cst_52 {dimension_numbers = #tpu.dot_dimension_numbers<[1], [0], [0], [1], [0, 0, 1, 1], [], []>} : vector<64x64xbf16>, vector<64x128xbf16>, vector<64x128xf32> -> vector<64x128xf32>
    %c5_53 = arith.constant 5 : index
    %c0_54 = arith.constant 0 : index
    %c0_55 = arith.constant 0 : index
    %93 = vector.load %arg6[%c5_53, %c0_54, %c0_55] : memref<9x128x128xbf16, #tpu.memory_space<vmem>>, vector<1x128x128xbf16>
    %94 = vector.shape_cast %93 : vector<1x128x128xbf16> to vector<128x128xbf16>
    %95 = arith.truncf %92 : vector<64x128xf32> to vector<64x128xbf16>
    %cst_56 = arith.constant dense<0.000000e+00> : vector<64x128xf32>
    %96 = tpu.matmul %95, %94, %cst_56 {dimension_numbers = #tpu.dot_dimension_numbers<[1], [0], [0], [1], [0, 0, 1, 1], [], []>} : vector<64x128xbf16>, vector<128x128xbf16>, vector<64x128xf32> -> vector<64x128xf32>
    %97 = arith.addf %89, %96 : vector<64x128xf32>
    %c6 = arith.constant 6 : index
    %c0_57 = arith.constant 0 : index
    %c0_58 = arith.constant 0 : index
    %98 = vector.load %arg4[%c6, %c0_57, %c0_58] : memref<9x64x64xbf16, #tpu.memory_space<vmem>>, vector<1x64x64xbf16>
    %99 = vector.shape_cast %98 : vector<1x64x64xbf16> to vector<64x64xbf16>
    %cst_59 = arith.constant dense<0.000000e+00> : vector<64x128xf32>
    %100 = tpu.matmul %99, %48, %cst_59 {dimension_numbers = #tpu.dot_dimension_numbers<[1], [0], [0], [1], [0, 0, 1, 1], [], []>} : vector<64x64xbf16>, vector<64x128xbf16>, vector<64x128xf32> -> vector<64x128xf32>
    %c6_60 = arith.constant 6 : index
    %c0_61 = arith.constant 0 : index
    %c0_62 = arith.constant 0 : index
    %101 = vector.load %arg6[%c6_60, %c0_61, %c0_62] : memref<9x128x128xbf16, #tpu.memory_space<vmem>>, vector<1x128x128xbf16>
    %102 = vector.shape_cast %101 : vector<1x128x128xbf16> to vector<128x128xbf16>
    %103 = arith.truncf %100 : vector<64x128xf32> to vector<64x128xbf16>
    %cst_63 = arith.constant dense<0.000000e+00> : vector<64x128xf32>
    %104 = tpu.matmul %103, %102, %cst_63 {dimension_numbers = #tpu.dot_dimension_numbers<[1], [0], [0], [1], [0, 0, 1, 1], [], []>} : vector<64x128xbf16>, vector<128x128xbf16>, vector<64x128xf32> -> vector<64x128xf32>
    %105 = arith.addf %97, %104 : vector<64x128xf32>
    %c7 = arith.constant 7 : index
    %c0_64 = arith.constant 0 : index
    %c0_65 = arith.constant 0 : index
    %106 = vector.load %arg4[%c7, %c0_64, %c0_65] : memref<9x64x64xbf16, #tpu.memory_space<vmem>>, vector<1x64x64xbf16>
    %107 = vector.shape_cast %106 : vector<1x64x64xbf16> to vector<64x64xbf16>
    %cst_66 = arith.constant dense<0.000000e+00> : vector<64x128xf32>
    %108 = tpu.matmul %107, %48, %cst_66 {dimension_numbers = #tpu.dot_dimension_numbers<[1], [0], [0], [1], [0, 0, 1, 1], [], []>} : vector<64x64xbf16>, vector<64x128xbf16>, vector<64x128xf32> -> vector<64x128xf32>
    %c7_67 = arith.constant 7 : index
    %c0_68 = arith.constant 0 : index
    %c0_69 = arith.constant 0 : index
    %109 = vector.load %arg6[%c7_67, %c0_68, %c0_69] : memref<9x128x128xbf16, #tpu.memory_space<vmem>>, vector<1x128x128xbf16>
    %110 = vector.shape_cast %109 : vector<1x128x128xbf16> to vector<128x128xbf16>
    %111 = arith.truncf %108 : vector<64x128xf32> to vector<64x128xbf16>
    %cst_70 = arith.constant dense<0.000000e+00> : vector<64x128xf32>
    %112 = tpu.matmul %111, %110, %cst_70 {dimension_numbers = #tpu.dot_dimension_numbers<[1], [0], [0], [1], [0, 0, 1, 1], [], []>} : vector<64x128xbf16>, vector<128x128xbf16>, vector<64x128xf32> -> vector<64x128xf32>
    %113 = arith.addf %105, %112 : vector<64x128xf32>
    %c8 = arith.constant 8 : index
    %c0_71 = arith.constant 0 : index
    %c0_72 = arith.constant 0 : index
    %114 = vector.load %arg4[%c8, %c0_71, %c0_72] : memref<9x64x64xbf16, #tpu.memory_space<vmem>>, vector<1x64x64xbf16>
    %115 = vector.shape_cast %114 : vector<1x64x64xbf16> to vector<64x64xbf16>
    %cst_73 = arith.constant dense<0.000000e+00> : vector<64x128xf32>
    %116 = tpu.matmul %115, %48, %cst_73 {dimension_numbers = #tpu.dot_dimension_numbers<[1], [0], [0], [1], [0, 0, 1, 1], [], []>} : vector<64x64xbf16>, vector<64x128xbf16>, vector<64x128xf32> -> vector<64x128xf32>
    %c8_74 = arith.constant 8 : index
    %c0_75 = arith.constant 0 : index
    %c0_76 = arith.constant 0 : index
    %117 = vector.load %arg6[%c8_74, %c0_75, %c0_76] : memref<9x128x128xbf16, #tpu.memory_space<vmem>>, vector<1x128x128xbf16>
    %118 = vector.shape_cast %117 : vector<1x128x128xbf16> to vector<128x128xbf16>
    %119 = arith.truncf %116 : vector<64x128xf32> to vector<64x128xbf16>
    %cst_77 = arith.constant dense<0.000000e+00> : vector<64x128xf32>
    %120 = tpu.matmul %119, %118, %cst_77 {dimension_numbers = #tpu.dot_dimension_numbers<[1], [0], [0], [1], [0, 0, 1, 1], [], []>} : vector<64x128xbf16>, vector<128x128xbf16>, vector<64x128xf32> -> vector<64x128xf32>
    %121 = arith.addf %113, %120 : vector<64x128xf32>
    %c0_78 = arith.constant 0 : index
    %c0_79 = arith.constant 0 : index
    %122 = vector.load %arg5[%c0_78, %c0_79] : memref<64x9xbf16, #tpu.memory_space<vmem>>, vector<64x9xbf16>
    %c0_80 = arith.constant 0 : index
    %c0_81 = arith.constant 0 : index
    %123 = vector.load %arg7[%c0_80, %c0_81] : memref<9x128xbf16, #tpu.memory_space<vmem>>, vector<9x128xbf16>
    %cst_82 = arith.constant dense<0.000000e+00> : vector<64x128xf32>
    %124 = tpu.matmul %122, %123, %cst_82 {dimension_numbers = #tpu.dot_dimension_numbers<[1], [0], [0], [1], [0, 0, 1, 1], [], []>} : vector<64x9xbf16>, vector<9x128xbf16>, vector<64x128xf32> -> vector<64x128xf32>
    %125 = vector.broadcast %47 : vector<1x1xf32> to vector<64x128xf32>
    %126 = arith.mulf %125, %124 : vector<64x128xf32>
    %127 = arith.addf %121, %126 : vector<64x128xf32>
    %c0_83 = arith.constant 0 : index
    %c0_84 = arith.constant 0 : index
    %128 = vector.load %arg8[%c0_83, %c0_84] : memref<1x128xf32, #tpu.memory_space<vmem>>, vector<1x128xf32>
    %129 = vector.broadcast %128 : vector<1x128xf32> to vector<64x128xf32>
    %130 = arith.addf %127, %129 : vector<64x128xf32>
    %131 = arith.mulf %130, %130 : vector<64x128xf32>
    %cst_85 = arith.constant dense<0.000000e+00> : vector<64xf32>
    %132 = vector.multi_reduction <add>, %131, %cst_85 [1] : vector<64x128xf32> to vector<64xf32>
    %133 = vector.shape_cast %132 : vector<64xf32> to vector<64x1xf32>
    %cst_86 = arith.constant 1.280000e+02 : f32
    %134 = vector.broadcast %cst_86 : f32 to vector<64x1xf32>
    %135 = arith.divf %133, %134 : vector<64x1xf32>
    %cst_87 = arith.constant 9.99999993E-9 : f32
    %136 = vector.broadcast %cst_87 : f32 to vector<64x1xf32>
    %137 = arith.addf %135, %136 : vector<64x1xf32>
    %138 = math.rsqrt %137 : vector<64x1xf32>
    %139 = vector.broadcast %138 : vector<64x1xf32> to vector<64x128xf32>
    %140 = arith.mulf %130, %139 : vector<64x128xf32>
    %cst_88 = arith.constant 1.000000e-01 : f32
    %141 = vector.broadcast %cst_88 : f32 to vector<64x128xf32>
    %142 = arith.mulf %141, %140 : vector<64x128xf32>
    %143 = arith.maximumf %140, %142 : vector<64x128xf32>
    %144 = arith.truncf %143 : vector<64x128xf32> to vector<64x128xbf16>
    %cst_89 = arith.constant 0.000000e+00 : f32
    %145 = vector.broadcast %cst_89 : f32 to vector<4x128xf32>
    %c0_90 = arith.constant 0 : index
    %c0_91 = arith.constant 0 : index
    %c0_92 = arith.constant 0 : index
    %146 = vector.load %arg9[%c0_90, %c0_91, %c0_92] : memref<16x4x64xbf16, #tpu.memory_space<vmem>>, vector<1x4x64xbf16>
    %147 = vector.shape_cast %146 : vector<1x4x64xbf16> to vector<4x64xbf16>
    %cst_93 = arith.constant dense<0.000000e+00> : vector<4x128xf32>
    %148 = tpu.matmul %147, %144, %cst_93 {dimension_numbers = #tpu.dot_dimension_numbers<[1], [0], [0], [1], [0, 0, 1, 1], [], []>} : vector<4x64xbf16>, vector<64x128xbf16>, vector<4x128xf32> -> vector<4x128xf32>
    %c0_94 = arith.constant 0 : index
    %c0_95 = arith.constant 0 : index
    %c0_96 = arith.constant 0 : index
    %149 = vector.load %arg10[%c0_94, %c0_95, %c0_96] : memref<16x128x128xbf16, #tpu.memory_space<vmem>>, vector<1x128x128xbf16>
    %150 = vector.shape_cast %149 : vector<1x128x128xbf16> to vector<128x128xbf16>
    %151 = arith.truncf %148 : vector<4x128xf32> to vector<4x128xbf16>
    %cst_97 = arith.constant dense<0.000000e+00> : vector<4x128xf32>
    %152 = tpu.matmul %151, %150, %cst_97 {dimension_numbers = #tpu.dot_dimension_numbers<[1], [0], [0], [1], [0, 0, 1, 1], [], []>} : vector<4x128xbf16>, vector<128x128xbf16>, vector<4x128xf32> -> vector<4x128xf32>
    %153 = arith.addf %145, %152 : vector<4x128xf32>
    %c1_98 = arith.constant 1 : index
    %c0_99 = arith.constant 0 : index
    %c0_100 = arith.constant 0 : index
    %154 = vector.load %arg9[%c1_98, %c0_99, %c0_100] : memref<16x4x64xbf16, #tpu.memory_space<vmem>>, vector<1x4x64xbf16>
    %155 = vector.shape_cast %154 : vector<1x4x64xbf16> to vector<4x64xbf16>
    %cst_101 = arith.constant dense<0.000000e+00> : vector<4x128xf32>
    %156 = tpu.matmul %155, %144, %cst_101 {dimension_numbers = #tpu.dot_dimension_numbers<[1], [0], [0], [1], [0, 0, 1, 1], [], []>} : vector<4x64xbf16>, vector<64x128xbf16>, vector<4x128xf32> -> vector<4x128xf32>
    %c1_102 = arith.constant 1 : index
    %c0_103 = arith.constant 0 : index
    %c0_104 = arith.constant 0 : index
    %157 = vector.load %arg10[%c1_102, %c0_103, %c0_104] : memref<16x128x128xbf16, #tpu.memory_space<vmem>>, vector<1x128x128xbf16>
    %158 = vector.shape_cast %157 : vector<1x128x128xbf16> to vector<128x128xbf16>
    %159 = arith.truncf %156 : vector<4x128xf32> to vector<4x128xbf16>
    %cst_105 = arith.constant dense<0.000000e+00> : vector<4x128xf32>
    %160 = tpu.matmul %159, %158, %cst_105 {dimension_numbers = #tpu.dot_dimension_numbers<[1], [0], [0], [1], [0, 0, 1, 1], [], []>} : vector<4x128xbf16>, vector<128x128xbf16>, vector<4x128xf32> -> vector<4x128xf32>
    %161 = arith.addf %153, %160 : vector<4x128xf32>
    %c2_106 = arith.constant 2 : index
    %c0_107 = arith.constant 0 : index
    %c0_108 = arith.constant 0 : index
    %162 = vector.load %arg9[%c2_106, %c0_107, %c0_108] : memref<16x4x64xbf16, #tpu.memory_space<vmem>>, vector<1x4x64xbf16>
    %163 = vector.shape_cast %162 : vector<1x4x64xbf16> to vector<4x64xbf16>
    %cst_109 = arith.constant dense<0.000000e+00> : vector<4x128xf32>
    %164 = tpu.matmul %163, %144, %cst_109 {dimension_numbers = #tpu.dot_dimension_numbers<[1], [0], [0], [1], [0, 0, 1, 1], [], []>} : vector<4x64xbf16>, vector<64x128xbf16>, vector<4x128xf32> -> vector<4x128xf32>
    %c2_110 = arith.constant 2 : index
    %c0_111 = arith.constant 0 : index
    %c0_112 = arith.constant 0 : index
    %165 = vector.load %arg10[%c2_110, %c0_111, %c0_112] : memref<16x128x128xbf16, #tpu.memory_space<vmem>>, vector<1x128x128xbf16>
    %166 = vector.shape_cast %165 : vector<1x128x128xbf16> to vector<128x128xbf16>
    %167 = arith.truncf %164 : vector<4x128xf32> to vector<4x128xbf16>
    %cst_113 = arith.constant dense<0.000000e+00> : vector<4x128xf32>
    %168 = tpu.matmul %167, %166, %cst_113 {dimension_numbers = #tpu.dot_dimension_numbers<[1], [0], [0], [1], [0, 0, 1, 1], [], []>} : vector<4x128xbf16>, vector<128x128xbf16>, vector<4x128xf32> -> vector<4x128xf32>
    %169 = arith.addf %161, %168 : vector<4x128xf32>
    %c3_114 = arith.constant 3 : index
    %c0_115 = arith.constant 0 : index
    %c0_116 = arith.constant 0 : index
    %170 = vector.load %arg9[%c3_114, %c0_115, %c0_116] : memref<16x4x64xbf16, #tpu.memory_space<vmem>>, vector<1x4x64xbf16>
    %171 = vector.shape_cast %170 : vector<1x4x64xbf16> to vector<4x64xbf16>
    %cst_117 = arith.constant dense<0.000000e+00> : vector<4x128xf32>
    %172 = tpu.matmul %171, %144, %cst_117 {dimension_numbers = #tpu.dot_dimension_numbers<[1], [0], [0], [1], [0, 0, 1, 1], [], []>} : vector<4x64xbf16>, vector<64x128xbf16>, vector<4x128xf32> -> vector<4x128xf32>
    %c3_118 = arith.constant 3 : index
    %c0_119 = arith.constant 0 : index
    %c0_120 = arith.constant 0 : index
    %173 = vector.load %arg10[%c3_118, %c0_119, %c0_120] : memref<16x128x128xbf16, #tpu.memory_space<vmem>>, vector<1x128x128xbf16>
    %174 = vector.shape_cast %173 : vector<1x128x128xbf16> to vector<128x128xbf16>
    %175 = arith.truncf %172 : vector<4x128xf32> to vector<4x128xbf16>
    %cst_121 = arith.constant dense<0.000000e+00> : vector<4x128xf32>
    %176 = tpu.matmul %175, %174, %cst_121 {dimension_numbers = #tpu.dot_dimension_numbers<[1], [0], [0], [1], [0, 0, 1, 1], [], []>} : vector<4x128xbf16>, vector<128x128xbf16>, vector<4x128xf32> -> vector<4x128xf32>
    %177 = arith.addf %169, %176 : vector<4x128xf32>
    %c4_122 = arith.constant 4 : index
    %c0_123 = arith.constant 0 : index
    %c0_124 = arith.constant 0 : index
    %178 = vector.load %arg9[%c4_122, %c0_123, %c0_124] : memref<16x4x64xbf16, #tpu.memory_space<vmem>>, vector<1x4x64xbf16>
    %179 = vector.shape_cast %178 : vector<1x4x64xbf16> to vector<4x64xbf16>
    %cst_125 = arith.constant dense<0.000000e+00> : vector<4x128xf32>
    %180 = tpu.matmul %179, %144, %cst_125 {dimension_numbers = #tpu.dot_dimension_numbers<[1], [0], [0], [1], [0, 0, 1, 1], [], []>} : vector<4x64xbf16>, vector<64x128xbf16>, vector<4x128xf32> -> vector<4x128xf32>
    %c4_126 = arith.constant 4 : index
    %c0_127 = arith.constant 0 : index
    %c0_128 = arith.constant 0 : index
    %181 = vector.load %arg10[%c4_126, %c0_127, %c0_128] : memref<16x128x128xbf16, #tpu.memory_space<vmem>>, vector<1x128x128xbf16>
    %182 = vector.shape_cast %181 : vector<1x128x128xbf16> to vector<128x128xbf16>
    %183 = arith.truncf %180 : vector<4x128xf32> to vector<4x128xbf16>
    %cst_129 = arith.constant dense<0.000000e+00> : vector<4x128xf32>
    %184 = tpu.matmul %183, %182, %cst_129 {dimension_numbers = #tpu.dot_dimension_numbers<[1], [0], [0], [1], [0, 0, 1, 1], [], []>} : vector<4x128xbf16>, vector<128x128xbf16>, vector<4x128xf32> -> vector<4x128xf32>
    %185 = arith.addf %177, %184 : vector<4x128xf32>
    %c5_130 = arith.constant 5 : index
    %c0_131 = arith.constant 0 : index
    %c0_132 = arith.constant 0 : index
    %186 = vector.load %arg9[%c5_130, %c0_131, %c0_132] : memref<16x4x64xbf16, #tpu.memory_space<vmem>>, vector<1x4x64xbf16>
    %187 = vector.shape_cast %186 : vector<1x4x64xbf16> to vector<4x64xbf16>
    %cst_133 = arith.constant dense<0.000000e+00> : vector<4x128xf32>
    %188 = tpu.matmul %187, %144, %cst_133 {dimension_numbers = #tpu.dot_dimension_numbers<[1], [0], [0], [1], [0, 0, 1, 1], [], []>} : vector<4x64xbf16>, vector<64x128xbf16>, vector<4x128xf32> -> vector<4x128xf32>
    %c5_134 = arith.constant 5 : index
    %c0_135 = arith.constant 0 : index
    %c0_136 = arith.constant 0 : index
    %189 = vector.load %arg10[%c5_134, %c0_135, %c0_136] : memref<16x128x128xbf16, #tpu.memory_space<vmem>>, vector<1x128x128xbf16>
    %190 = vector.shape_cast %189 : vector<1x128x128xbf16> to vector<128x128xbf16>
    %191 = arith.truncf %188 : vector<4x128xf32> to vector<4x128xbf16>
    %cst_137 = arith.constant dense<0.000000e+00> : vector<4x128xf32>
    %192 = tpu.matmul %191, %190, %cst_137 {dimension_numbers = #tpu.dot_dimension_numbers<[1], [0], [0], [1], [0, 0, 1, 1], [], []>} : vector<4x128xbf16>, vector<128x128xbf16>, vector<4x128xf32> -> vector<4x128xf32>
    %193 = arith.addf %185, %192 : vector<4x128xf32>
    %c6_138 = arith.constant 6 : index
    %c0_139 = arith.constant 0 : index
    %c0_140 = arith.constant 0 : index
    %194 = vector.load %arg9[%c6_138, %c0_139, %c0_140] : memref<16x4x64xbf16, #tpu.memory_space<vmem>>, vector<1x4x64xbf16>
    %195 = vector.shape_cast %194 : vector<1x4x64xbf16> to vector<4x64xbf16>
    %cst_141 = arith.constant dense<0.000000e+00> : vector<4x128xf32>
    %196 = tpu.matmul %195, %144, %cst_141 {dimension_numbers = #tpu.dot_dimension_numbers<[1], [0], [0], [1], [0, 0, 1, 1], [], []>} : vector<4x64xbf16>, vector<64x128xbf16>, vector<4x128xf32> -> vector<4x128xf32>
    %c6_142 = arith.constant 6 : index
    %c0_143 = arith.constant 0 : index
    %c0_144 = arith.constant 0 : index
    %197 = vector.load %arg10[%c6_142, %c0_143, %c0_144] : memref<16x128x128xbf16, #tpu.memory_space<vmem>>, vector<1x128x128xbf16>
    %198 = vector.shape_cast %197 : vector<1x128x128xbf16> to vector<128x128xbf16>
    %199 = arith.truncf %196 : vector<4x128xf32> to vector<4x128xbf16>
    %cst_145 = arith.constant dense<0.000000e+00> : vector<4x128xf32>
    %200 = tpu.matmul %199, %198, %cst_145 {dimension_numbers = #tpu.dot_dimension_numbers<[1], [0], [0], [1], [0, 0, 1, 1], [], []>} : vector<4x128xbf16>, vector<128x128xbf16>, vector<4x128xf32> -> vector<4x128xf32>
    %201 = arith.addf %193, %200 : vector<4x128xf32>
    %c7_146 = arith.constant 7 : index
    %c0_147 = arith.constant 0 : index
    %c0_148 = arith.constant 0 : index
    %202 = vector.load %arg9[%c7_146, %c0_147, %c0_148] : memref<16x4x64xbf16, #tpu.memory_space<vmem>>, vector<1x4x64xbf16>
    %203 = vector.shape_cast %202 : vector<1x4x64xbf16> to vector<4x64xbf16>
    %cst_149 = arith.constant dense<0.000000e+00> : vector<4x128xf32>
    %204 = tpu.matmul %203, %144, %cst_149 {dimension_numbers = #tpu.dot_dimension_numbers<[1], [0], [0], [1], [0, 0, 1, 1], [], []>} : vector<4x64xbf16>, vector<64x128xbf16>, vector<4x128xf32> -> vector<4x128xf32>
    %c7_150 = arith.constant 7 : index
    %c0_151 = arith.constant 0 : index
    %c0_152 = arith.constant 0 : index
    %205 = vector.load %arg10[%c7_150, %c0_151, %c0_152] : memref<16x128x128xbf16, #tpu.memory_space<vmem>>, vector<1x128x128xbf16>
    %206 = vector.shape_cast %205 : vector<1x128x128xbf16> to vector<128x128xbf16>
    %207 = arith.truncf %204 : vector<4x128xf32> to vector<4x128xbf16>
    %cst_153 = arith.constant dense<0.000000e+00> : vector<4x128xf32>
    %208 = tpu.matmul %207, %206, %cst_153 {dimension_numbers = #tpu.dot_dimension_numbers<[1], [0], [0], [1], [0, 0, 1, 1], [], []>} : vector<4x128xbf16>, vector<128x128xbf16>, vector<4x128xf32> -> vector<4x128xf32>
    %209 = arith.addf %201, %208 : vector<4x128xf32>
    %c8_154 = arith.constant 8 : index
    %c0_155 = arith.constant 0 : index
    %c0_156 = arith.constant 0 : index
    %210 = vector.load %arg9[%c8_154, %c0_155, %c0_156] : memref<16x4x64xbf16, #tpu.memory_space<vmem>>, vector<1x4x64xbf16>
    %211 = vector.shape_cast %210 : vector<1x4x64xbf16> to vector<4x64xbf16>
    %cst_157 = arith.constant dense<0.000000e+00> : vector<4x128xf32>
    %212 = tpu.matmul %211, %144, %cst_157 {dimension_numbers = #tpu.dot_dimension_numbers<[1], [0], [0], [1], [0, 0, 1, 1], [], []>} : vector<4x64xbf16>, vector<64x128xbf16>, vector<4x128xf32> -> vector<4x128xf32>
    %c8_158 = arith.constant 8 : index
    %c0_159 = arith.constant 0 : index
    %c0_160 = arith.constant 0 : index
    %213 = vector.load %arg10[%c8_158, %c0_159, %c0_160] : memref<16x128x128xbf16, #tpu.memory_space<vmem>>, vector<1x128x128xbf16>
    %214 = vector.shape_cast %213 : vector<1x128x128xbf16> to vector<128x128xbf16>
    %215 = arith.truncf %212 : vector<4x128xf32> to vector<4x128xbf16>
    %cst_161 = arith.constant dense<0.000000e+00> : vector<4x128xf32>
    %216 = tpu.matmul %215, %214, %cst_161 {dimension_numbers = #tpu.dot_dimension_numbers<[1], [0], [0], [1], [0, 0, 1, 1], [], []>} : vector<4x128xbf16>, vector<128x128xbf16>, vector<4x128xf32> -> vector<4x128xf32>
    %217 = arith.addf %209, %216 : vector<4x128xf32>
    %c9 = arith.constant 9 : index
    %c0_162 = arith.constant 0 : index
    %c0_163 = arith.constant 0 : index
    %218 = vector.load %arg9[%c9, %c0_162, %c0_163] : memref<16x4x64xbf16, #tpu.memory_space<vmem>>, vector<1x4x64xbf16>
    %219 = vector.shape_cast %218 : vector<1x4x64xbf16> to vector<4x64xbf16>
    %cst_164 = arith.constant dense<0.000000e+00> : vector<4x128xf32>
    %220 = tpu.matmul %219, %144, %cst_164 {dimension_numbers = #tpu.dot_dimension_numbers<[1], [0], [0], [1], [0, 0, 1, 1], [], []>} : vector<4x64xbf16>, vector<64x128xbf16>, vector<4x128xf32> -> vector<4x128xf32>
    %c9_165 = arith.constant 9 : index
    %c0_166 = arith.constant 0 : index
    %c0_167 = arith.constant 0 : index
    %221 = vector.load %arg10[%c9_165, %c0_166, %c0_167] : memref<16x128x128xbf16, #tpu.memory_space<vmem>>, vector<1x128x128xbf16>
    %222 = vector.shape_cast %221 : vector<1x128x128xbf16> to vector<128x128xbf16>
    %223 = arith.truncf %220 : vector<4x128xf32> to vector<4x128xbf16>
    %cst_168 = arith.constant dense<0.000000e+00> : vector<4x128xf32>
    %224 = tpu.matmul %223, %222, %cst_168 {dimension_numbers = #tpu.dot_dimension_numbers<[1], [0], [0], [1], [0, 0, 1, 1], [], []>} : vector<4x128xbf16>, vector<128x128xbf16>, vector<4x128xf32> -> vector<4x128xf32>
    %225 = arith.addf %217, %224 : vector<4x128xf32>
    %c10 = arith.constant 10 : index
    %c0_169 = arith.constant 0 : index
    %c0_170 = arith.constant 0 : index
    %226 = vector.load %arg9[%c10, %c0_169, %c0_170] : memref<16x4x64xbf16, #tpu.memory_space<vmem>>, vector<1x4x64xbf16>
    %227 = vector.shape_cast %226 : vector<1x4x64xbf16> to vector<4x64xbf16>
    %cst_171 = arith.constant dense<0.000000e+00> : vector<4x128xf32>
    %228 = tpu.matmul %227, %144, %cst_171 {dimension_numbers = #tpu.dot_dimension_numbers<[1], [0], [0], [1], [0, 0, 1, 1], [], []>} : vector<4x64xbf16>, vector<64x128xbf16>, vector<4x128xf32> -> vector<4x128xf32>
    %c10_172 = arith.constant 10 : index
    %c0_173 = arith.constant 0 : index
    %c0_174 = arith.constant 0 : index
    %229 = vector.load %arg10[%c10_172, %c0_173, %c0_174] : memref<16x128x128xbf16, #tpu.memory_space<vmem>>, vector<1x128x128xbf16>
    %230 = vector.shape_cast %229 : vector<1x128x128xbf16> to vector<128x128xbf16>
    %231 = arith.truncf %228 : vector<4x128xf32> to vector<4x128xbf16>
    %cst_175 = arith.constant dense<0.000000e+00> : vector<4x128xf32>
    %232 = tpu.matmul %231, %230, %cst_175 {dimension_numbers = #tpu.dot_dimension_numbers<[1], [0], [0], [1], [0, 0, 1, 1], [], []>} : vector<4x128xbf16>, vector<128x128xbf16>, vector<4x128xf32> -> vector<4x128xf32>
    %233 = arith.addf %225, %232 : vector<4x128xf32>
    %c11 = arith.constant 11 : index
    %c0_176 = arith.constant 0 : index
    %c0_177 = arith.constant 0 : index
    %234 = vector.load %arg9[%c11, %c0_176, %c0_177] : memref<16x4x64xbf16, #tpu.memory_space<vmem>>, vector<1x4x64xbf16>
    %235 = vector.shape_cast %234 : vector<1x4x64xbf16> to vector<4x64xbf16>
    %cst_178 = arith.constant dense<0.000000e+00> : vector<4x128xf32>
    %236 = tpu.matmul %235, %144, %cst_178 {dimension_numbers = #tpu.dot_dimension_numbers<[1], [0], [0], [1], [0, 0, 1, 1], [], []>} : vector<4x64xbf16>, vector<64x128xbf16>, vector<4x128xf32> -> vector<4x128xf32>
    %c11_179 = arith.constant 11 : index
    %c0_180 = arith.constant 0 : index
    %c0_181 = arith.constant 0 : index
    %237 = vector.load %arg10[%c11_179, %c0_180, %c0_181] : memref<16x128x128xbf16, #tpu.memory_space<vmem>>, vector<1x128x128xbf16>
    %238 = vector.shape_cast %237 : vector<1x128x128xbf16> to vector<128x128xbf16>
    %239 = arith.truncf %236 : vector<4x128xf32> to vector<4x128xbf16>
    %cst_182 = arith.constant dense<0.000000e+00> : vector<4x128xf32>
    %240 = tpu.matmul %239, %238, %cst_182 {dimension_numbers = #tpu.dot_dimension_numbers<[1], [0], [0], [1], [0, 0, 1, 1], [], []>} : vector<4x128xbf16>, vector<128x128xbf16>, vector<4x128xf32> -> vector<4x128xf32>
    %241 = arith.addf %233, %240 : vector<4x128xf32>
    %c12 = arith.constant 12 : index
    %c0_183 = arith.constant 0 : index
    %c0_184 = arith.constant 0 : index
    %242 = vector.load %arg9[%c12, %c0_183, %c0_184] : memref<16x4x64xbf16, #tpu.memory_space<vmem>>, vector<1x4x64xbf16>
    %243 = vector.shape_cast %242 : vector<1x4x64xbf16> to vector<4x64xbf16>
    %cst_185 = arith.constant dense<0.000000e+00> : vector<4x128xf32>
    %244 = tpu.matmul %243, %144, %cst_185 {dimension_numbers = #tpu.dot_dimension_numbers<[1], [0], [0], [1], [0, 0, 1, 1], [], []>} : vector<4x64xbf16>, vector<64x128xbf16>, vector<4x128xf32> -> vector<4x128xf32>
    %c12_186 = arith.constant 12 : index
    %c0_187 = arith.constant 0 : index
    %c0_188 = arith.constant 0 : index
    %245 = vector.load %arg10[%c12_186, %c0_187, %c0_188] : memref<16x128x128xbf16, #tpu.memory_space<vmem>>, vector<1x128x128xbf16>
    %246 = vector.shape_cast %245 : vector<1x128x128xbf16> to vector<128x128xbf16>
    %247 = arith.truncf %244 : vector<4x128xf32> to vector<4x128xbf16>
    %cst_189 = arith.constant dense<0.000000e+00> : vector<4x128xf32>
    %248 = tpu.matmul %247, %246, %cst_189 {dimension_numbers = #tpu.dot_dimension_numbers<[1], [0], [0], [1], [0, 0, 1, 1], [], []>} : vector<4x128xbf16>, vector<128x128xbf16>, vector<4x128xf32> -> vector<4x128xf32>
    %249 = arith.addf %241, %248 : vector<4x128xf32>
    %c13 = arith.constant 13 : index
    %c0_190 = arith.constant 0 : index
    %c0_191 = arith.constant 0 : index
    %250 = vector.load %arg9[%c13, %c0_190, %c0_191] : memref<16x4x64xbf16, #tpu.memory_space<vmem>>, vector<1x4x64xbf16>
    %251 = vector.shape_cast %250 : vector<1x4x64xbf16> to vector<4x64xbf16>
    %cst_192 = arith.constant dense<0.000000e+00> : vector<4x128xf32>
    %252 = tpu.matmul %251, %144, %cst_192 {dimension_numbers = #tpu.dot_dimension_numbers<[1], [0], [0], [1], [0, 0, 1, 1], [], []>} : vector<4x64xbf16>, vector<64x128xbf16>, vector<4x128xf32> -> vector<4x128xf32>
    %c13_193 = arith.constant 13 : index
    %c0_194 = arith.constant 0 : index
    %c0_195 = arith.constant 0 : index
    %253 = vector.load %arg10[%c13_193, %c0_194, %c0_195] : memref<16x128x128xbf16, #tpu.memory_space<vmem>>, vector<1x128x128xbf16>
    %254 = vector.shape_cast %253 : vector<1x128x128xbf16> to vector<128x128xbf16>
    %255 = arith.truncf %252 : vector<4x128xf32> to vector<4x128xbf16>
    %cst_196 = arith.constant dense<0.000000e+00> : vector<4x128xf32>
    %256 = tpu.matmul %255, %254, %cst_196 {dimension_numbers = #tpu.dot_dimension_numbers<[1], [0], [0], [1], [0, 0, 1, 1], [], []>} : vector<4x128xbf16>, vector<128x128xbf16>, vector<4x128xf32> -> vector<4x128xf32>
    %257 = arith.addf %249, %256 : vector<4x128xf32>
    %c14 = arith.constant 14 : index
    %c0_197 = arith.constant 0 : index
    %c0_198 = arith.constant 0 : index
    %258 = vector.load %arg9[%c14, %c0_197, %c0_198] : memref<16x4x64xbf16, #tpu.memory_space<vmem>>, vector<1x4x64xbf16>
    %259 = vector.shape_cast %258 : vector<1x4x64xbf16> to vector<4x64xbf16>
    %cst_199 = arith.constant dense<0.000000e+00> : vector<4x128xf32>
    %260 = tpu.matmul %259, %144, %cst_199 {dimension_numbers = #tpu.dot_dimension_numbers<[1], [0], [0], [1], [0, 0, 1, 1], [], []>} : vector<4x64xbf16>, vector<64x128xbf16>, vector<4x128xf32> -> vector<4x128xf32>
    %c14_200 = arith.constant 14 : index
    %c0_201 = arith.constant 0 : index
    %c0_202 = arith.constant 0 : index
    %261 = vector.load %arg10[%c14_200, %c0_201, %c0_202] : memref<16x128x128xbf16, #tpu.memory_space<vmem>>, vector<1x128x128xbf16>
    %262 = vector.shape_cast %261 : vector<1x128x128xbf16> to vector<128x128xbf16>
    %263 = arith.truncf %260 : vector<4x128xf32> to vector<4x128xbf16>
    %cst_203 = arith.constant dense<0.000000e+00> : vector<4x128xf32>
    %264 = tpu.matmul %263, %262, %cst_203 {dimension_numbers = #tpu.dot_dimension_numbers<[1], [0], [0], [1], [0, 0, 1, 1], [], []>} : vector<4x128xbf16>, vector<128x128xbf16>, vector<4x128xf32> -> vector<4x128xf32>
    %265 = arith.addf %257, %264 : vector<4x128xf32>
    %c15 = arith.constant 15 : index
    %c0_204 = arith.constant 0 : index
    %c0_205 = arith.constant 0 : index
    %266 = vector.load %arg9[%c15, %c0_204, %c0_205] : memref<16x4x64xbf16, #tpu.memory_space<vmem>>, vector<1x4x64xbf16>
    %267 = vector.shape_cast %266 : vector<1x4x64xbf16> to vector<4x64xbf16>
    %cst_206 = arith.constant dense<0.000000e+00> : vector<4x128xf32>
    %268 = tpu.matmul %267, %144, %cst_206 {dimension_numbers = #tpu.dot_dimension_numbers<[1], [0], [0], [1], [0, 0, 1, 1], [], []>} : vector<4x64xbf16>, vector<64x128xbf16>, vector<4x128xf32> -> vector<4x128xf32>
    %c15_207 = arith.constant 15 : index
    %c0_208 = arith.constant 0 : index
    %c0_209 = arith.constant 0 : index
    %269 = vector.load %arg10[%c15_207, %c0_208, %c0_209] : memref<16x128x128xbf16, #tpu.memory_space<vmem>>, vector<1x128x128xbf16>
    %270 = vector.shape_cast %269 : vector<1x128x128xbf16> to vector<128x128xbf16>
    %271 = arith.truncf %268 : vector<4x128xf32> to vector<4x128xbf16>
    %cst_210 = arith.constant dense<0.000000e+00> : vector<4x128xf32>
    %272 = tpu.matmul %271, %270, %cst_210 {dimension_numbers = #tpu.dot_dimension_numbers<[1], [0], [0], [1], [0, 0, 1, 1], [], []>} : vector<4x128xbf16>, vector<128x128xbf16>, vector<4x128xf32> -> vector<4x128xf32>
    %273 = arith.addf %265, %272 : vector<4x128xf32>
    %c0_211 = arith.constant 0 : index
    %c0_212 = arith.constant 0 : index
    %274 = vector.load %arg11[%c0_211, %c0_212] : memref<1x128xf32, #tpu.memory_space<vmem>>, vector<1x128xf32>
    %275 = vector.broadcast %274 : vector<1x128xf32> to vector<4x128xf32>
    %276 = arith.addf %273, %275 : vector<4x128xf32>
    %277 = arith.mulf %276, %276 : vector<4x128xf32>
    %cst_213 = arith.constant dense<0.000000e+00> : vector<4xf32>
    %278 = vector.multi_reduction <add>, %277, %cst_213 [1] : vector<4x128xf32> to vector<4xf32>
    %279 = vector.shape_cast %278 : vector<4xf32> to vector<4x1xf32>
    %cst_214 = arith.constant 1.280000e+02 : f32
    %280 = vector.broadcast %cst_214 : f32 to vector<4x1xf32>
    %281 = arith.divf %279, %280 : vector<4x1xf32>
    %cst_215 = arith.constant 9.99999993E-9 : f32
    %282 = vector.broadcast %cst_215 : f32 to vector<4x1xf32>
    %283 = arith.addf %281, %282 : vector<4x1xf32>
    %284 = math.rsqrt %283 : vector<4x1xf32>
    %285 = vector.broadcast %284 : vector<4x1xf32> to vector<4x128xf32>
    %286 = arith.mulf %276, %285 : vector<4x128xf32>
    %cst_216 = arith.constant 1.000000e-01 : f32
    %287 = vector.broadcast %cst_216 : f32 to vector<4x128xf32>
    %288 = arith.mulf %287, %286 : vector<4x128xf32>
    %289 = arith.maximumf %286, %288 : vector<4x128xf32>
    %c0_217 = arith.constant 0 : index
    %c0_218 = arith.constant 0 : index
    %290 = vector.load %arg12[%c0_217, %c0_218] : memref<1x128xbf16, #tpu.memory_space<vmem>>, vector<1x128xbf16>
    %291 = arith.extf %290 : vector<1x128xbf16> to vector<1x128xf32>
    %292 = vector.broadcast %291 : vector<1x128xf32> to vector<4x128xf32>
    %293 = arith.mulf %289, %292 : vector<4x128xf32>
    %cst_219 = arith.constant dense<0.000000e+00> : vector<4xf32>
    %294 = vector.multi_reduction <add>, %293, %cst_219 [1] : vector<4x128xf32> to vector<4xf32>
    %295 = vector.shape_cast %294 : vector<4xf32> to vector<4x1xf32>
    %c0_220 = arith.constant 0 : index
    %c0_221 = arith.constant 0 : index
    %296 = vector.load %arg13[%c0_220, %c0_221] : memref<1x1xf32, #tpu.memory_space<vmem>>, vector<1x1xf32>
    %297 = vector.broadcast %296 : vector<1x1xf32> to vector<4x1xf32>
    %298 = arith.addf %295, %297 : vector<4x1xf32>
    %c0_222 = arith.constant 0 : index
    %c0_223 = arith.constant 0 : index
    %299 = vector.load %arg14[%c0_222, %c0_223] : memref<4x1xf32, #tpu.memory_space<vmem>>, vector<4x1xf32>
    tpu.vector_store %arg14[%c0_222, %c0_223], %298 {strides = array<i32>} : memref<4x1xf32, #tpu.memory_space<vmem>>, vector<4x1xf32>,
    return
  }
  func.func @transform_0(%arg0: i32) -> (i32, i32) {
    %c0_i32 = arith.constant 0 : i32
    %c0_i32_0 = arith.constant 0 : i32
    %c0_i32_1 = arith.constant 0 : i32
    return %c0_i32, %c0_i32_0 : i32, i32
  }
  func.func @transform_1(%arg0: i32) -> (i32, i32) {
    %c0_i32 = arith.constant 0 : i32
    %c0_i32_0 = arith.constant 0 : i32
    %c0_i32_1 = arith.constant 0 : i32
    return %c0_i32, %c0_i32_0 : i32, i32
  }
  func.func @transform_2(%arg0: i32) -> (i32, i32) {
    %c0_i32 = arith.constant 0 : i32
    %c0_i32_0 = arith.constant 0 : i32
    %c0_i32_1 = arith.constant 0 : i32
    return %c0_i32, %c0_i32_0 : i32, i32
  }
  func.func @transform_3(%arg0: i32) -> (i32, i32, i32) {
    %c0_i32 = arith.constant 0 : i32
    %c0_i32_0 = arith.constant 0 : i32
    %c0_i32_1 = arith.constant 0 : i32
    %c0_i32_2 = arith.constant 0 : i32
    return %c0_i32, %c0_i32_0, %c0_i32_1 : i32, i32, i32
  }
  func.func @transform_4(%arg0: i32) -> (i32, i32) {
    %c0_i32 = arith.constant 0 : i32
    %c0_i32_0 = arith.constant 0 : i32
    %c0_i32_1 = arith.constant 0 : i32
    return %c0_i32, %c0_i32_0 : i32, i32
  }
  func.func @transform_5(%arg0: i32) -> (i32, i32, i32) {
    %c0_i32 = arith.constant 0 : i32
    %c0_i32_0 = arith.constant 0 : i32
    %c0_i32_1 = arith.constant 0 : i32
    %c0_i32_2 = arith.constant 0 : i32
    return %c0_i32, %c0_i32_0, %c0_i32_1 : i32, i32, i32
  }
  func.func @transform_6(%arg0: i32) -> (i32, i32) {
    %c0_i32 = arith.constant 0 : i32
    %c0_i32_0 = arith.constant 0 : i32
    %c0_i32_1 = arith.constant 0 : i32
    return %c0_i32, %c0_i32_0 : i32, i32
  }
  func.func @transform_7(%arg0: i32) -> (i32, i32) {
    %c0_i32 = arith.constant 0 : i32
    %c0_i32_0 = arith.constant 0 : i32
    %c0_i32_1 = arith.constant 0 : i32
    return %c0_i32, %c0_i32_0 : i32, i32
  }
  func.func @transform_8(%arg0: i32) -> (i32, i32, i32) {
    %c0_i32 = arith.constant 0 : i32
    %c0_i32_0 = arith.constant 0 : i32
    %c0_i32_1 = arith.constant 0 : i32
    %c0_i32_2 = arith.constant 0 : i32
    return %c0_i32, %c0_i32_0, %c0_i32_1 : i32, i32, i32
  }
  func.func @transform_9(%arg0: i32) -> (i32, i32, i32) {
    %c0_i32 = arith.constant 0 : i32
    %c0_i32_0 = arith.constant 0 : i32
    %c0_i32_1 = arith.constant 0 : i32
    %c0_i32_2 = arith.constant 0 : i32
    return %c0_i32, %c0_i32_0, %c0_i32_1 : i32, i32, i32
  }
  func.func @transform_10(%arg0: i32) -> (i32, i32) {
    %c0_i32 = arith.constant 0 : i32
    %c0_i32_0 = arith.constant 0 : i32
    %c0_i32_1 = arith.constant 0 : i32
    return %c0_i32, %c0_i32_0 : i32, i32
  }
  func.func @transform_11(%arg0: i32) -> (i32, i32) {
    %c0_i32 = arith.constant 0 : i32
    %c0_i32_0 = arith.constant 0 : i32
    %c0_i32_1 = arith.constant 0 : i32
    return %c0_i32, %c0_i32_0 : i32, i32
  }
  func.func @transform_12(%arg0: i32) -> (i32, i32) {
    %c0_i32 = arith.constant 0 : i32
    %c0_i32_0 = arith.constant 0 : i32
    %c0_i32_1 = arith.constant 0 : i32
    return %c0_i32, %c0_i32_0 : i32, i32
  }
  func.func @transform_13(%arg0: i32) -> (i32, i32) {
    %c0_i32 = arith.constant 0 : i32
    %c0_i32_0 = arith.constant 0 : i32
    %c0_i32_1 = arith.constant 0 : i32
    return %c0_i32, %c0_i32_0 : i32, i32
  }
}

</mosaic_0001>

<llo_original>
// kernel: tpu_custom_call.1
$region0: #{tpu_custom_call.1}
  #allocation0 [shape = 'u32[]', space=smem, size = 0x4, offset = 0x4, fixed_abs, tag = 'smem constant byte address 0x4 - core index']
  #allocation1 [shape = 'u32[144,128]{1,0:T(1,128)}', space=vmem, size = 0x12000, scoped, tag = 'internal scratch']
  #allocation2 [shape = 'f32[1,1]{1,0:T(1,128)S(1)}', space=vmem, size = 0x200, scoped, tag = 'scoped memory for tpu_custom_call.1']
  %s0 = inlined_call_operand.vmem [shape: f32[64,3], index: 0, kind: input, shape index: {}]
  %s1 = inlined_call_operand.vmem [shape: bf16[3,128], index: 1, kind: input, shape index: {}]
  %s2 = inlined_call_operand.vmem [shape: f32[1,128], index: 2, kind: input, shape index: {}]
  %s3 = inlined_call_operand.hbm [shape: bf16[9,64,64], index: 3, kind: input, shape index: {}]
  %s4 = inlined_call_operand.vmem [shape: bf16[64,9], index: 4, kind: input, shape index: {}]
  %s5 = inlined_call_operand.hbm [shape: bf16[9,128,128], index: 5, kind: input, shape index: {}]
  %s6 = inlined_call_operand.vmem [shape: bf16[9,128], index: 6, kind: input, shape index: {}]
  %s7 = inlined_call_operand.vmem [shape: f32[1,128], index: 7, kind: input, shape index: {}]
  %s8 = inlined_call_operand.vmem [shape: bf16[16,4,64], index: 8, kind: input, shape index: {}]
  %s9 = inlined_call_operand.hbm [shape: bf16[16,128,128], index: 9, kind: input, shape index: {}]
  %s10 = inlined_call_operand.vmem [shape: f32[1,128], index: 10, kind: input, shape index: {}]
  %s11 = inlined_call_operand.vmem [shape: bf16[1,128], index: 11, kind: input, shape index: {}]
  %s12 = inlined_call_operand.<no memory space> [shape: f32[1,1], index: 12, kind: input, shape index: {}]
  %s13 = inlined_call_operand.vmem [shape: f32[4,1], index: 13, kind: output, shape index: {}]
  %s14 = sld [smem:[#allocation0]]
  $region74: #{tpu_custom_call.1} parent=0
    _
  %s16 = ssub.s32 1, %s14
  %s17 = scalar_select 0, %s16, %s14
  %v18 = vstv %s12
  %19 = vst [vmem:[#allocation2] sm:$0x1] %v18
  $region1: #{tpu_custom_call.1} parent=0
    #allocation3 [shape = 'u8[147456]{0}', space=vmem, size = 0x24000, scoped, tag = 'input window, operand 3, single buffered']
    #allocation4 [shape = 's32[1]{0}', space=sflag, size = 0x4, scoped, tag = 'scoped memory for tpu_custom_call.1']
    #allocation5 [shape = 'u8[294912]{0}', space=vmem, size = 0x48000, scoped, tag = 'input window, operand 5, single buffered']
    #allocation6 [shape = 's32[1]{0}', space=sflag, size = 0x4, scoped, tag = 'scoped memory for tpu_custom_call.1']
    #allocation7 [shape = 'u8[524288]{0}', space=vmem, size = 0x80000, scoped, tag = 'input window, operand 9, single buffered']
    %20 = vsyncpa [#allocation4], 0
    %21 = vsyncpa [#allocation6], 0
    // Predicated region
    $region2: #{tpu_custom_call.1} parent=1 // pred_check
      _
    $region3: #{tpu_custom_call.1} parent=1 // pred_check_branch
      %23 = sbr.rel (0) target = $region5
    $region4: #{tpu_custom_call.1} parent=1 // pred_region
      _
    $region5: #{tpu_custom_call.1} parent=1 // pred_fallthru
      _
    // Predicated region
    $region6: #{tpu_custom_call.1} parent=1 // pred_check
      _
    $region7: #{tpu_custom_call.1} parent=1 // pred_check_branch
      %25 = sbr.rel (0) target = $region9
    $region8: #{tpu_custom_call.1} parent=1 // pred_region
      _
    $region9: #{tpu_custom_call.1} parent=1 // pred_fallthru
      _
    // Predicated region
    $region10: #{tpu_custom_call.1} parent=1 // pred_check
      _
    $region11: #{tpu_custom_call.1} parent=1 // pred_check_branch
      %27 = sbr.rel (0) target = $region13
    $region12: #{tpu_custom_call.1} parent=1 // pred_region
      _
    $region13: #{tpu_custom_call.1} parent=1 // pred_fallthru
      _
    // Predicated region
    $region14: #{tpu_custom_call.1} parent=1 // pred_check
      _
    $region15: #{tpu_custom_call.1} parent=1 // pred_check_branch
      %29 = sbr.rel (0) target = $region17
    $region16: #{tpu_custom_call.1} parent=1 // pred_region
      %s31 = ssub.s32 4608, 4608
      %32 = vsyncadd [#allocation4], %s31
      %s33 = sshll.u32 [#allocation3], 4
      %s34 = int_to_ptr.vmem [resolvable:$true] %s33
      %39 = dma.hbm_to_vmem [thread:$0]  %s3, 4608, %s34, [#allocation4], 64, 64, 4
    $region17: #{tpu_custom_call.1} parent=1 // pred_fallthru
      _
    // Predicated region
    $region18: #{tpu_custom_call.1} parent=1 // pred_check
      _
    $region19: #{tpu_custom_call.1} parent=1 // pred_check_branch
      %41 = sbr.rel (0) target = $region21
    $region20: #{tpu_custom_call.1} parent=1 // pred_region
      _
    $region21: #{tpu_custom_call.1} parent=1 // pred_fallthru
      _
    // Predicated region
    $region22: #{tpu_custom_call.1} parent=1 // pred_check
      _
    $region23: #{tpu_custom_call.1} parent=1 // pred_check_branch
      %43 = sbr.rel (0) target = $region25
    $region24: #{tpu_custom_call.1} parent=1 // pred_region
      %s45 = ssub.s32 9216, 9216
      %46 = vsyncadd [#allocation6], %s45
      %s47 = sshll.u32 [#allocation5], 4
      %s48 = int_to_ptr.vmem [resolvable:$true] %s47
      %53 = dma.hbm_to_vmem [thread:$0]  %s5, 9216, %s48, [#allocation6], 64, 64, 4
    $region25: #{tpu_custom_call.1} parent=1 // pred_fallthru
      _
    // Predicated region
    $region26: #{tpu_custom_call.1} parent=1 // pred_check
      _
    $region27: #{tpu_custom_call.1} parent=1 // pred_check_branch
      %55 = sbr.rel (0) target = $region29
    $region28: #{tpu_custom_call.1} parent=1 // pred_region
      _
    $region29: #{tpu_custom_call.1} parent=1 // pred_fallthru
      _
    // Predicated region
    $region30: #{tpu_custom_call.1} parent=1 // pred_check
      _
    $region31: #{tpu_custom_call.1} parent=1 // pred_check_branch
      %57 = sbr.rel (0) target = $region33
    $region32: #{tpu_custom_call.1} parent=1 // pred_region
      _
    $region33: #{tpu_custom_call.1} parent=1 // pred_fallthru
      _
    // Predicated region
    $region34: #{tpu_custom_call.1} parent=1 // pred_check
      _
    $region35: #{tpu_custom_call.1} parent=1 // pred_check_branch
      %59 = sbr.rel (0) target = $region37
    $region36: #{tpu_custom_call.1} parent=1 // pred_region
      _
    $region37: #{tpu_custom_call.1} parent=1 // pred_fallthru
      _
    // Predicated region
    $region38: #{tpu_custom_call.1} parent=1 // pred_check
      _
    $region39: #{tpu_custom_call.1} parent=1 // pred_check_branch
      %61 = sbr.rel (0) target = $region41
    $region40: #{tpu_custom_call.1} parent=1 // pred_region
      %s63 = ssub.s32 16384, 16384
      %64 = vsyncadd [#allocation6], %s63
      %s65 = sshll.u32 [#allocation7], 4
      %s66 = int_to_ptr.vmem [resolvable:$true] %s65
      %71 = dma.hbm_to_vmem [thread:$0]  %s9, 16384, %s66, [#allocation6], 64, 64, 4
    $region41: #{tpu_custom_call.1} parent=1 // pred_fallthru
      _
    // Predicated region
    $region42: #{tpu_custom_call.1} parent=1 // pred_check
      _
    $region43: #{tpu_custom_call.1} parent=1 // pred_check_branch
      %73 = sbr.rel (0) target = $region45
    $region44: #{tpu_custom_call.1} parent=1 // pred_region
      _
    $region45: #{tpu_custom_call.1} parent=1 // pred_fallthru
      _
    // Predicated region
    $region46: #{tpu_custom_call.1} parent=1 // pred_check
      _
    $region47: #{tpu_custom_call.1} parent=1 // pred_check_branch
      %75 = sbr.rel (0) target = $region49
    $region48: #{tpu_custom_call.1} parent=1 // pred_region
      _
    $region49: #{tpu_custom_call.1} parent=1 // pred_fallthru
      _
    // Predicated region
    $region50: #{tpu_custom_call.1} parent=1 // pred_check
      _
    $region51: #{tpu_custom_call.1} parent=1 // pred_check_branch
      %77 = sbr.rel (0) target = $region53
    $region52: #{tpu_custom_call.1} parent=1 // pred_region
      _
    $region53: #{tpu_custom_call.1} parent=1 // pred_fallthru
      _
    // Predicated region
    $region54: #{tpu_custom_call.1} parent=1 // pred_check
      _
    $region55: #{tpu_custom_call.1} parent=1 // pred_check_branch
      %79 = sbr.rel (0) target = $region57
    $region56: #{tpu_custom_call.1} parent=1 // pred_region
      %80 = dma.done [#allocation4], 4608
    $region57: #{tpu_custom_call.1} parent=1 // pred_fallthru
      _
    // Predicated region
    $region58: #{tpu_custom_call.1} parent=1 // pred_check
      _
    $region59: #{tpu_custom_call.1} parent=1 // pred_check_branch
      %82 = sbr.rel (0) target = $region61
    $region60: #{tpu_custom_call.1} parent=1 // pred_region
      %83 = dma.done [#allocation6], 9216
    $region61: #{tpu_custom_call.1} parent=1 // pred_fallthru
      _
    // Predicated region
    $region62: #{tpu_custom_call.1} parent=1 // pred_check
      _
    $region63: #{tpu_custom_call.1} parent=1 // pred_check_branch
      %85 = sbr.rel (0) target = $region65
    $region64: #{tpu_custom_call.1} parent=1 // pred_region
      %86 = dma.done [#allocation6], 16384
    $region65: #{tpu_custom_call.1} parent=1 // pred_fallthru
      _
    %v88 = vld [vmem:[%s0] sm:$0xff]
    %v89 = vld [vmem:[%s0 + $0x8] sm:$0xff]
    %v90 = vld [vmem:[%s0 + $0x10] sm:$0xff]
    %v91 = vld [vmem:[%s0 + $0x18] sm:$0xff]
    %v92 = vld [vmem:[%s0 + $0x20] sm:$0xff]
    %v93 = vld [vmem:[%s0 + $0x28] sm:$0xff]
    %v94 = vld [vmem:[%s0 + $0x30] sm:$0xff]
    %v95 = vld [vmem:[%s0 + $0x38] sm:$0xff]
    %v96 = vld [vmem:[%s1] sm:$0x3]
    %v97 = vpack.c.bf16 %v89, %v88
    %v98 = vpack.c.bf16 %v91, %v90
    %v99 = vpack.c.bf16 %v93, %v92
    %v100 = vpack.c.bf16 %v95, %v94
    %v101 = vld [vmem:[%s2] sm:$0x1]
    %v103 = vlaneseq
    %v104 = vshrl.u32 %v103, 7
    %v105 = vsub.s32 0, %v104
    %v106 = vrot.slane %v101, %v105
    %vm108 = vcmask 23552
    %v110 = vsel %vm108, %v97, 0
    %v113 = vsel %vm108, %v98, 0
    %v116 = vsel %vm108, %v99, 0
    %v119 = vsel %vm108, %v100, 0
    %vm121 = vcmask 1040384
    %vm122 = vcmask 1041408
    %v123 = vsel %vm121, 4294967295, 65535
    %v124 = vsel %vm122, %v123, 0
    %v126 = vand.u32 %v96, %v124
    %128 = vmatprep.subr.bf16.mxu0 0
    %129 = vmatpush1.bf16.msra.mxu0 %v126
    %130 = vmatprep.subr.bf16.mxu0 0
    %131 = vmatpush1.bf16.msra.mxu0 0
    %132 = vmatprep.subr.bf16.mxu0 0
    %133 = vmatpush1.bf16.msra.mxu0 0
    %134 = vmatprep.subr.bf16.mxu0 0
    %135 = vmatpush1.bf16.msra.mxu0 0
    %136 = vmatprep.subr.bf16.mxu0 0
    %137 = vmatpush1.bf16.msra.mxu0 0
    %138 = vmatprep.subr.bf16.mxu0 0
    %139 = vmatpush1.bf16.msra.mxu0 0
    %140 = vmatprep.subr.bf16.mxu0 0
    %141 = vmatpush1.bf16.msra.mxu0 0
    %142 = vmatprep.subr.bf16.mxu0 0
    %143 = vmatpush1.bf16.msra.mxu0 0
    %144 = vmatprep.subr.bf16.mxu0 0
    %145 = vmatpush1.bf16.msra.mxu0 0
    %146 = vmatprep.subr.bf16.mxu0 0
    %147 = vmatpush1.bf16.msra.mxu0 0
    %148 = vmatprep.subr.bf16.mxu0 0
    %149 = vmatpush1.bf16.msra.mxu0 0
    %150 = vmatprep.subr.bf16.mxu0 0
    %151 = vmatpush1.bf16.msra.mxu0 0
    %152 = vmatprep.subr.bf16.mxu0 0
    %153 = vmatpush1.bf16.msra.mxu0 0
    %154 = vmatprep.subr.bf16.mxu0 0
    %155 = vmatpush1.bf16.msra.mxu0 0
    %156 = vmatprep.subr.bf16.mxu0 0
    %157 = vmatpush1.bf16.msra.mxu0 0
    %158 = vmatprep.subr.bf16.mxu0 0
    %159 = vmatpush1.bf16.msra.mxu0 0
    %160 = vmatprep.mubr.bf16.mxu0 0
    %161 = vmatmul.mubr.bf16.gmra.mrb[0].mxu0 %v110
    %v162 = vpop.f32.mrb[0].mxu0
    %v163 = vadd.f32 %v106, %v162
    %v164 = vpop.f32.mrb[0].mxu0
    %v165 = vpop.f32.mrb[0].mxu0
    %v166 = vadd.f32 %v106, %v165
    %v167 = vpop.f32.mrb[0].mxu0
    %168 = vmatprep.mubr.bf16.mxu0 0
    %169 = vmatmul.mubr.bf16.gmra.mrb[0].mxu0 %v113
    %v170 = vpop.f32.mrb[0].mxu0
    %v171 = vadd.f32 %v106, %v170
    %v172 = vpop.f32.mrb[0].mxu0
    %v173 = vpop.f32.mrb[0].mxu0
    %v174 = vadd.f32 %v106, %v173
    %v175 = vpop.f32.mrb[0].mxu0
    %176 = vmatprep.mubr.bf16.mxu0 0
    %177 = vmatmul.mubr.bf16.gmra.mrb[0].mxu0 %v116
    %v178 = vpop.f32.mrb[0].mxu0
    %v179 = vadd.f32 %v106, %v178
    %v180 = vpop.f32.mrb[0].mxu0
    %v181 = vpop.f32.mrb[0].mxu0
    %v182 = vadd.f32 %v106, %v181
    %v183 = vpop.f32.mrb[0].mxu0
    %184 = vmatprep.mubr.bf16.mxu0 0
    %185 = vmatmul.mubr.bf16.gmra.mrb[0].mxu0 %v119
    %v186 = vpop.f32.mrb[0].mxu0
    %v187 = vadd.f32 %v106, %v186
    %v188 = vpop.f32.mrb[0].mxu0
    %v189 = vpop.f32.mrb[0].mxu0
    %v190 = vadd.f32 %v106, %v189
    %v191 = vpop.f32.mrb[0].mxu0
    %192 = vdwg.mxu0
    %v193 = vadd.f32 %v163, 0.0
    %v194 = vadd.f32 %v166, 0.0
    %v195 = vadd.f32 %v193, %v171
    %v196 = vadd.f32 %v194, %v174
    %v197 = vadd.f32 %v195, %v179
    %v198 = vadd.f32 %v196, %v182
    %v199 = vadd.f32 %v197, %v187
    %v200 = vadd.f32 %v198, %v190
    %v201 = vmul.f32 %v199, 0.25
    %v202 = vmul.f32 %v200, 0.25
    %v203 = vsub.f32 %v163, %v201
    %v204 = vsub.f32 %v166, %v202
    %v205 = vmul.f32 %v203, %v203
    %v206 = vmul.f32 %v204, %v204
    %v207 = vadd.f32 %v205, 0.0
    %v208 = vadd.f32 %v206, 0.0
    %v209 = vsub.f32 %v171, %v201
    %v210 = vsub.f32 %v174, %v202
    %v211 = vmul.f32 %v209, %v209
    %v212 = vmul.f32 %v210, %v210
    %v213 = vadd.f32 %v207, %v211
    %v214 = vadd.f32 %v208, %v212
    %v215 = vsub.f32 %v179, %v201
    %v216 = vsub.f32 %v182, %v202
    %v217 = vmul.f32 %v215, %v215
    %v218 = vmul.f32 %v216, %v216
    %v219 = vadd.f32 %v213, %v217
    %v220 = vadd.f32 %v214, %v218
    %v221 = vsub.f32 %v187, %v201
    %v222 = vsub.f32 %v190, %v202
    %v223 = vmul.f32 %v221, %v221
    %v224 = vmul.f32 %v222, %v222
    %v225 = vadd.f32 %v219, %v223
    %v226 = vadd.f32 %v220, %v224
    %v227 = vmul.f32 %v225, 0.25
    %v228 = vmul.f32 %v226, 0.25
    %v229 = vadd.f32 %v227, 1e-08
    %v230 = vadd.f32 %v228, 1e-08
    %v231 = vrsqrt.pop %v229
    %v232 = vmul.f32 %v229, %v231
    %vm233 = vcmp.eq.f32.partialorder %v229, inf
    %v234 = vsel %vm233, %v229, %v232
    %vm235 = vcmp.eq.f32.partialorder %v229, 0.0
    %v236 = vand.u32 %v229, 2147483648
    %v237 = vsel %vm235, %v236, %v234
    %v238 = vrsqrt.pop %v230
    %v239 = vmul.f32 %v230, %v238
    %vm240 = vcmp.eq.f32.partialorder %v230, inf
    %v241 = vsel %vm240, %v230, %v239
    %vm242 = vcmp.eq.f32.partialorder %v230, 0.0
    %v243 = vand.u32 %v230, 2147483648
    %v244 = vsel %vm242, %v243, %v241
    %245 = vadd.xlane.f32.xlu0 %v237
    %v246 = vpop.xlane.xlu0 %245
    %247 = vadd.xlane.f32.xlu0 %v244
    %v248 = vpop.xlane.xlu0 %247
    %v249 = vadd.f32 %v246, %v248
    %v250 = vrot.slane %v249, 4
    %v251 = vadd.f32 %v249, %v250
    %v252 = vrot.slane %v251, 2
    %v253 = vadd.f32 %v251, %v252
    %v254 = vrot.slane %v253, 1
    %v255 = vadd.f32 %v253, %v254
    %v256 = vmul.f32 %v255, 0.00048828125
    %v257 = vpack.c.bf16 %v256, %v256
    %v258 = vunpack.c.l.bf16 %v257
    %v259 = vpack.c.bf16 %v166, %v163
    %v260 = vpack.c.bf16 %v174, %v171
    %v261 = vpack.c.bf16 %v182, %v179
    %v262 = vpack.c.bf16 %v190, %v187
    %v263 = vld [vmem:[#allocation3] sm:$0xf]
    %v264 = vld [vmem:[#allocation3 + $0x4] sm:$0xf]
    %v265 = vld [vmem:[#allocation3 + $0x8] sm:$0xf]
    %v266 = vld [vmem:[#allocation3 + $0xc] sm:$0xf]
    %v267 = vld [vmem:[#allocation3 + $0x10] sm:$0xf]
    %v268 = vld [vmem:[#allocation3 + $0x14] sm:$0xf]
    %v269 = vld [vmem:[#allocation3 + $0x18] sm:$0xf]
    %v270 = vld [vmem:[#allocation3 + $0x1c] sm:$0xf]
    %v279 = vunpack.c.l.b16 %v263
    %v280 = vunpack.c.l.b16 %v264
    %v281 = vunpack.c.l.b16 %v265
    %v282 = vunpack.c.l.b16 %v266
    %v283 = vunpack.c.l.b16 %v267
    %v284 = vunpack.c.l.b16 %v268
    %v285 = vunpack.c.l.b16 %v269
    %v286 = vunpack.c.l.b16 %v270
    %v287 = vpack.c.b16 %v280, %v279
    %v288 = vpack.c.b16 %v282, %v281
    %v289 = vpack.c.b16 %v284, %v283
    %v290 = vpack.c.b16 %v286, %v285
    %vm291 = vcmask 523264
    %v293 = vsel %vm291, %v287, 0
    %v296 = vsel %vm291, %v288, 0
    %v299 = vsel %vm291, %v289, 0
    %v302 = vsel %vm291, %v290, 0
    %304 = vmatprep.subr.bf16.mxu0 0
    %305 = vmatpush1.bf16.msra.mxu0 %v259
    %306 = vmatprep.subr.bf16.mxu0 0
    %307 = vmatpush1.bf16.msra.mxu0 %v260
    %308 = vmatprep.subr.bf16.mxu0 0
    %309 = vmatpush1.bf16.msra.mxu0 %v261
    %310 = vmatprep.subr.bf16.mxu0 0
    %311 = vmatpush1.bf16.msra.mxu0 %v262
    %312 = vmatprep.subr.bf16.mxu0 0
    %313 = vmatpush1.bf16.msra.mxu0 0
    %314 = vmatprep.subr.bf16.mxu0 0
    %315 = vmatpush1.bf16.msra.mxu0 0
    %316 = vmatprep.subr.bf16.mxu0 0
    %317 = vmatpush1.bf16.msra.mxu0 0
    %318 = vmatprep.subr.bf16.mxu0 0
    %319 = vmatpush1.bf16.msra.mxu0 0
    %320 = vmatprep.subr.bf16.mxu0 0
    %321 = vmatpush1.bf16.msra.mxu0 0
    %322 = vmatprep.subr.bf16.mxu0 0
    %323 = vmatpush1.bf16.msra.mxu0 0
    %324 = vmatprep.subr.bf16.mxu0 0
    %325 = vmatpush1.bf16.msra.mxu0 0
    %326 = vmatprep.subr.bf16.mxu0 0
    %327 = vmatpush1.bf16.msra.mxu0 0
    %328 = vmatprep.subr.bf16.mxu0 0
    %329 = vmatpush1.bf16.msra.mxu0 0
    %330 = vmatprep.subr.bf16.mxu0 0
    %331 = vmatpush1.bf16.msra.mxu0 0
    %332 = vmatprep.subr.bf16.mxu0 0
    %333 = vmatpush1.bf16.msra.mxu0 0
    %334 = vmatprep.subr.bf16.mxu0 0
    %335 = vmatpush1.bf16.msra.mxu0 0
    %336 = vmatprep.mubr.bf16.mxu0 0
    %337 = vmatmul.mubr.bf16.gmra.mrb[0].mxu0 %v293
    %v338 = vpop.f32.mrb[0].mxu0
    %v339 = vadd.f32 0.0, %v338
    %v340 = vpop.f32.mrb[0].mxu0
    %v341 = vpop.f32.mrb[0].mxu0
    %v342 = vadd.f32 0.0, %v341
    %v343 = vpop.f32.mrb[0].mxu0
    %344 = vmatprep.mubr.bf16.mxu0 0
    %345 = vmatmul.mubr.bf16.gmra.mrb[0].mxu0 %v296
    %v346 = vpop.f32.mrb[0].mxu0
    %v347 = vadd.f32 0.0, %v346
    %v348 = vpop.f32.mrb[0].mxu0
    %v349 = vpop.f32.mrb[0].mxu0
    %v350 = vadd.f32 0.0, %v349
    %v351 = vpop.f32.mrb[0].mxu0
    %352 = vmatprep.mubr.bf16.mxu0 0
    %353 = vmatmul.mubr.bf16.gmra.mrb[0].mxu0 %v299
    %v354 = vpop.f32.mrb[0].mxu0
    %v355 = vadd.f32 0.0, %v354
    %v356 = vpop.f32.mrb[0].mxu0
    %v357 = vpop.f32.mrb[0].mxu0
    %v358 = vadd.f32 0.0, %v357
    %v359 = vpop.f32.mrb[0].mxu0
    %360 = vmatprep.mubr.bf16.mxu0 0
    %361 = vmatmul.mubr.bf16.gmra.mrb[0].mxu0 %v302
    %v362 = vpop.f32.mrb[0].mxu0
    %v363 = vadd.f32 0.0, %v362
    %v364 = vpop.f32.mrb[0].mxu0
    %v365 = vpop.f32.mrb[0].mxu0
    %v366 = vadd.f32 0.0, %v365
    %v367 = vpop.f32.mrb[0].mxu0
    %368 = vdwg.mxu0
    %v369 = vld [vmem:[#allocation5] sm:$0xf]
    %v370 = vld [vmem:[#allocation5 + $0x4] sm:$0xf]
    %v371 = vld [vmem:[#allocation5 + $0x8] sm:$0xf]
    %v372 = vld [vmem:[#allocation5 + $0xc] sm:$0xf]
    %v373 = vld [vmem:[#allocation5 + $0x10] sm:$0xf]
    %v374 = vld [vmem:[#allocation5 + $0x14] sm:$0xf]
    %v375 = vld [vmem:[#allocation5 + $0x18] sm:$0xf]
    %v376 = vld [vmem:[#allocation5 + $0x1c] sm:$0xf]
    %v377 = vld [vmem:[#allocation5 + $0x20] sm:$0xf]
    %v378 = vld [vmem:[#allocation5 + $0x24] sm:$0xf]
    %v379 = vld [vmem:[#allocation5 + $0x28] sm:$0xf]
    %v380 = vld [vmem:[#allocation5 + $0x2c] sm:$0xf]
    %v381 = vld [vmem:[#allocation5 + $0x30] sm:$0xf]
    %v382 = vld [vmem:[#allocation5 + $0x34] sm:$0xf]
    %v383 = vld [vmem:[#allocation5 + $0x38] sm:$0xf]
    %v384 = vld [vmem:[#allocation5 + $0x3c] sm:$0xf]
    %v385 = vpack.c.bf16 %v342, %v339
    %v386 = vpack.c.bf16 %v350, %v347
    %v387 = vpack.c.bf16 %v358, %v355
    %v388 = vpack.c.bf16 %v366, %v363
    %s389 = scalar_lea.vmem [#allocation3], 32
    %v390 = vld [vmem:[%s389] sm:$0xf]
    %v391 = vld [vmem:[%s389 + $0x4] sm:$0xf]
    %v392 = vld [vmem:[%s389 + $0x8] sm:$0xf]
    %v393 = vld [vmem:[%s389 + $0xc] sm:$0xf]
    %v394 = vld [vmem:[%s389 + $0x10] sm:$0xf]
    %v395 = vld [vmem:[%s389 + $0x14] sm:$0xf]
    %v396 = vld [vmem:[%s389 + $0x18] sm:$0xf]
    %v397 = vld [vmem:[%s389 + $0x1c] sm:$0xf]
    %v406 = vunpack.c.l.b16 %v390
    %v407 = vunpack.c.l.b16 %v391
    %v408 = vunpack.c.l.b16 %v392
    %v409 = vunpack.c.l.b16 %v393
    %v410 = vunpack.c.l.b16 %v394
    %v411 = vunpack.c.l.b16 %v395
    %v412 = vunpack.c.l.b16 %v396
    %v413 = vunpack.c.l.b16 %v397
    %v414 = vpack.c.b16 %v407, %v406
    %v415 = vpack.c.b16 %v409, %v408
    %v416 = vpack.c.b16 %v411, %v410
    %v417 = vpack.c.b16 %v413, %v412
    %v419 = vsel %vm291, %v414, 0
    %v422 = vsel %vm291, %v415, 0
    %v425 = vsel %vm291, %v416, 0
    %v428 = vsel %vm291, %v417, 0
    %430 = vmatprep.subr.bf16.mxu0 0
    %431 = vmatpush1.bf16.msra.mxu0 %v259
    %432 = vmatprep.subr.bf16.mxu0 0
    %433 = vmatpush1.bf16.msra.mxu0 %v260
    %434 = vmatprep.subr.bf16.mxu0 0
    %435 = vmatpush1.bf16.msra.mxu0 %v261
    %436 = vmatprep.subr.bf16.mxu0 0
    %437 = vmatpush1.bf16.msra.mxu0 %v262
    %438 = vmatprep.subr.bf16.mxu0 0
    %439 = vmatpush1.bf16.msra.mxu0 0
    %440 = vmatprep.subr.bf16.mxu0 0
    %441 = vmatpush1.bf16.msra.mxu0 0
    %442 = vmatprep.subr.bf16.mxu0 0
    %443 = vmatpush1.bf16.msra.mxu0 0
    %444 = vmatprep.subr.bf16.mxu0 0
    %445 = vmatpush1.bf16.msra.mxu0 0
    %446 = vmatprep.subr.bf16.mxu0 0
    %447 = vmatpush1.bf16.msra.mxu0 0
    %448 = vmatprep.subr.bf16.mxu0 0
    %449 = vmatpush1.bf16.msra.mxu0 0
    %450 = vmatprep.subr.bf16.mxu0 0
    %451 = vmatpush1.bf16.msra.mxu0 0
    %452 = vmatprep.subr.bf16.mxu0 0
    %453 = vmatpush1.bf16.msra.mxu0 0
    %454 = vmatprep.subr.bf16.mxu0 0
    %455 = vmatpush1.bf16.msra.mxu0 0
    %456 = vmatprep.subr.bf16.mxu0 0
    %457 = vmatpush1.bf16.msra.mxu0 0
    %458 = vmatprep.subr.bf16.mxu0 0
    %459 = vmatpush1.bf16.msra.mxu0 0
    %460 = vmatprep.subr.bf16.mxu0 0
    %461 = vmatpush1.bf16.msra.mxu0 0
    %462 = vmatprep.mubr.bf16.mxu0 0
    %463 = vmatmul.mubr.bf16.gmra.mrb[0].mxu0 %v419
    %v464 = vpop.f32.mrb[0].mxu0
    %v465 = vadd.f32 0.0, %v464
    %v466 = vpop.f32.mrb[0].mxu0
    %v467 = vpop.f32.mrb[0].mxu0
    %v468 = vadd.f32 0.0, %v467
    %v469 = vpop.f32.mrb[0].mxu0
    %470 = vmatprep.mubr.bf16.mxu0 0
    %471 = vmatmul.mubr.bf16.gmra.mrb[0].mxu0 %v422
    %v472 = vpop.f32.mrb[0].mxu0
    %v473 = vadd.f32 0.0, %v472
    %v474 = vpop.f32.mrb[0].mxu0
    %v475 = vpop.f32.mrb[0].mxu0
    %v476 = vadd.f32 0.0, %v475
    %v477 = vpop.f32.mrb[0].mxu0
    %478 = vmatprep.mubr.bf16.mxu0 0
    %479 = vmatmul.mubr.bf16.gmra.mrb[0].mxu0 %v425
    %v480 = vpop.f32.mrb[0].mxu0
    %v481 = vadd.f32 0.0, %v480
    %v482 = vpop.f32.mrb[0].mxu0
    %v483 = vpop.f32.mrb[0].mxu0
    %v484 = vadd.f32 0.0, %v483
    %v485 = vpop.f32.mrb[0].mxu0
    %486 = vmatprep.mubr.bf16.mxu0 0
    %487 = vmatmul.mubr.bf16.gmra.mrb[0].mxu0 %v428
    %v488 = vpop.f32.mrb[0].mxu0
    %v489 = vadd.f32 0.0, %v488
    %v490 = vpop.f32.mrb[0].mxu0
    %v491 = vpop.f32.mrb[0].mxu0
    %v492 = vadd.f32 0.0, %v491
    %v493 = vpop.f32.mrb[0].mxu0
    %494 = vdwg.mxu0
    %s495 = scalar_lea.vmem [#allocation5], 64
    %v496 = vld [vmem:[%s495] sm:$0xf]
    %v497 = vld [vmem:[%s495 + $0x4] sm:$0xf]
    %v498 = vld [vmem:[%s495 + $0x8] sm:$0xf]
    %v499 = vld [vmem:[%s495 + $0xc] sm:$0xf]
    %v500 = vld [vmem:[%s495 + $0x10] sm:$0xf]
    %v501 = vld [vmem:[%s495 + $0x14] sm:$0xf]
    %v502 = vld [vmem:[%s495 + $0x18] sm:$0xf]
    %v503 = vld [vmem:[%s495 + $0x1c] sm:$0xf]
    %v504 = vld [vmem:[%s495 + $0x20] sm:$0xf]
    %v505 = vld [vmem:[%s495 + $0x24] sm:$0xf]
    %v506 = vld [vmem:[%s495 + $0x28] sm:$0xf]
    %v507 = vld [vmem:[%s495 + $0x2c] sm:$0xf]
    %v508 = vld [vmem:[%s495 + $0x30] sm:$0xf]
    %v509 = vld [vmem:[%s495 + $0x34] sm:$0xf]
    %v510 = vld [vmem:[%s495 + $0x38] sm:$0xf]
    %v511 = vld [vmem:[%s495 + $0x3c] sm:$0xf]
    %v512 = vpack.c.bf16 %v468, %v465
    %v513 = vpack.c.bf16 %v476, %v473
    %v514 = vpack.c.bf16 %v484, %v481
    %v515 = vpack.c.bf16 %v492, %v489
    %v532 = vunpack.c.l.b16 %v496
    %v533 = vunpack.c.l.b16 %v497
    %v534 = vunpack.c.l.b16 %v498
    %v535 = vunpack.c.l.b16 %v499
    %v536 = vunpack.c.l.b16 %v500
    %v537 = vunpack.c.l.b16 %v501
    %v538 = vunpack.c.l.b16 %v502
    %v539 = vunpack.c.l.b16 %v503
    %v540 = vunpack.c.l.b16 %v504
    %v541 = vunpack.c.l.b16 %v505
    %v542 = vunpack.c.l.b16 %v506
    %v543 = vunpack.c.l.b16 %v507
    %v544 = vunpack.c.l.b16 %v508
    %v545 = vunpack.c.l.b16 %v509
    %v546 = vunpack.c.l.b16 %v510
    %v547 = vunpack.c.l.b16 %v511
    %v548 = vpack.c.b16 %v533, %v532
    %v549 = vpack.c.b16 %v535, %v534
    %v550 = vpack.c.b16 %v537, %v536
    %v551 = vpack.c.b16 %v539, %v538
    %v552 = vpack.c.b16 %v541, %v540
    %v553 = vpack.c.b16 %v543, %v542
    %v554 = vpack.c.b16 %v545, %v544
    %v555 = vpack.c.b16 %v547, %v546
    %564 = vmatprep.subr.bf16.mxu0 0
    %565 = vmatpush1.bf16.msra.mxu0 %v548
    %566 = vmatprep.subr.bf16.mxu0 0
    %567 = vmatpush1.bf16.msra.mxu0 %v549
    %568 = vmatprep.subr.bf16.mxu0 0
    %569 = vmatpush1.bf16.msra.mxu0 %v550
    %570 = vmatprep.subr.bf16.mxu0 0
    %571 = vmatpush1.bf16.msra.mxu0 %v551
    %572 = vmatprep.subr.bf16.mxu0 0
    %573 = vmatpush1.bf16.msra.mxu0 %v552
    %574 = vmatprep.subr.bf16.mxu0 0
    %575 = vmatpush1.bf16.msra.mxu0 %v553
    %576 = vmatprep.subr.bf16.mxu0 0
    %577 = vmatpush1.bf16.msra.mxu0 %v554
    %578 = vmatprep.subr.bf16.mxu0 0
    %579 = vmatpush1.bf16.msra.mxu0 %v555
    %580 = vmatprep.subr.bf16.mxu0 0
    %581 = vmatpush1.bf16.msra.mxu0 0
    %582 = vmatprep.subr.bf16.mxu0 0
    %583 = vmatpush1.bf16.msra.mxu0 0
    %584 = vmatprep.subr.bf16.mxu0 0
    %585 = vmatpush1.bf16.msra.mxu0 0
    %586 = vmatprep.subr.bf16.mxu0 0
    %587 = vmatpush1.bf16.msra.mxu0 0
    %588 = vmatprep.subr.bf16.mxu0 0
    %589 = vmatpush1.bf16.msra.mxu0 0
    %590 = vmatprep.subr.bf16.mxu0 0
    %591 = vmatpush1.bf16.msra.mxu0 0
    %592 = vmatprep.subr.bf16.mxu0 0
    %593 = vmatpush1.bf16.msra.mxu0 0
    %594 = vmatprep.subr.bf16.mxu0 0
    %595 = vmatpush1.bf16.msra.mxu0 0
    %596 = vmatprep.mubr.bf16.mxu0 0
    %597 = vmatmul.mubr.bf16.gmra.mrb[0].mxu0 %v512
    %v598 = vpop.f32.mrb[0].mxu0
    %v599 = vadd.f32 0.0, %v598
    %v600 = vpop.f32.mrb[0].mxu0
    %v601 = vpop.f32.mrb[0].mxu0
    %v602 = vadd.f32 0.0, %v601
    %v603 = vpop.f32.mrb[0].mxu0
    %604 = vmatprep.mubr.bf16.mxu0 0
    %605 = vmatmul.mubr.bf16.gmra.mrb[0].mxu0 %v513
    %v606 = vpop.f32.mrb[0].mxu0
    %v607 = vadd.f32 0.0, %v606
    %v608 = vpop.f32.mrb[0].mxu0
    %v609 = vpop.f32.mrb[0].mxu0
    %v610 = vadd.f32 0.0, %v609
    %v611 = vpop.f32.mrb[0].mxu0
    %612 = vmatprep.mubr.bf16.mxu0 0
    %613 = vmatmul.mubr.bf16.gmra.mrb[0].mxu0 %v514
    %v614 = vpop.f32.mrb[0].mxu0
    %v615 = vadd.f32 0.0, %v614
    %v616 = vpop.f32.mrb[0].mxu0
    %v617 = vpop.f32.mrb[0].mxu0
    %v618 = vadd.f32 0.0, %v617
    %v619 = vpop.f32.mrb[0].mxu0
    %620 = vmatprep.mubr.bf16.mxu0 0
    %621 = vmatmul.mubr.bf16.gmra.mrb[0].mxu0 %v515
    %v622 = vpop.f32.mrb[0].mxu0
    %v623 = vadd.f32 0.0, %v622
    %v624 = vpop.f32.mrb[0].mxu0
    %v625 = vpop.f32.mrb[0].mxu0
    %v626 = vadd.f32 0.0, %v625
    %v627 = vpop.f32.mrb[0].mxu0
    %628 = vdwg.mxu0
    %v645 = vunpack.c.l.b16 %v369
    %v646 = vunpack.c.l.b16 %v370
    %v647 = vunpack.c.l.b16 %v371
    %v648 = vunpack.c.l.b16 %v372
    %v649 = vunpack.c.l.b16 %v373
    %v650 = vunpack.c.l.b16 %v374
    %v651 = vunpack.c.l.b16 %v375
    %v652 = vunpack.c.l.b16 %v376
    %v653 = vunpack.c.l.b16 %v377
    %v654 = vunpack.c.l.b16 %v378
    %v655 = vunpack.c.l.b16 %v379
    %v656 = vunpack.c.l.b16 %v380
    %v657 = vunpack.c.l.b16 %v381
    %v658 = vunpack.c.l.b16 %v382
    %v659 = vunpack.c.l.b16 %v383
    %v660 = vunpack.c.l.b16 %v384
    %v661 = vpack.c.b16 %v646, %v645
    %v662 = vpack.c.b16 %v648, %v647
    %v663 = vpack.c.b16 %v650, %v649
    %v664 = vpack.c.b16 %v652, %v651
    %v665 = vpack.c.b16 %v654, %v653
    %v666 = vpack.c.b16 %v656, %v655
    %v667 = vpack.c.b16 %v658, %v657
    %v668 = vpack.c.b16 %v660, %v659
    %677 = vmatprep.subr.bf16.mxu0 0
    %678 = vmatpush1.bf16.msra.mxu0 %v661
    %679 = vmatprep.subr.bf16.mxu0 0
    %680 = vmatpush1.bf16.msra.mxu0 %v662
    %681 = vmatprep.subr.bf16.mxu0 0
    %682 = vmatpush1.bf16.msra.mxu0 %v663
    %683 = vmatprep.subr.bf16.mxu0 0
    %684 = vmatpush1.bf16.msra.mxu0 %v664
    %685 = vmatprep.subr.bf16.mxu0 0
    %686 = vmatpush1.bf16.msra.mxu0 %v665
    %687 = vmatprep.subr.bf16.mxu0 0
    %688 = vmatpush1.bf16.msra.mxu0 %v666
    %689 = vmatprep.subr.bf16.mxu0 0
    %690 = vmatpush1.bf16.msra.mxu0 %v667
    %691 = vmatprep.subr.bf16.mxu0 0
    %692 = vmatpush1.bf16.msra.mxu0 %v668
    %693 = vmatprep.subr.bf16.mxu0 0
    %694 = vmatpush1.bf16.msra.mxu0 0
    %695 = vmatprep.subr.bf16.mxu0 0
    %696 = vmatpush1.bf16.msra.mxu0 0
    %697 = vmatprep.subr.bf16.mxu0 0
    %698 = vmatpush1.bf16.msra.mxu0 0
    %699 = vmatprep.subr.bf16.mxu0 0
    %700 = vmatpush1.bf16.msra.mxu0 0
    %701 = vmatprep.subr.bf16.mxu0 0
    %702 = vmatpush1.bf16.msra.mxu0 0
    %703 = vmatprep.subr.bf16.mxu0 0
    %704 = vmatpush1.bf16.msra.mxu0 0
    %705 = vmatprep.subr.bf16.mxu0 0
    %706 = vmatpush1.bf16.msra.mxu0 0
    %707 = vmatprep.subr.bf16.mxu0 0
    %708 = vmatpush1.bf16.msra.mxu0 0
    %709 = vmatprep.mubr.bf16.mxu0 0
    %710 = vmatmul.mubr.bf16.gmra.mrb[0].mxu0 %v385
    %v711 = vpop.f32.mrb[0].mxu0
    %v712 = vadd.f32 %v599, %v711
    %v713 = vpop.f32.mrb[0].mxu0
    %v714 = vpop.f32.mrb[0].mxu0
    %v715 = vadd.f32 %v602, %v714
    %v716 = vpop.f32.mrb[0].mxu0
    %717 = vmatprep.mubr.bf16.mxu0 0
    %718 = vmatmul.mubr.bf16.gmra.mrb[0].mxu0 %v386
    %v719 = vpop.f32.mrb[0].mxu0
    %v720 = vadd.f32 %v607, %v719
    %v721 = vpop.f32.mrb[0].mxu0
    %v722 = vpop.f32.mrb[0].mxu0
    %v723 = vadd.f32 %v610, %v722
    %v724 = vpop.f32.mrb[0].mxu0
    %725 = vmatprep.mubr.bf16.mxu0 0
    %726 = vmatmul.mubr.bf16.gmra.mrb[0].mxu0 %v387
    %v727 = vpop.f32.mrb[0].mxu0
    %v728 = vadd.f32 %v615, %v727
    %v729 = vpop.f32.mrb[0].mxu0
    %v730 = vpop.f32.mrb[0].mxu0
    %v731 = vadd.f32 %v618, %v730
    %v732 = vpop.f32.mrb[0].mxu0
    %733 = vmatprep.mubr.bf16.mxu0 0
    %734 = vmatmul.mubr.bf16.gmra.mrb[0].mxu0 %v388
    %v735 = vpop.f32.mrb[0].mxu0
    %v736 = vadd.f32 %v623, %v735
    %v737 = vpop.f32.mrb[0].mxu0
    %v738 = vpop.f32.mrb[0].mxu0
    %v739 = vadd.f32 %v626, %v738
    %v740 = vpop.f32.mrb[0].mxu0
    %741 = vdwg.mxu0
    %s742 = scalar_lea.vmem [#allocation3], 64
    %v743 = vld [vmem:[%s742] sm:$0xf]
    %v744 = vld [vmem:[%s742 + $0x4] sm:$0xf]
    %v745 = vld [vmem:[%s742 + $0x8] sm:$0xf]
    %v746 = vld [vmem:[%s742 + $0xc] sm:$0xf]
    %v747 = vld [vmem:[%s742 + $0x10] sm:$0xf]
    %v748 = vld [vmem:[%s742 + $0x14] sm:$0xf]
    %v749 = vld [vmem:[%s742 + $0x18] sm:$0xf]
    %v750 = vld [vmem:[%s742 + $0x1c] sm:$0xf]
    %v759 = vunpack.c.l.b16 %v743
    %v760 = vunpack.c.l.b16 %v744
    %v761 = vunpack.c.l.b16 %v745
    %v762 = vunpack.c.l.b16 %v746
    %v763 = vunpack.c.l.b16 %v747
    %v764 = vunpack.c.l.b16 %v748
    %v765 = vunpack.c.l.b16 %v749
    %v766 = vunpack.c.l.b16 %v750
    %v767 = vpack.c.b16 %v760, %v759
    %v768 = vpack.c.b16 %v762, %v761
    %v769 = vpack.c.b16 %v764, %v763
    %v770 = vpack.c.b16 %v766, %v765
    %v772 = vsel %vm291, %v767, 0
    %v775 = vsel %vm291, %v768, 0
    %v778 = vsel %vm291, %v769, 0
    %v781 = vsel %vm291, %v770, 0
    %783 = vmatprep.subr.bf16.mxu0 0
    %784 = vmatpush1.bf16.msra.mxu0 %v259
    %785 = vmatprep.subr.bf16.mxu0 0
    %786 = vmatpush1.bf16.msra.mxu0 %v260
    %787 = vmatprep.subr.bf16.mxu0 0
    %788 = vmatpush1.bf16.msra.mxu0 %v261
    %789 = vmatprep.subr.bf16.mxu0 0
    %790 = vmatpush1.bf16.msra.mxu0 %v262
    %791 = vmatprep.subr.bf16.mxu0 0
    %792 = vmatpush1.bf16.msra.mxu0 0
    %793 = vmatprep.subr.bf16.mxu0 0
    %794 = vmatpush1.bf16.msra.mxu0 0
    %795 = vmatprep.subr.bf16.mxu0 0
    %796 = vmatpush1.bf16.msra.mxu0 0
    %797 = vmatprep.subr.bf16.mxu0 0
    %798 = vmatpush1.bf16.msra.mxu0 0
    %799 = vmatprep.subr.bf16.mxu0 0
    %800 = vmatpush1.bf16.msra.mxu0 0
    %801 = vmatprep.subr.bf16.mxu0 0
    %802 = vmatpush1.bf16.msra.mxu0 0
    %803 = vmatprep.subr.bf16.mxu0 0
    %804 = vmatpush1.bf16.msra.mxu0 0
    %805 = vmatprep.subr.bf16.mxu0 0
    %806 = vmatpush1.bf16.msra.mxu0 0
    %807 = vmatprep.subr.bf16.mxu0 0
    %808 = vmatpush1.bf16.msra.mxu0 0
    %809 = vmatprep.subr.bf16.mxu0 0
    %810 = vmatpush1.bf16.msra.mxu0 0
    %811 = vmatprep.subr.bf16.mxu0 0
    %812 = vmatpush1.bf16.msra.mxu0 0
    %813 = vmatprep.subr.bf16.mxu0 0
    %814 = vmatpush1.bf16.msra.mxu0 0
    %815 = vmatprep.mubr.bf16.mxu0 0
    %816 = vmatmul.mubr.bf16.gmra.mrb[0].mxu0 %v772
    %v817 = vpop.f32.mrb[0].mxu0
    %v818 = vadd.f32 0.0, %v817
    %v819 = vpop.f32.mrb[0].mxu0
    %v820 = vpop.f32.mrb[0].mxu0
    %v821 = vadd.f32 0.0, %v820
    %v822 = vpop.f32.mrb[0].mxu0
    %823 = vmatprep.mubr.bf16.mxu0 0
    %824 = vmatmul.mubr.bf16.gmra.mrb[0].mxu0 %v775
    %v825 = vpop.f32.mrb[0].mxu0
    %v826 = vadd.f32 0.0, %v825
    %v827 = vpop.f32.mrb[0].mxu0
    %v828 = vpop.f32.mrb[0].mxu0
    %v829 = vadd.f32 0.0, %v828
    %v830 = vpop.f32.mrb[0].mxu0
    %831 = vmatprep.mubr.bf16.mxu0 0
    %832 = vmatmul.mubr.bf16.gmra.mrb[0].mxu0 %v778
    %v833 = vpop.f32.mrb[0].mxu0
    %v834 = vadd.f32 0.0, %v833
    %v835 = vpop.f32.mrb[0].mxu0
    %v836 = vpop.f32.mrb[0].mxu0
    %v837 = vadd.f32 0.0, %v836
    %v838 = vpop.f32.mrb[0].mxu0
    %839 = vmatprep.mubr.bf16.mxu0 0
    %840 = vmatmul.mubr.bf16.gmra.mrb[0].mxu0 %v781
    %v841 = vpop.f32.mrb[0].mxu0
    %v842 = vadd.f32 0.0, %v841
    %v843 = vpop.f32.mrb[0].mxu0
    %v844 = vpop.f32.mrb[0].mxu0
    %v845 = vadd.f32 0.0, %v844
    %v846 = vpop.f32.mrb[0].mxu0
    %847 = vdwg.mxu0
    %s848 = scalar_lea.vmem [#allocation5], 128
    %v849 = vld [vmem:[%s848] sm:$0xf]
    %v850 = vld [vmem:[%s848 + $0x4] sm:$0xf]
    %v851 = vld [vmem:[%s848 + $0x8] sm:$0xf]
    %v852 = vld [vmem:[%s848 + $0xc] sm:$0xf]
    %v853 = vld [vmem:[%s848 + $0x10] sm:$0xf]
    %v854 = vld [vmem:[%s848 + $0x14] sm:$0xf]
    %v855 = vld [vmem:[%s848 + $0x18] sm:$0xf]
    %v856 = vld [vmem:[%s848 + $0x1c] sm:$0xf]
    %v857 = vld [vmem:[%s848 + $0x20] sm:$0xf]
    %v858 = vld [vmem:[%s848 + $0x24] sm:$0xf]
    %v859 = vld [vmem:[%s848 + $0x28] sm:$0xf]
    %v860 = vld [vmem:[%s848 + $0x2c] sm:$0xf]
    %v861 = vld [vmem:[%s848 + $0x30] sm:$0xf]
    %v862 = vld [vmem:[%s848 + $0x34] sm:$0xf]
    %v863 = vld [vmem:[%s848 + $0x38] sm:$0xf]
    %v864 = vld [vmem:[%s848 + $0x3c] sm:$0xf]
    %v865 = vpack.c.bf16 %v821, %v818
    %v866 = vpack.c.bf16 %v829, %v826
    %v867 = vpack.c.bf16 %v837, %v834
    %v868 = vpack.c.bf16 %v845, %v842
    %v885 = vunpack.c.l.b16 %v849
    %v886 = vunpack.c.l.b16 %v850
    %v887 = vunpack.c.l.b16 %v851
    %v888 = vunpack.c.l.b16 %v852
    %v889 = vunpack.c.l.b16 %v853
    %v890 = vunpack.c.l.b16 %v854
    %v891 = vunpack.c.l.b16 %v855
    %v892 = vunpack.c.l.b16 %v856
    %v893 = vunpack.c.l.b16 %v857
    %v894 = vunpack.c.l.b16 %v858
    %v895 = vunpack.c.l.b16 %v859
    %v896 = vunpack.c.l.b16 %v860
    %v897 = vunpack.c.l.b16 %v861
    %v898 = vunpack.c.l.b16 %v862
    %v899 = vunpack.c.l.b16 %v863
    %v900 = vunpack.c.l.b16 %v864
    %v901 = vpack.c.b16 %v886, %v885
    %v902 = vpack.c.b16 %v888, %v887
    %v903 = vpack.c.b16 %v890, %v889
    %v904 = vpack.c.b16 %v892, %v891
    %v905 = vpack.c.b16 %v894, %v893
    %v906 = vpack.c.b16 %v896, %v895
    %v907 = vpack.c.b16 %v898, %v897
    %v908 = vpack.c.b16 %v900, %v899
    %917 = vmatprep.subr.bf16.mxu0 0
    %918 = vmatpush1.bf16.msra.mxu0 %v901
    %919 = vmatprep.subr.bf16.mxu0 0
    %920 = vmatpush1.bf16.msra.mxu0 %v902
    %921 = vmatprep.subr.bf16.mxu0 0
    %922 = vmatpush1.bf16.msra.mxu0 %v903
    %923 = vmatprep.subr.bf16.mxu0 0
    %924 = vmatpush1.bf16.msra.mxu0 %v904
    %925 = vmatprep.subr.bf16.mxu0 0
    %926 = vmatpush1.bf16.msra.mxu0 %v905
    %927 = vmatprep.subr.bf16.mxu0 0
    %928 = vmatpush1.bf16.msra.mxu0 %v906
    %929 = vmatprep.subr.bf16.mxu0 0
    %930 = vmatpush1.bf16.msra.mxu0 %v907
    %931 = vmatprep.subr.bf16.mxu0 0
    %932 = vmatpush1.bf16.msra.mxu0 %v908
    %933 = vmatprep.subr.bf16.mxu0 0
    %934 = vmatpush1.bf16.msra.mxu0 0
    %935 = vmatprep.subr.bf16.mxu0 0
    %936 = vmatpush1.bf16.msra.mxu0 0
    %937 = vmatprep.subr.bf16.mxu0 0
    %938 = vmatpush1.bf16.msra.mxu0 0
    %939 = vmatprep.subr.bf16.mxu0 0
    %940 = vmatpush1.bf16.msra.mxu0 0
    %941 = vmatprep.subr.bf16.mxu0 0
    %942 = vmatpush1.bf16.msra.mxu0 0
    %943 = vmatprep.subr.bf16.mxu0 0
    %944 = vmatpush1.bf16.msra.mxu0 0
    %945 = vmatprep.subr.bf16.mxu0 0
    %946 = vmatpush1.bf16.msra.mxu0 0
    %947 = vmatprep.subr.bf16.mxu0 0
    %948 = vmatpush1.bf16.msra.mxu0 0
    %949 = vmatprep.mubr.bf16.mxu0 0
    %950 = vmatmul.mubr.bf16.gmra.mrb[0].mxu0 %v865
    %v951 = vpop.f32.mrb[0].mxu0
    %v952 = vadd.f32 0.0, %v951
    %v953 = vpop.f32.mrb[0].mxu0
    %v954 = vpop.f32.mrb[0].mxu0
    %v955 = vadd.f32 0.0, %v954
    %v956 = vpop.f32.mrb[0].mxu0
    %957 = vmatprep.mubr.bf16.mxu0 0
    %958 = vmatmul.mubr.bf16.gmra.mrb[0].mxu0 %v866
    %v959 = vpop.f32.mrb[0].mxu0
    %v960 = vadd.f32 0.0, %v959
    %v961 = vpop.f32.mrb[0].mxu0
    %v962 = vpop.f32.mrb[0].mxu0
    %v963 = vadd.f32 0.0, %v962
    %v964 = vpop.f32.mrb[0].mxu0
    %965 = vmatprep.mubr.bf16.mxu0 0
    %966 = vmatmul.mubr.bf16.gmra.mrb[0].mxu0 %v867
    %v967 = vpop.f32.mrb[0].mxu0
    %v968 = vadd.f32 0.0, %v967
    %v969 = vpop.f32.mrb[0].mxu0
    %v970 = vpop.f32.mrb[0].mxu0
    %v971 = vadd.f32 0.0, %v970
    %v972 = vpop.f32.mrb[0].mxu0
    %973 = vmatprep.mubr.bf16.mxu0 0
    %974 = vmatmul.mubr.bf16.gmra.mrb[0].mxu0 %v868
    %v975 = vpop.f32.mrb[0].mxu0
    %v976 = vadd.f32 0.0, %v975
    %v977 = vpop.f32.mrb[0].mxu0
    %v978 = vpop.f32.mrb[0].mxu0
    %v979 = vadd.f32 0.0, %v978
    %v980 = vpop.f32.mrb[0].mxu0
    %981 = vdwg.mxu0
    %v982 = vadd.f32 %v712, %v952
    %v983 = vadd.f32 %v715, %v955
    %v984 = vadd.f32 %v720, %v960
    %v985 = vadd.f32 %v723, %v963
    %v986 = vadd.f32 %v728, %v968
    %v987 = vadd.f32 %v731, %v971
    %v988 = vadd.f32 %v736, %v976
    %v989 = vadd.f32 %v739, %v979
    %s990 = scalar_lea.vmem [#allocation3], 96
    %v991 = vld [vmem:[%s990] sm:$0xf]
    %v992 = vld [vmem:[%s990 + $0x4] sm:$0xf]
    %v993 = vld [vmem:[%s990 + $0x8] sm:$0xf]
    %v994 = vld [vmem:[%s990 + $0xc] sm:$0xf]
    %v995 = vld [vmem:[%s990 + $0x10] sm:$0xf]
    %v996 = vld [vmem:[%s990 + $0x14] sm:$0xf]
    %v997 = vld [vmem:[%s990 + $0x18] sm:$0xf]
    %v998 = vld [vmem:[%s990 + $0x1c] sm:$0xf]
    %v1007 = vunpack.c.l.b16 %v991
    %v1008 = vunpack.c.l.b16 %v992
    %v1009 = vunpack.c.l.b16 %v993
    %v1010 = vunpack.c.l.b16 %v994
    %v1011 = vunpack.c.l.b16 %v995
    %v1012 = vunpack.c.l.b16 %v996
    %v1013 = vunpack.c.l.b16 %v997
    %v1014 = vunpack.c.l.b16 %v998
    %v1015 = vpack.c.b16 %v1008, %v1007
    %v1016 = vpack.c.b16 %v1010, %v1009
    %v1017 = vpack.c.b16 %v1012, %v1011
    %v1018 = vpack.c.b16 %v1014, %v1013
    %v1020 = vsel %vm291, %v1015, 0
    %v1023 = vsel %vm291, %v1016, 0
    %v1026 = vsel %vm291, %v1017, 0
    %v1029 = vsel %vm291, %v1018, 0
    %1031 = vmatprep.subr.bf16.mxu0 0
    %1032 = vmatpush1.bf16.msra.mxu0 %v259
    %1033 = vmatprep.subr.bf16.mxu0 0
    %1034 = vmatpush1.bf16.msra.mxu0 %v260
    %1035 = vmatprep.subr.bf16.mxu0 0
    %1036 = vmatpush1.bf16.msra.mxu0 %v261
    %1037 = vmatprep.subr.bf16.mxu0 0
    %1038 = vmatpush1.bf16.msra.mxu0 %v262
    %1039 = vmatprep.subr.bf16.mxu0 0
    %1040 = vmatpush1.bf16.msra.mxu0 0
    %1041 = vmatprep.subr.bf16.mxu0 0
    %1042 = vmatpush1.bf16.msra.mxu0 0
    %1043 = vmatprep.subr.bf16.mxu0 0
    %1044 = vmatpush1.bf16.msra.mxu0 0
    %1045 = vmatprep.subr.bf16.mxu0 0
    %1046 = vmatpush1.bf16.msra.mxu0 0
    %1047 = vmatprep.subr.bf16.mxu0 0
    %1048 = vmatpush1.bf16.msra.mxu0 0
    %1049 = vmatprep.subr.bf16.mxu0 0
    %1050 = vmatpush1.bf16.msra.mxu0 0
    %1051 = vmatprep.subr.bf16.mxu0 0
    %1052 = vmatpush1.bf16.msra.mxu0 0
    %1053 = vmatprep.subr.bf16.mxu0 0
    %1054 = vmatpush1.bf16.msra.mxu0 0
    %1055 = vmatprep.subr.bf16.mxu0 0
    %1056 = vmatpush1.bf16.msra.mxu0 0
    %1057 = vmatprep.subr.bf16.mxu0 0
    %1058 = vmatpush1.bf16.msra.mxu0 0
    %1059 = vmatprep.subr.bf16.mxu0 0
    %1060 = vmatpush1.bf16.msra.mxu0 0
    %1061 = vmatprep.subr.bf16.mxu0 0
    %1062 = vmatpush1.bf16.msra.mxu0 0
    %1063 = vmatprep.mubr.bf16.mxu0 0
    %1064 = vmatmul.mubr.bf16.gmra.mrb[0].mxu0 %v1020
    %v1065 = vpop.f32.mrb[0].mxu0
    %v1066 = vadd.f32 0.0, %v1065
    %v1067 = vpop.f32.mrb[0].mxu0
    %v1068 = vpop.f32.mrb[0].mxu0
    %v1069 = vadd.f32 0.0, %v1068
    %v1070 = vpop.f32.mrb[0].mxu0
    %1071 = vmatprep.mubr.bf16.mxu0 0
    %1072 = vmatmul.mubr.bf16.gmra.mrb[0].mxu0 %v1023
    %v1073 = vpop.f32.mrb[0].mxu0
    %v1074 = vadd.f32 0.0, %v1073
    %v1075 = vpop.f32.mrb[0].mxu0
    %v1076 = vpop.f32.mrb[0].mxu0
    %v1077 = vadd.f32 0.0, %v1076
    %v1078 = vpop.f32.mrb[0].mxu0
    %1079 = vmatprep.mubr.bf16.mxu0 0
    %1080 = vmatmul.mubr.bf16.gmra.mrb[0].mxu0 %v1026
    %v1081 = vpop.f32.mrb[0].mxu0
    %v1082 = vadd.f32 0.0, %v1081
    %v1083 = vpop.f32.mrb[0].mxu0
    %v1084 = vpop.f32.mrb[0].mxu0
    %v1085 = vadd.f32 0.0, %v1084
    %v1086 = vpop.f32.mrb[0].mxu0
    %1087 = vmatprep.mubr.bf16.mxu0 0
    %1088 = vmatmul.mubr.bf16.gmra.mrb[0].mxu0 %v1029
    %v1089 = vpop.f32.mrb[0].mxu0
    %v1090 = vadd.f32 0.0, %v1089
    %v1091 = vpop.f32.mrb[0].mxu0
    %v1092 = vpop.f32.mrb[0].mxu0
    %v1093 = vadd.f32 0.0, %v1092
    %v1094 = vpop.f32.mrb[0].mxu0
    %1095 = vdwg.mxu0
    %s1096 = scalar_lea.vmem [#allocation5], 192
    %v1097 = vld [vmem:[%s1096] sm:$0xf]
    %v1098 = vld [vmem:[%s1096 + $0x4] sm:$0xf]
    %v1099 = vld [vmem:[%s1096 + $0x8] sm:$0xf]
    %v1100 = vld [vmem:[%s1096 + $0xc] sm:$0xf]
    %v1101 = vld [vmem:[%s1096 + $0x10] sm:$0xf]
    %v1102 = vld [vmem:[%s1096 + $0x14] sm:$0xf]
    %v1103 = vld [vmem:[%s1096 + $0x18] sm:$0xf]
    %v1104 = vld [vmem:[%s1096 + $0x1c] sm:$0xf]
    %v1105 = vld [vmem:[%s1096 + $0x20] sm:$0xf]
    %v1106 = vld [vmem:[%s1096 + $0x24] sm:$0xf]
    %v1107 = vld [vmem:[%s1096 + $0x28] sm:$0xf]
    %v1108 = vld [vmem:[%s1096 + $0x2c] sm:$0xf]
    %v1109 = vld [vmem:[%s1096 + $0x30] sm:$0xf]
    %v1110 = vld [vmem:[%s1096 + $0x34] sm:$0xf]
    %v1111 = vld [vmem:[%s1096 + $0x38] sm:$0xf]
    %v1112 = vld [vmem:[%s1096 + $0x3c] sm:$0xf]
    %v1113 = vpack.c.bf16 %v1069, %v1066
    %v1114 = vpack.c.bf16 %v1077, %v1074
    %v1115 = vpack.c.bf16 %v1085, %v1082
    %v1116 = vpack.c.bf16 %v1093, %v1090
    %v1133 = vunpack.c.l.b16 %v1097
    %v1134 = vunpack.c.l.b16 %v1098
    %v1135 = vunpack.c.l.b16 %v1099
    %v1136 = vunpack.c.l.b16 %v1100
    %v1137 = vunpack.c.l.b16 %v1101
    %v1138 = vunpack.c.l.b16 %v1102
    %v1139 = vunpack.c.l.b16 %v1103
    %v1140 = vunpack.c.l.b16 %v1104
    %v1141 = vunpack.c.l.b16 %v1105
    %v1142 = vunpack.c.l.b16 %v1106
    %v1143 = vunpack.c.l.b16 %v1107
    %v1144 = vunpack.c.l.b16 %v1108
    %v1145 = vunpack.c.l.b16 %v1109
    %v1146 = vunpack.c.l.b16 %v1110
    %v1147 = vunpack.c.l.b16 %v1111
    %v1148 = vunpack.c.l.b16 %v1112
    %v1149 = vpack.c.b16 %v1134, %v1133
    %v1150 = vpack.c.b16 %v1136, %v1135
    %v1151 = vpack.c.b16 %v1138, %v1137
    %v1152 = vpack.c.b16 %v1140, %v1139
    %v1153 = vpack.c.b16 %v1142, %v1141
    %v1154 = vpack.c.b16 %v1144, %v1143
    %v1155 = vpack.c.b16 %v1146, %v1145
    %v1156 = vpack.c.b16 %v1148, %v1147
    %1165 = vmatprep.subr.bf16.mxu0 0
    %1166 = vmatpush1.bf16.msra.mxu0 %v1149
    %1167 = vmatprep.subr.bf16.mxu0 0
    %1168 = vmatpush1.bf16.msra.mxu0 %v1150
    %1169 = vmatprep.subr.bf16.mxu0 0
    %1170 = vmatpush1.bf16.msra.mxu0 %v1151
    %1171 = vmatprep.subr.bf16.mxu0 0
    %1172 = vmatpush1.bf16.msra.mxu0 %v1152
    %1173 = vmatprep.subr.bf16.mxu0 0
    %1174 = vmatpush1.bf16.msra.mxu0 %v1153
    %1175 = vmatprep.subr.bf16.mxu0 0
    %1176 = vmatpush1.bf16.msra.mxu0 %v1154
    %1177 = vmatprep.subr.bf16.mxu0 0
    %1178 = vmatpush1.bf16.msra.mxu0 %v1155
    %1179 = vmatprep.subr.bf16.mxu0 0
    %1180 = vmatpush1.bf16.msra.mxu0 %v1156
    %1181 = vmatprep.subr.bf16.mxu0 0
    %1182 = vmatpush1.bf16.msra.mxu0 0
    %1183 = vmatprep.subr.bf16.mxu0 0
    %1184 = vmatpush1.bf16.msra.mxu0 0
    %1185 = vmatprep.subr.bf16.mxu0 0
    %1186 = vmatpush1.bf16.msra.mxu0 0
    %1187 = vmatprep.subr.bf16.mxu0 0
    %1188 = vmatpush1.bf16.msra.mxu0 0
    %1189 = vmatprep.subr.bf16.mxu0 0
    %1190 = vmatpush1.bf16.msra.mxu0 0
    %1191 = vmatprep.subr.bf16.mxu0 0
    %1192 = vmatpush1.bf16.msra.mxu0 0
    %1193 = vmatprep.subr.bf16.mxu0 0
    %1194 = vmatpush1.bf16.msra.mxu0 0
    %1195 = vmatprep.subr.bf16.mxu0 0
    %1196 = vmatpush1.bf16.msra.mxu0 0
    %1197 = vmatprep.mubr.bf16.mxu0 0
    %1198 = vmatmul.mubr.bf16.gmra.mrb[0].mxu0 %v1113
    %v1199 = vpop.f32.mrb[0].mxu0
    %v1200 = vadd.f32 0.0, %v1199
    %v1201 = vpop.f32.mrb[0].mxu0
    %v1202 = vpop.f32.mrb[0].mxu0
    %v1203 = vadd.f32 0.0, %v1202
    %v1204 = vpop.f32.mrb[0].mxu0
    %1205 = vmatprep.mubr.bf16.mxu0 0
    %1206 = vmatmul.mubr.bf16.gmra.mrb[0].mxu0 %v1114
    %v1207 = vpop.f32.mrb[0].mxu0
    %v1208 = vadd.f32 0.0, %v1207
    %v1209 = vpop.f32.mrb[0].mxu0
    %v1210 = vpop.f32.mrb[0].mxu0
    %v1211 = vadd.f32 0.0, %v1210
    %v1212 = vpop.f32.mrb[0].mxu0
    %1213 = vmatprep.mubr.bf16.mxu0 0
    %1214 = vmatmul.mubr.bf16.gmra.mrb[0].mxu0 %v1115
    %v1215 = vpop.f32.mrb[0].mxu0
    %v1216 = vadd.f32 0.0, %v1215
    %v1217 = vpop.f32.mrb[0].mxu0
    %v1218 = vpop.f32.mrb[0].mxu0
    %v1219 = vadd.f32 0.0, %v1218
    %v1220 = vpop.f32.mrb[0].mxu0
    %1221 = vmatprep.mubr.bf16.mxu0 0
    %1222 = vmatmul.mubr.bf16.gmra.mrb[0].mxu0 %v1116
    %v1223 = vpop.f32.mrb[0].mxu0
    %v1224 = vadd.f32 0.0, %v1223
    %v1225 = vpop.f32.mrb[0].mxu0
    %v1226 = vpop.f32.mrb[0].mxu0
    %v1227 = vadd.f32 0.0, %v1226
    %v1228 = vpop.f32.mrb[0].mxu0
    %1229 = vdwg.mxu0
    %v1230 = vadd.f32 %v982, %v1200
    %v1231 = vadd.f32 %v983, %v1203
    %v1232 = vadd.f32 %v984, %v1208
    %v1233 = vadd.f32 %v985, %v1211
    %v1234 = vadd.f32 %v986, %v1216
    %v1235 = vadd.f32 %v987, %v1219
    %v1236 = vadd.f32 %v988, %v1224
    %v1237 = vadd.f32 %v989, %v1227
    %s1238 = scalar_lea.vmem [#allocation3], 128
    %v1239 = vld [vmem:[%s1238] sm:$0xf]
    %v1240 = vld [vmem:[%s1238 + $0x4] sm:$0xf]
    %v1241 = vld [vmem:[%s1238 + $0x8] sm:$0xf]
    %v1242 = vld [vmem:[%s1238 + $0xc] sm:$0xf]
    %v1243 = vld [vmem:[%s1238 + $0x10] sm:$0xf]
    %v1244 = vld [vmem:[%s1238 + $0x14] sm:$0xf]
    %v1245 = vld [vmem:[%s1238 + $0x18] sm:$0xf]
    %v1246 = vld [vmem:[%s1238 + $0x1c] sm:$0xf]
    %v1255 = vunpack.c.l.b16 %v1239
    %v1256 = vunpack.c.l.b16 %v1240
    %v1257 = vunpack.c.l.b16 %v1241
    %v1258 = vunpack.c.l.b16 %v1242
    %v1259 = vunpack.c.l.b16 %v1243
    %v1260 = vunpack.c.l.b16 %v1244
    %v1261 = vunpack.c.l.b16 %v1245
    %v1262 = vunpack.c.l.b16 %v1246
    %v1263 = vpack.c.b16 %v1256, %v1255
    %v1264 = vpack.c.b16 %v1258, %v1257
    %v1265 = vpack.c.b16 %v1260, %v1259
    %v1266 = vpack.c.b16 %v1262, %v1261
    %v1268 = vsel %vm291, %v1263, 0
    %v1271 = vsel %vm291, %v1264, 0
    %v1274 = vsel %vm291, %v1265, 0
    %v1277 = vsel %vm291, %v1266, 0
    %1279 = vmatprep.subr.bf16.mxu0 0
    %1280 = vmatpush1.bf16.msra.mxu0 %v259
    %1281 = vmatprep.subr.bf16.mxu0 0
    %1282 = vmatpush1.bf16.msra.mxu0 %v260
    %1283 = vmatprep.subr.bf16.mxu0 0
    %1284 = vmatpush1.bf16.msra.mxu0 %v261
    %1285 = vmatprep.subr.bf16.mxu0 0
    %1286 = vmatpush1.bf16.msra.mxu0 %v262
    %1287 = vmatprep.subr.bf16.mxu0 0
    %1288 = vmatpush1.bf16.msra.mxu0 0
    %1289 = vmatprep.subr.bf16.mxu0 0
    %1290 = vmatpush1.bf16.msra.mxu0 0
    %1291 = vmatprep.subr.bf16.mxu0 0
    %1292 = vmatpush1.bf16.msra.mxu0 0
    %1293 = vmatprep.subr.bf16.mxu0 0
    %1294 = vmatpush1.bf16.msra.mxu0 0
    %1295 = vmatprep.subr.bf16.mxu0 0
    %1296 = vmatpush1.bf16.msra.mxu0 0
    %1297 = vmatprep.subr.bf16.mxu0 0
    %1298 = vmatpush1.bf16.msra.mxu0 0
    %1299 = vmatprep.subr.bf16.mxu0 0
    %1300 = vmatpush1.bf16.msra.mxu0 0
    %1301 = vmatprep.subr.bf16.mxu0 0
    %1302 = vmatpush1.bf16.msra.mxu0 0
    %1303 = vmatprep.subr.bf16.mxu0 0
    %1304 = vmatpush1.bf16.msra.mxu0 0
    %1305 = vmatprep.subr.bf16.mxu0 0
    %1306 = vmatpush1.bf16.msra.mxu0 0
    %1307 = vmatprep.subr.bf16.mxu0 0
    %1308 = vmatpush1.bf16.msra.mxu0 0
    %1309 = vmatprep.subr.bf16.mxu0 0
    %1310 = vmatpush1.bf16.msra.mxu0 0
    %1311 = vmatprep.mubr.bf16.mxu0 0
    %1312 = vmatmul.mubr.bf16.gmra.mrb[0].mxu0 %v1268
    %v1313 = vpop.f32.mrb[0].mxu0
    %v1314 = vadd.f32 0.0, %v1313
    %v1315 = vpop.f32.mrb[0].mxu0
    %v1316 = vpop.f32.mrb[0].mxu0
    %v1317 = vadd.f32 0.0, %v1316
    %v1318 = vpop.f32.mrb[0].mxu0
    %1319 = vmatprep.mubr.bf16.mxu0 0
    %1320 = vmatmul.mubr.bf16.gmra.mrb[0].mxu0 %v1271
    %v1321 = vpop.f32.mrb[0].mxu0
    %v1322 = vadd.f32 0.0, %v1321
    %v1323 = vpop.f32.mrb[0].mxu0
    %v1324 = vpop.f32.mrb[0].mxu0
    %v1325 = vadd.f32 0.0, %v1324
    %v1326 = vpop.f32.mrb[0].mxu0
    %1327 = vmatprep.mubr.bf16.mxu0 0
    %1328 = vmatmul.mubr.bf16.gmra.mrb[0].mxu0 %v1274
    %v1329 = vpop.f32.mrb[0].mxu0
    %v1330 = vadd.f32 0.0, %v1329
    %v1331 = vpop.f32.mrb[0].mxu0
    %v1332 = vpop.f32.mrb[0].mxu0
    %v1333 = vadd.f32 0.0, %v1332
    %v1334 = vpop.f32.mrb[0].mxu0
    %1335 = vmatprep.mubr.bf16.mxu0 0
    %1336 = vmatmul.mubr.bf16.gmra.mrb[0].mxu0 %v1277
    %v1337 = vpop.f32.mrb[0].mxu0
    %v1338 = vadd.f32 0.0, %v1337
    %v1339 = vpop.f32.mrb[0].mxu0
    %v1340 = vpop.f32.mrb[0].mxu0
    %v1341 = vadd.f32 0.0, %v1340
    %v1342 = vpop.f32.mrb[0].mxu0
    %1343 = vdwg.mxu0
    %s1344 = scalar_lea.vmem [#allocation5], 256
    %v1345 = vld [vmem:[%s1344] sm:$0xf]
    %v1346 = vld [vmem:[%s1344 + $0x4] sm:$0xf]
    %v1347 = vld [vmem:[%s1344 + $0x8] sm:$0xf]
    %v1348 = vld [vmem:[%s1344 + $0xc] sm:$0xf]
    %v1349 = vld [vmem:[%s1344 + $0x10] sm:$0xf]
    %v1350 = vld [vmem:[%s1344 + $0x14] sm:$0xf]
    %v1351 = vld [vmem:[%s1344 + $0x18] sm:$0xf]
    %v1352 = vld [vmem:[%s1344 + $0x1c] sm:$0xf]
    %v1353 = vld [vmem:[%s1344 + $0x20] sm:$0xf]
    %v1354 = vld [vmem:[%s1344 + $0x24] sm:$0xf]
    %v1355 = vld [vmem:[%s1344 + $0x28] sm:$0xf]
    %v1356 = vld [vmem:[%s1344 + $0x2c] sm:$0xf]
    %v1357 = vld [vmem:[%s1344 + $0x30] sm:$0xf]
    %v1358 = vld [vmem:[%s1344 + $0x34] sm:$0xf]
    %v1359 = vld [vmem:[%s1344 + $0x38] sm:$0xf]
    %v1360 = vld [vmem:[%s1344 + $0x3c] sm:$0xf]
    %v1361 = vpack.c.bf16 %v1317, %v1314
    %v1362 = vpack.c.bf16 %v1325, %v1322
    %v1363 = vpack.c.bf16 %v1333, %v1330
    %v1364 = vpack.c.bf16 %v1341, %v1338
    %v1381 = vunpack.c.l.b16 %v1345
    %v1382 = vunpack.c.l.b16 %v1346
    %v1383 = vunpack.c.l.b16 %v1347
    %v1384 = vunpack.c.l.b16 %v1348
    %v1385 = vunpack.c.l.b16 %v1349
    %v1386 = vunpack.c.l.b16 %v1350
    %v1387 = vunpack.c.l.b16 %v1351
    %v1388 = vunpack.c.l.b16 %v1352
    %v1389 = vunpack.c.l.b16 %v1353
    %v1390 = vunpack.c.l.b16 %v1354
    %v1391 = vunpack.c.l.b16 %v1355
    %v1392 = vunpack.c.l.b16 %v1356
    %v1393 = vunpack.c.l.b16 %v1357
    %v1394 = vunpack.c.l.b16 %v1358
    %v1395 = vunpack.c.l.b16 %v1359
    %v1396 = vunpack.c.l.b16 %v1360
    %v1397 = vpack.c.b16 %v1382, %v1381
    %v1398 = vpack.c.b16 %v1384, %v1383
    %v1399 = vpack.c.b16 %v1386, %v1385
    %v1400 = vpack.c.b16 %v1388, %v1387
    %v1401 = vpack.c.b16 %v1390, %v1389
    %v1402 = vpack.c.b16 %v1392, %v1391
    %v1403 = vpack.c.b16 %v1394, %v1393
    %v1404 = vpack.c.b16 %v1396, %v1395
    %1413 = vmatprep.subr.bf16.mxu0 0
    %1414 = vmatpush1.bf16.msra.mxu0 %v1397
    %1415 = vmatprep.subr.bf16.mxu0 0
    %1416 = vmatpush1.bf16.msra.mxu0 %v1398
    %1417 = vmatprep.subr.bf16.mxu0 0
    %1418 = vmatpush1.bf16.msra.mxu0 %v1399
    %1419 = vmatprep.subr.bf16.mxu0 0
    %1420 = vmatpush1.bf16.msra.mxu0 %v1400
    %1421 = vmatprep.subr.bf16.mxu0 0
    %1422 = vmatpush1.bf16.msra.mxu0 %v1401
    %1423 = vmatprep.subr.bf16.mxu0 0
    %1424 = vmatpush1.bf16.msra.mxu0 %v1402
    %1425 = vmatprep.subr.bf16.mxu0 0
    %1426 = vmatpush1.bf16.msra.mxu0 %v1403
    %1427 = vmatprep.subr.bf16.mxu0 0
    %1428 = vmatpush1.bf16.msra.mxu0 %v1404
    %1429 = vmatprep.subr.bf16.mxu0 0
    %1430 = vmatpush1.bf16.msra.mxu0 0
    %1431 = vmatprep.subr.bf16.mxu0 0
    %1432 = vmatpush1.bf16.msra.mxu0 0
    %1433 = vmatprep.subr.bf16.mxu0 0
    %1434 = vmatpush1.bf16.msra.mxu0 0
    %1435 = vmatprep.subr.bf16.mxu0 0
    %1436 = vmatpush1.bf16.msra.mxu0 0
    %1437 = vmatprep.subr.bf16.mxu0 0
    %1438 = vmatpush1.bf16.msra.mxu0 0
    %1439 = vmatprep.subr.bf16.mxu0 0
    %1440 = vmatpush1.bf16.msra.mxu0 0
    %1441 = vmatprep.subr.bf16.mxu0 0
    %1442 = vmatpush1.bf16.msra.mxu0 0
    %1443 = vmatprep.subr.bf16.mxu0 0
    %1444 = vmatpush1.bf16.msra.mxu0 0
    %1445 = vmatprep.mubr.bf16.mxu0 0
    %1446 = vmatmul.mubr.bf16.gmra.mrb[0].mxu0 %v1361
    %v1447 = vpop.f32.mrb[0].mxu0
    %v1448 = vadd.f32 0.0, %v1447
    %v1449 = vpop.f32.mrb[0].mxu0
    %v1450 = vpop.f32.mrb[0].mxu0
    %v1451 = vadd.f32 0.0, %v1450
    %v1452 = vpop.f32.mrb[0].mxu0
    %1453 = vmatprep.mubr.bf16.mxu0 0
    %1454 = vmatmul.mubr.bf16.gmra.mrb[0].mxu0 %v1362
    %v1455 = vpop.f32.mrb[0].mxu0
    %v1456 = vadd.f32 0.0, %v1455
    %v1457 = vpop.f32.mrb[0].mxu0
    %v1458 = vpop.f32.mrb[0].mxu0
    %v1459 = vadd.f32 0.0, %v1458
    %v1460 = vpop.f32.mrb[0].mxu0
    %1461 = vmatprep.mubr.bf16.mxu0 0
    %1462 = vmatmul.mubr.bf16.gmra.mrb[0].mxu0 %v1363
    %v1463 = vpop.f32.mrb[0].mxu0
    %v1464 = vadd.f32 0.0, %v1463
    %v1465 = vpop.f32.mrb[0].mxu0
    %v1466 = vpop.f32.mrb[0].mxu0
    %v1467 = vadd.f32 0.0, %v1466
    %v1468 = vpop.f32.mrb[0].mxu0
    %1469 = vmatprep.mubr.bf16.mxu0 0
    %1470 = vmatmul.mubr.bf16.gmra.mrb[0].mxu0 %v1364
    %v1471 = vpop.f32.mrb[0].mxu0
    %v1472 = vadd.f32 0.0, %v1471
    %v1473 = vpop.f32.mrb[0].mxu0
    %v1474 = vpop.f32.mrb[0].mxu0
    %v1475 = vadd.f32 0.0, %v1474
    %v1476 = vpop.f32.mrb[0].mxu0
    %1477 = vdwg.mxu0
    %v1478 = vadd.f32 %v1230, %v1448
    %v1479 = vadd.f32 %v1231, %v1451
    %v1480 = vadd.f32 %v1232, %v1456
    %v1481 = vadd.f32 %v1233, %v1459
    %v1482 = vadd.f32 %v1234, %v1464
    %v1483 = vadd.f32 %v1235, %v1467
    %v1484 = vadd.f32 %v1236, %v1472
    %v1485 = vadd.f32 %v1237, %v1475
    %s1486 = scalar_lea.vmem [#allocation3], 160
    %v1487 = vld [vmem:[%s1486] sm:$0xf]
    %v1488 = vld [vmem:[%s1486 + $0x4] sm:$0xf]
    %v1489 = vld [vmem:[%s1486 + $0x8] sm:$0xf]
    %v1490 = vld [vmem:[%s1486 + $0xc] sm:$0xf]
    %v1491 = vld [vmem:[%s1486 + $0x10] sm:$0xf]
    %v1492 = vld [vmem:[%s1486 + $0x14] sm:$0xf]
    %v1493 = vld [vmem:[%s1486 + $0x18] sm:$0xf]
    %v1494 = vld [vmem:[%s1486 + $0x1c] sm:$0xf]
    %v1503 = vunpack.c.l.b16 %v1487
    %v1504 = vunpack.c.l.b16 %v1488
    %v1505 = vunpack.c.l.b16 %v1489
    %v1506 = vunpack.c.l.b16 %v1490
    %v1507 = vunpack.c.l.b16 %v1491
    %v1508 = vunpack.c.l.b16 %v1492
    %v1509 = vunpack.c.l.b16 %v1493
    %v1510 = vunpack.c.l.b16 %v1494
    %v1511 = vpack.c.b16 %v1504, %v1503
    %v1512 = vpack.c.b16 %v1506, %v1505
    %v1513 = vpack.c.b16 %v1508, %v1507
    %v1514 = vpack.c.b16 %v1510, %v1509
    %v1516 = vsel %vm291, %v1511, 0
    %v1519 = vsel %vm291, %v1512, 0
    %v1522 = vsel %vm291, %v1513, 0
    %v1525 = vsel %vm291, %v1514, 0
    %1527 = vmatprep.subr.bf16.mxu0 0
    %1528 = vmatpush1.bf16.msra.mxu0 %v259
    %1529 = vmatprep.subr.bf16.mxu0 0
    %1530 = vmatpush1.bf16.msra.mxu0 %v260
    %1531 = vmatprep.subr.bf16.mxu0 0
    %1532 = vmatpush1.bf16.msra.mxu0 %v261
    %1533 = vmatprep.subr.bf16.mxu0 0
    %1534 = vmatpush1.bf16.msra.mxu0 %v262
    %1535 = vmatprep.subr.bf16.mxu0 0
    %1536 = vmatpush1.bf16.msra.mxu0 0
    %1537 = vmatprep.subr.bf16.mxu0 0
    %1538 = vmatpush1.bf16.msra.mxu0 0
    %1539 = vmatprep.subr.bf16.mxu0 0
    %1540 = vmatpush1.bf16.msra.mxu0 0
    %1541 = vmatprep.subr.bf16.mxu0 0
    %1542 = vmatpush1.bf16.msra.mxu0 0
    %1543 = vmatprep.subr.bf16.mxu0 0
    %1544 = vmatpush1.bf16.msra.mxu0 0
    %1545 = vmatprep.subr.bf16.mxu0 0
    %1546 = vmatpush1.bf16.msra.mxu0 0
    %1547 = vmatprep.subr.bf16.mxu0 0
    %1548 = vmatpush1.bf16.msra.mxu0 0
    %1549 = vmatprep.subr.bf16.mxu0 0
    %1550 = vmatpush1.bf16.msra.mxu0 0
    %1551 = vmatprep.subr.bf16.mxu0 0
    %1552 = vmatpush1.bf16.msra.mxu0 0
    %1553 = vmatprep.subr.bf16.mxu0 0
    %1554 = vmatpush1.bf16.msra.mxu0 0
    %1555 = vmatprep.subr.bf16.mxu0 0
    %1556 = vmatpush1.bf16.msra.mxu0 0
    %1557 = vmatprep.subr.bf16.mxu0 0
    %1558 = vmatpush1.bf16.msra.mxu0 0
    %1559 = vmatprep.mubr.bf16.mxu0 0
    %1560 = vmatmul.mubr.bf16.gmra.mrb[0].mxu0 %v1516
    %v1561 = vpop.f32.mrb[0].mxu0
    %v1562 = vadd.f32 0.0, %v1561
    %v1563 = vpop.f32.mrb[0].mxu0
    %v1564 = vpop.f32.mrb[0].mxu0
    %v1565 = vadd.f32 0.0, %v1564
    %v1566 = vpop.f32.mrb[0].mxu0
    %1567 = vmatprep.mubr.bf16.mxu0 0
    %1568 = vmatmul.mubr.bf16.gmra.mrb[0].mxu0 %v1519
    %v1569 = vpop.f32.mrb[0].mxu0
    %v1570 = vadd.f32 0.0, %v1569
    %v1571 = vpop.f32.mrb[0].mxu0
    %v1572 = vpop.f32.mrb[0].mxu0
    %v1573 = vadd.f32 0.0, %v1572
    %v1574 = vpop.f32.mrb[0].mxu0
    %1575 = vmatprep.mubr.bf16.mxu0 0
    %1576 = vmatmul.mubr.bf16.gmra.mrb[0].mxu0 %v1522
    %v1577 = vpop.f32.mrb[0].mxu0
    %v1578 = vadd.f32 0.0, %v1577
    %v1579 = vpop.f32.mrb[0].mxu0
    %v1580 = vpop.f32.mrb[0].mxu0
    %v1581 = vadd.f32 0.0, %v1580
    %v1582 = vpop.f32.mrb[0].mxu0
    %1583 = vmatprep.mubr.bf16.mxu0 0
    %1584 = vmatmul.mubr.bf16.gmra.mrb[0].mxu0 %v1525
    %v1585 = vpop.f32.mrb[0].mxu0
    %v1586 = vadd.f32 0.0, %v1585
    %v1587 = vpop.f32.mrb[0].mxu0
    %v1588 = vpop.f32.mrb[0].mxu0
    %v1589 = vadd.f32 0.0, %v1588
    %v1590 = vpop.f32.mrb[0].mxu0
    %1591 = vdwg.mxu0
    %s1592 = scalar_lea.vmem [#allocation5], 320
    %v1593 = vld [vmem:[%s1592] sm:$0xf]
    %v1594 = vld [vmem:[%s1592 + $0x4] sm:$0xf]
    %v1595 = vld [vmem:[%s1592 + $0x8] sm:$0xf]
    %v1596 = vld [vmem:[%s1592 + $0xc] sm:$0xf]
    %v1597 = vld [vmem:[%s1592 + $0x10] sm:$0xf]
    %v1598 = vld [vmem:[%s1592 + $0x14] sm:$0xf]
    %v1599 = vld [vmem:[%s1592 + $0x18] sm:$0xf]
    %v1600 = vld [vmem:[%s1592 + $0x1c] sm:$0xf]
    %v1601 = vld [vmem:[%s1592 + $0x20] sm:$0xf]
    %v1602 = vld [vmem:[%s1592 + $0x24] sm:$0xf]
    %v1603 = vld [vmem:[%s1592 + $0x28] sm:$0xf]
    %v1604 = vld [vmem:[%s1592 + $0x2c] sm:$0xf]
    %v1605 = vld [vmem:[%s1592 + $0x30] sm:$0xf]
    %v1606 = vld [vmem:[%s1592 + $0x34] sm:$0xf]
    %v1607 = vld [vmem:[%s1592 + $0x38] sm:$0xf]
    %v1608 = vld [vmem:[%s1592 + $0x3c] sm:$0xf]
    %v1609 = vpack.c.bf16 %v1565, %v1562
    %v1610 = vpack.c.bf16 %v1573, %v1570
    %v1611 = vpack.c.bf16 %v1581, %v1578
    %v1612 = vpack.c.bf16 %v1589, %v1586
    %v1629 = vunpack.c.l.b16 %v1593
    %v1630 = vunpack.c.l.b16 %v1594
    %v1631 = vunpack.c.l.b16 %v1595
    %v1632 = vunpack.c.l.b16 %v1596
    %v1633 = vunpack.c.l.b16 %v1597
    %v1634 = vunpack.c.l.b16 %v1598
    %v1635 = vunpack.c.l.b16 %v1599
    %v1636 = vunpack.c.l.b16 %v1600
    %v1637 = vunpack.c.l.b16 %v1601
    %v1638 = vunpack.c.l.b16 %v1602
    %v1639 = vunpack.c.l.b16 %v1603
    %v1640 = vunpack.c.l.b16 %v1604
    %v1641 = vunpack.c.l.b16 %v1605
    %v1642 = vunpack.c.l.b16 %v1606
    %v1643 = vunpack.c.l.b16 %v1607
    %v1644 = vunpack.c.l.b16 %v1608
    %v1645 = vpack.c.b16 %v1630, %v1629
    %v1646 = vpack.c.b16 %v1632, %v1631
    %v1647 = vpack.c.b16 %v1634, %v1633
    %v1648 = vpack.c.b16 %v1636, %v1635
    %v1649 = vpack.c.b16 %v1638, %v1637
    %v1650 = vpack.c.b16 %v1640, %v1639
    %v1651 = vpack.c.b16 %v1642, %v1641
    %v1652 = vpack.c.b16 %v1644, %v1643
    %1661 = vmatprep.subr.bf16.mxu0 0
    %1662 = vmatpush1.bf16.msra.mxu0 %v1645
    %1663 = vmatprep.subr.bf16.mxu0 0
    %1664 = vmatpush1.bf16.msra.mxu0 %v1646
    %1665 = vmatprep.subr.bf16.mxu0 0
    %1666 = vmatpush1.bf16.msra.mxu0 %v1647
    %1667 = vmatprep.subr.bf16.mxu0 0
    %1668 = vmatpush1.bf16.msra.mxu0 %v1648
    %1669 = vmatprep.subr.bf16.mxu0 0
    %1670 = vmatpush1.bf16.msra.mxu0 %v1649
    %1671 = vmatprep.subr.bf16.mxu0 0
    %1672 = vmatpush1.bf16.msra.mxu0 %v1650
    %1673 = vmatprep.subr.bf16.mxu0 0
    %1674 = vmatpush1.bf16.msra.mxu0 %v1651
    %1675 = vmatprep.subr.bf16.mxu0 0
    %1676 = vmatpush1.bf16.msra.mxu0 %v1652
    %1677 = vmatprep.subr.bf16.mxu0 0
    %1678 = vmatpush1.bf16.msra.mxu0 0
    %1679 = vmatprep.subr.bf16.mxu0 0
    %1680 = vmatpush1.bf16.msra.mxu0 0
    %1681 = vmatprep.subr.bf16.mxu0 0
    %1682 = vmatpush1.bf16.msra.mxu0 0
    %1683 = vmatprep.subr.bf16.mxu0 0
    %1684 = vmatpush1.bf16.msra.mxu0 0
    %1685 = vmatprep.subr.bf16.mxu0 0
    %1686 = vmatpush1.bf16.msra.mxu0 0
    %1687 = vmatprep.subr.bf16.mxu0 0
    %1688 = vmatpush1.bf16.msra.mxu0 0
    %1689 = vmatprep.subr.bf16.mxu0 0
    %1690 = vmatpush1.bf16.msra.mxu0 0
    %1691 = vmatprep.subr.bf16.mxu0 0
    %1692 = vmatpush1.bf16.msra.mxu0 0
    %1693 = vmatprep.mubr.bf16.mxu0 0
    %1694 = vmatmul.mubr.bf16.gmra.mrb[0].mxu0 %v1609
    %v1695 = vpop.f32.mrb[0].mxu0
    %v1696 = vadd.f32 0.0, %v1695
    %v1697 = vpop.f32.mrb[0].mxu0
    %v1698 = vpop.f32.mrb[0].mxu0
    %v1699 = vadd.f32 0.0, %v1698
    %v1700 = vpop.f32.mrb[0].mxu0
    %1701 = vmatprep.mubr.bf16.mxu0 0
    %1702 = vmatmul.mubr.bf16.gmra.mrb[0].mxu0 %v1610
    %v1703 = vpop.f32.mrb[0].mxu0
    %v1704 = vadd.f32 0.0, %v1703
    %v1705 = vpop.f32.mrb[0].mxu0
    %v1706 = vpop.f32.mrb[0].mxu0
    %v1707 = vadd.f32 0.0, %v1706
    %v1708 = vpop.f32.mrb[0].mxu0
    %1709 = vmatprep.mubr.bf16.mxu0 0
    %1710 = vmatmul.mubr.bf16.gmra.mrb[0].mxu0 %v1611
    %v1711 = vpop.f32.mrb[0].mxu0
    %v1712 = vadd.f32 0.0, %v1711
    %v1713 = vpop.f32.mrb[0].mxu0
    %v1714 = vpop.f32.mrb[0].mxu0
    %v1715 = vadd.f32 0.0, %v1714
    %v1716 = vpop.f32.mrb[0].mxu0
    %1717 = vmatprep.mubr.bf16.mxu0 0
    %1718 = vmatmul.mubr.bf16.gmra.mrb[0].mxu0 %v1612
    %v1719 = vpop.f32.mrb[0].mxu0
    %v1720 = vadd.f32 0.0, %v1719
    %v1721 = vpop.f32.mrb[0].mxu0
    %v1722 = vpop.f32.mrb[0].mxu0
    %v1723 = vadd.f32 0.0, %v1722
    %v1724 = vpop.f32.mrb[0].mxu0
    %1725 = vdwg.mxu0
    %v1726 = vadd.f32 %v1478, %v1696
    %v1727 = vadd.f32 %v1479, %v1699
    %v1728 = vadd.f32 %v1480, %v1704
    %v1729 = vadd.f32 %v1481, %v1707
    %v1730 = vadd.f32 %v1482, %v1712
    %v1731 = vadd.f32 %v1483, %v1715
    %v1732 = vadd.f32 %v1484, %v1720
    %v1733 = vadd.f32 %v1485, %v1723
    %s1734 = scalar_lea.vmem [#allocation3], 192
    %v1735 = vld [vmem:[%s1734] sm:$0xf]
    %v1736 = vld [vmem:[%s1734 + $0x4] sm:$0xf]
    %v1737 = vld [vmem:[%s1734 + $0x8] sm:$0xf]
    %v1738 = vld [vmem:[%s1734 + $0xc] sm:$0xf]
    %v1739 = vld [vmem:[%s1734 + $0x10] sm:$0xf]
    %v1740 = vld [vmem:[%s1734 + $0x14] sm:$0xf]
    %v1741 = vld [vmem:[%s1734 + $0x18] sm:$0xf]
    %v1742 = vld [vmem:[%s1734 + $0x1c] sm:$0xf]
    %v1751 = vunpack.c.l.b16 %v1735
    %v1752 = vunpack.c.l.b16 %v1736
    %v1753 = vunpack.c.l.b16 %v1737
    %v1754 = vunpack.c.l.b16 %v1738
    %v1755 = vunpack.c.l.b16 %v1739
    %v1756 = vunpack.c.l.b16 %v1740
    %v1757 = vunpack.c.l.b16 %v1741
    %v1758 = vunpack.c.l.b16 %v1742
    %v1759 = vpack.c.b16 %v1752, %v1751
    %v1760 = vpack.c.b16 %v1754, %v1753
    %v1761 = vpack.c.b16 %v1756, %v1755
    %v1762 = vpack.c.b16 %v1758, %v1757
    %v1764 = vsel %vm291, %v1759, 0
    %v1767 = vsel %vm291, %v1760, 0
    %v1770 = vsel %vm291, %v1761, 0
    %v1773 = vsel %vm291, %v1762, 0
    %1775 = vmatprep.subr.bf16.mxu0 0
    %1776 = vmatpush1.bf16.msra.mxu0 %v259
    %1777 = vmatprep.subr.bf16.mxu0 0
    %1778 = vmatpush1.bf16.msra.mxu0 %v260
    %1779 = vmatprep.subr.bf16.mxu0 0
    %1780 = vmatpush1.bf16.msra.mxu0 %v261
    %1781 = vmatprep.subr.bf16.mxu0 0
    %1782 = vmatpush1.bf16.msra.mxu0 %v262
    %1783 = vmatprep.subr.bf16.mxu0 0
    %1784 = vmatpush1.bf16.msra.mxu0 0
    %1785 = vmatprep.subr.bf16.mxu0 0
    %1786 = vmatpush1.bf16.msra.mxu0 0
    %1787 = vmatprep.subr.bf16.mxu0 0
    %1788 = vmatpush1.bf16.msra.mxu0 0
    %1789 = vmatprep.subr.bf16.mxu0 0
    %1790 = vmatpush1.bf16.msra.mxu0 0
    %1791 = vmatprep.subr.bf16.mxu0 0
    %1792 = vmatpush1.bf16.msra.mxu0 0
    %1793 = vmatprep.subr.bf16.mxu0 0
    %1794 = vmatpush1.bf16.msra.mxu0 0
    %1795 = vmatprep.subr.bf16.mxu0 0
    %1796 = vmatpush1.bf16.msra.mxu0 0
    %1797 = vmatprep.subr.bf16.mxu0 0
    %1798 = vmatpush1.bf16.msra.mxu0 0
    %1799 = vmatprep.subr.bf16.mxu0 0
    %1800 = vmatpush1.bf16.msra.mxu0 0
    %1801 = vmatprep.subr.bf16.mxu0 0
    %1802 = vmatpush1.bf16.msra.mxu0 0
    %1803 = vmatprep.subr.bf16.mxu0 0
    %1804 = vmatpush1.bf16.msra.mxu0 0
    %1805 = vmatprep.subr.bf16.mxu0 0
    %1806 = vmatpush1.bf16.msra.mxu0 0
    %1807 = vmatprep.mubr.bf16.mxu0 0
    %1808 = vmatmul.mubr.bf16.gmra.mrb[0].mxu0 %v1764
    %v1809 = vpop.f32.mrb[0].mxu0
    %v1810 = vadd.f32 0.0, %v1809
    %v1811 = vpop.f32.mrb[0].mxu0
    %v1812 = vpop.f32.mrb[0].mxu0
    %v1813 = vadd.f32 0.0, %v1812
    %v1814 = vpop.f32.mrb[0].mxu0
    %1815 = vmatprep.mubr.bf16.mxu0 0
    %1816 = vmatmul.mubr.bf16.gmra.mrb[0].mxu0 %v1767
    %v1817 = vpop.f32.mrb[0].mxu0
    %v1818 = vadd.f32 0.0, %v1817
    %v1819 = vpop.f32.mrb[0].mxu0
    %v1820 = vpop.f32.mrb[0].mxu0
    %v1821 = vadd.f32 0.0, %v1820
    %v1822 = vpop.f32.mrb[0].mxu0
    %1823 = vmatprep.mubr.bf16.mxu0 0
    %1824 = vmatmul.mubr.bf16.gmra.mrb[0].mxu0 %v1770
    %v1825 = vpop.f32.mrb[0].mxu0
    %v1826 = vadd.f32 0.0, %v1825
    %v1827 = vpop.f32.mrb[0].mxu0
    %v1828 = vpop.f32.mrb[0].mxu0
    %v1829 = vadd.f32 0.0, %v1828
    %v1830 = vpop.f32.mrb[0].mxu0
    %1831 = vmatprep.mubr.bf16.mxu0 0
    %1832 = vmatmul.mubr.bf16.gmra.mrb[0].mxu0 %v1773
    %v1833 = vpop.f32.mrb[0].mxu0
    %v1834 = vadd.f32 0.0, %v1833
    %v1835 = vpop.f32.mrb[0].mxu0
    %v1836 = vpop.f32.mrb[0].mxu0
    %v1837 = vadd.f32 0.0, %v1836
    %v1838 = vpop.f32.mrb[0].mxu0
    %1839 = vdwg.mxu0
    %s1840 = scalar_lea.vmem [#allocation5], 384
    %v1841 = vld [vmem:[%s1840] sm:$0xf]
    %v1842 = vld [vmem:[%s1840 + $0x4] sm:$0xf]
    %v1843 = vld [vmem:[%s1840 + $0x8] sm:$0xf]
    %v1844 = vld [vmem:[%s1840 + $0xc] sm:$0xf]
    %v1845 = vld [vmem:[%s1840 + $0x10] sm:$0xf]
    %v1846 = vld [vmem:[%s1840 + $0x14] sm:$0xf]
    %v1847 = vld [vmem:[%s1840 + $0x18] sm:$0xf]
    %v1848 = vld [vmem:[%s1840 + $0x1c] sm:$0xf]
    %v1849 = vld [vmem:[%s1840 + $0x20] sm:$0xf]
    %v1850 = vld [vmem:[%s1840 + $0x24] sm:$0xf]
    %v1851 = vld [vmem:[%s1840 + $0x28] sm:$0xf]
    %v1852 = vld [vmem:[%s1840 + $0x2c] sm:$0xf]
    %v1853 = vld [vmem:[%s1840 + $0x30] sm:$0xf]
    %v1854 = vld [vmem:[%s1840 + $0x34] sm:$0xf]
    %v1855 = vld [vmem:[%s1840 + $0x38] sm:$0xf]
    %v1856 = vld [vmem:[%s1840 + $0x3c] sm:$0xf]
    %v1857 = vpack.c.bf16 %v1813, %v1810
    %v1858 = vpack.c.bf16 %v1821, %v1818
    %v1859 = vpack.c.bf16 %v1829, %v1826
    %v1860 = vpack.c.bf16 %v1837, %v1834
    %v1877 = vunpack.c.l.b16 %v1841
    %v1878 = vunpack.c.l.b16 %v1842
    %v1879 = vunpack.c.l.b16 %v1843
    %v1880 = vunpack.c.l.b16 %v1844
    %v1881 = vunpack.c.l.b16 %v1845
    %v1882 = vunpack.c.l.b16 %v1846
    %v1883 = vunpack.c.l.b16 %v1847
    %v1884 = vunpack.c.l.b16 %v1848
    %v1885 = vunpack.c.l.b16 %v1849
    %v1886 = vunpack.c.l.b16 %v1850
    %v1887 = vunpack.c.l.b16 %v1851
    %v1888 = vunpack.c.l.b16 %v1852
    %v1889 = vunpack.c.l.b16 %v1853
    %v1890 = vunpack.c.l.b16 %v1854
    %v1891 = vunpack.c.l.b16 %v1855
    %v1892 = vunpack.c.l.b16 %v1856
    %v1893 = vpack.c.b16 %v1878, %v1877
    %v1894 = vpack.c.b16 %v1880, %v1879
    %v1895 = vpack.c.b16 %v1882, %v1881
    %v1896 = vpack.c.b16 %v1884, %v1883
    %v1897 = vpack.c.b16 %v1886, %v1885
    %v1898 = vpack.c.b16 %v1888, %v1887
    %v1899 = vpack.c.b16 %v1890, %v1889
    %v1900 = vpack.c.b16 %v1892, %v1891
    %1909 = vmatprep.subr.bf16.mxu0 0
    %1910 = vmatpush1.bf16.msra.mxu0 %v1893
    %1911 = vmatprep.subr.bf16.mxu0 0
    %1912 = vmatpush1.bf16.msra.mxu0 %v1894
    %1913 = vmatprep.subr.bf16.mxu0 0
    %1914 = vmatpush1.bf16.msra.mxu0 %v1895
    %1915 = vmatprep.subr.bf16.mxu0 0
    %1916 = vmatpush1.bf16.msra.mxu0 %v1896
    %1917 = vmatprep.subr.bf16.mxu0 0
    %1918 = vmatpush1.bf16.msra.mxu0 %v1897
    %1919 = vmatprep.subr.bf16.mxu0 0
    %1920 = vmatpush1.bf16.msra.mxu0 %v1898
    %1921 = vmatprep.subr.bf16.mxu0 0
    %1922 = vmatpush1.bf16.msra.mxu0 %v1899
    %1923 = vmatprep.subr.bf16.mxu0 0
    %1924 = vmatpush1.bf16.msra.mxu0 %v1900
    %1925 = vmatprep.subr.bf16.mxu0 0
    %1926 = vmatpush1.bf16.msra.mxu0 0
    %1927 = vmatprep.subr.bf16.mxu0 0
    %1928 = vmatpush1.bf16.msra.mxu0 0
    %1929 = vmatprep.subr.bf16.mxu0 0
    %1930 = vmatpush1.bf16.msra.mxu0 0
    %1931 = vmatprep.subr.bf16.mxu0 0
    %1932 = vmatpush1.bf16.msra.mxu0 0
    %1933 = vmatprep.subr.bf16.mxu0 0
    %1934 = vmatpush1.bf16.msra.mxu0 0
    %1935 = vmatprep.subr.bf16.mxu0 0
    %1936 = vmatpush1.bf16.msra.mxu0 0
    %1937 = vmatprep.subr.bf16.mxu0 0
    %1938 = vmatpush1.bf16.msra.mxu0 0
    %1939 = vmatprep.subr.bf16.mxu0 0
    %1940 = vmatpush1.bf16.msra.mxu0 0
    %1941 = vmatprep.mubr.bf16.mxu0 0
    %1942 = vmatmul.mubr.bf16.gmra.mrb[0].mxu0 %v1857
    %v1943 = vpop.f32.mrb[0].mxu0
    %v1944 = vadd.f32 0.0, %v1943
    %v1945 = vpop.f32.mrb[0].mxu0
    %v1946 = vpop.f32.mrb[0].mxu0
    %v1947 = vadd.f32 0.0, %v1946
    %v1948 = vpop.f32.mrb[0].mxu0
    %1949 = vmatprep.mubr.bf16.mxu0 0
    %1950 = vmatmul.mubr.bf16.gmra.mrb[0].mxu0 %v1858
    %v1951 = vpop.f32.mrb[0].mxu0
    %v1952 = vadd.f32 0.0, %v1951
    %v1953 = vpop.f32.mrb[0].mxu0
    %v1954 = vpop.f32.mrb[0].mxu0
    %v1955 = vadd.f32 0.0, %v1954
    %v1956 = vpop.f32.mrb[0].mxu0
    %1957 = vmatprep.mubr.bf16.mxu0 0
    %1958 = vmatmul.mubr.bf16.gmra.mrb[0].mxu0 %v1859
    %v1959 = vpop.f32.mrb[0].mxu0
    %v1960 = vadd.f32 0.0, %v1959
    %v1961 = vpop.f32.mrb[0].mxu0
    %v1962 = vpop.f32.mrb[0].mxu0
    %v1963 = vadd.f32 0.0, %v1962
    %v1964 = vpop.f32.mrb[0].mxu0
    %1965 = vmatprep.mubr.bf16.mxu0 0
    %1966 = vmatmul.mubr.bf16.gmra.mrb[0].mxu0 %v1860
    %v1967 = vpop.f32.mrb[0].mxu0
    %v1968 = vadd.f32 0.0, %v1967
    %v1969 = vpop.f32.mrb[0].mxu0
    %v1970 = vpop.f32.mrb[0].mxu0
    %v1971 = vadd.f32 0.0, %v1970
    %v1972 = vpop.f32.mrb[0].mxu0
    %1973 = vdwg.mxu0
    %v1974 = vadd.f32 %v1726, %v1944
    %v1975 = vadd.f32 %v1727, %v1947
    %v1976 = vadd.f32 %v1728, %v1952
    %v1977 = vadd.f32 %v1729, %v1955
    %v1978 = vadd.f32 %v1730, %v1960
    %v1979 = vadd.f32 %v1731, %v1963
    %v1980 = vadd.f32 %v1732, %v1968
    %v1981 = vadd.f32 %v1733, %v1971
    %s1982 = scalar_lea.vmem [#allocation3], 224
    %v1983 = vld [vmem:[%s1982] sm:$0xf]
    %v1984 = vld [vmem:[%s1982 + $0x4] sm:$0xf]
    %v1985 = vld [vmem:[%s1982 + $0x8] sm:$0xf]
    %v1986 = vld [vmem:[%s1982 + $0xc] sm:$0xf]
    %v1987 = vld [vmem:[%s1982 + $0x10] sm:$0xf]
    %v1988 = vld [vmem:[%s1982 + $0x14] sm:$0xf]
    %v1989 = vld [vmem:[%s1982 + $0x18] sm:$0xf]
    %v1990 = vld [vmem:[%s1982 + $0x1c] sm:$0xf]
    %v1999 = vunpack.c.l.b16 %v1983
    %v2000 = vunpack.c.l.b16 %v1984
    %v2001 = vunpack.c.l.b16 %v1985
    %v2002 = vunpack.c.l.b16 %v1986
    %v2003 = vunpack.c.l.b16 %v1987
    %v2004 = vunpack.c.l.b16 %v1988
    %v2005 = vunpack.c.l.b16 %v1989
    %v2006 = vunpack.c.l.b16 %v1990
    %v2007 = vpack.c.b16 %v2000, %v1999
    %v2008 = vpack.c.b16 %v2002, %v2001
    %v2009 = vpack.c.b16 %v2004, %v2003
    %v2010 = vpack.c.b16 %v2006, %v2005
    %v2012 = vsel %vm291, %v2007, 0
    %v2015 = vsel %vm291, %v2008, 0
    %v2018 = vsel %vm291, %v2009, 0
    %v2021 = vsel %vm291, %v2010, 0
    %2023 = vmatprep.subr.bf16.mxu0 0
    %2024 = vmatpush1.bf16.msra.mxu0 %v259
    %2025 = vmatprep.subr.bf16.mxu0 0
    %2026 = vmatpush1.bf16.msra.mxu0 %v260
    %2027 = vmatprep.subr.bf16.mxu0 0
    %2028 = vmatpush1.bf16.msra.mxu0 %v261
    %2029 = vmatprep.subr.bf16.mxu0 0
    %2030 = vmatpush1.bf16.msra.mxu0 %v262
    %2031 = vmatprep.subr.bf16.mxu0 0
    %2032 = vmatpush1.bf16.msra.mxu0 0
    %2033 = vmatprep.subr.bf16.mxu0 0
    %2034 = vmatpush1.bf16.msra.mxu0 0
    %2035 = vmatprep.subr.bf16.mxu0 0
    %2036 = vmatpush1.bf16.msra.mxu0 0
    %2037 = vmatprep.subr.bf16.mxu0 0
    %2038 = vmatpush1.bf16.msra.mxu0 0
    %2039 = vmatprep.subr.bf16.mxu0 0
    %2040 = vmatpush1.bf16.msra.mxu0 0
    %2041 = vmatprep.subr.bf16.mxu0 0
    %2042 = vmatpush1.bf16.msra.mxu0 0
    %2043 = vmatprep.subr.bf16.mxu0 0
    %2044 = vmatpush1.bf16.msra.mxu0 0
    %2045 = vmatprep.subr.bf16.mxu0 0
    %2046 = vmatpush1.bf16.msra.mxu0 0
    %2047 = vmatprep.subr.bf16.mxu0 0
    %2048 = vmatpush1.bf16.msra.mxu0 0
    %2049 = vmatprep.subr.bf16.mxu0 0
    %2050 = vmatpush1.bf16.msra.mxu0 0
    %2051 = vmatprep.subr.bf16.mxu0 0
    %2052 = vmatpush1.bf16.msra.mxu0 0
    %2053 = vmatprep.subr.bf16.mxu0 0
    %2054 = vmatpush1.bf16.msra.mxu0 0
    %2055 = vmatprep.mubr.bf16.mxu0 0
    %2056 = vmatmul.mubr.bf16.gmra.mrb[0].mxu0 %v2012
    %v2057 = vpop.f32.mrb[0].mxu0
    %v2058 = vadd.f32 0.0, %v2057
    %v2059 = vpop.f32.mrb[0].mxu0
    %v2060 = vpop.f32.mrb[0].mxu0
    %v2061 = vadd.f32 0.0, %v2060
    %v2062 = vpop.f32.mrb[0].mxu0
    %2063 = vmatprep.mubr.bf16.mxu0 0
    %2064 = vmatmul.mubr.bf16.gmra.mrb[0].mxu0 %v2015
    %v2065 = vpop.f32.mrb[0].mxu0
    %v2066 = vadd.f32 0.0, %v2065
    %v2067 = vpop.f32.mrb[0].mxu0
    %v2068 = vpop.f32.mrb[0].mxu0
    %v2069 = vadd.f32 0.0, %v2068
    %v2070 = vpop.f32.mrb[0].mxu0
    %2071 = vmatprep.mubr.bf16.mxu0 0
    %2072 = vmatmul.mubr.bf16.gmra.mrb[0].mxu0 %v2018
    %v2073 = vpop.f32.mrb[0].mxu0
    %v2074 = vadd.f32 0.0, %v2073
    %v2075 = vpop.f32.mrb[0].mxu0
    %v2076 = vpop.f32.mrb[0].mxu0
    %v2077 = vadd.f32 0.0, %v2076
    %v2078 = vpop.f32.mrb[0].mxu0
    %2079 = vmatprep.mubr.bf16.mxu0 0
    %2080 = vmatmul.mubr.bf16.gmra.mrb[0].mxu0 %v2021
    %v2081 = vpop.f32.mrb[0].mxu0
    %v2082 = vadd.f32 0.0, %v2081
    %v2083 = vpop.f32.mrb[0].mxu0
    %v2084 = vpop.f32.mrb[0].mxu0
    %v2085 = vadd.f32 0.0, %v2084
    %v2086 = vpop.f32.mrb[0].mxu0
    %2087 = vdwg.mxu0
    %s2088 = scalar_lea.vmem [#allocation5], 448
    %v2089 = vld [vmem:[%s2088] sm:$0xf]
    %v2090 = vld [vmem:[%s2088 + $0x4] sm:$0xf]
    %v2091 = vld [vmem:[%s2088 + $0x8] sm:$0xf]
    %v2092 = vld [vmem:[%s2088 + $0xc] sm:$0xf]
    %v2093 = vld [vmem:[%s2088 + $0x10] sm:$0xf]
    %v2094 = vld [vmem:[%s2088 + $0x14] sm:$0xf]
    %v2095 = vld [vmem:[%s2088 + $0x18] sm:$0xf]
    %v2096 = vld [vmem:[%s2088 + $0x1c] sm:$0xf]
    %v2097 = vld [vmem:[%s2088 + $0x20] sm:$0xf]
    %v2098 = vld [vmem:[%s2088 + $0x24] sm:$0xf]
    %v2099 = vld [vmem:[%s2088 + $0x28] sm:$0xf]
    %v2100 = vld [vmem:[%s2088 + $0x2c] sm:$0xf]
    %v2101 = vld [vmem:[%s2088 + $0x30] sm:$0xf]
    %v2102 = vld [vmem:[%s2088 + $0x34] sm:$0xf]
    %v2103 = vld [vmem:[%s2088 + $0x38] sm:$0xf]
    %v2104 = vld [vmem:[%s2088 + $0x3c] sm:$0xf]
    %v2105 = vpack.c.bf16 %v2061, %v2058
    %v2106 = vpack.c.bf16 %v2069, %v2066
    %v2107 = vpack.c.bf16 %v2077, %v2074
    %v2108 = vpack.c.bf16 %v2085, %v2082
    %v2125 = vunpack.c.l.b16 %v2089
    %v2126 = vunpack.c.l.b16 %v2090
    %v2127 = vunpack.c.l.b16 %v2091
    %v2128 = vunpack.c.l.b16 %v2092
    %v2129 = vunpack.c.l.b16 %v2093
    %v2130 = vunpack.c.l.b16 %v2094
    %v2131 = vunpack.c.l.b16 %v2095
    %v2132 = vunpack.c.l.b16 %v2096
    %v2133 = vunpack.c.l.b16 %v2097
    %v2134 = vunpack.c.l.b16 %v2098
    %v2135 = vunpack.c.l.b16 %v2099
    %v2136 = vunpack.c.l.b16 %v2100
    %v2137 = vunpack.c.l.b16 %v2101
    %v2138 = vunpack.c.l.b16 %v2102
    %v2139 = vunpack.c.l.b16 %v2103
    %v2140 = vunpack.c.l.b16 %v2104
    %v2141 = vpack.c.b16 %v2126, %v2125
    %v2142 = vpack.c.b16 %v2128, %v2127
    %v2143 = vpack.c.b16 %v2130, %v2129
    %v2144 = vpack.c.b16 %v2132, %v2131
    %v2145 = vpack.c.b16 %v2134, %v2133
    %v2146 = vpack.c.b16 %v2136, %v2135
    %v2147 = vpack.c.b16 %v2138, %v2137
    %v2148 = vpack.c.b16 %v2140, %v2139
    %2157 = vmatprep.subr.bf16.mxu0 0
    %2158 = vmatpush1.bf16.msra.mxu0 %v2141
    %2159 = vmatprep.subr.bf16.mxu0 0
    %2160 = vmatpush1.bf16.msra.mxu0 %v2142
    %2161 = vmatprep.subr.bf16.mxu0 0
    %2162 = vmatpush1.bf16.msra.mxu0 %v2143
    %2163 = vmatprep.subr.bf16.mxu0 0
    %2164 = vmatpush1.bf16.msra.mxu0 %v2144
    %2165 = vmatprep.subr.bf16.mxu0 0
    %2166 = vmatpush1.bf16.msra.mxu0 %v2145
    %2167 = vmatprep.subr.bf16.mxu0 0
    %2168 = vmatpush1.bf16.msra.mxu0 %v2146
    %2169 = vmatprep.subr.bf16.mxu0 0
    %2170 = vmatpush1.bf16.msra.mxu0 %v2147
    %2171 = vmatprep.subr.bf16.mxu0 0
    %2172 = vmatpush1.bf16.msra.mxu0 %v2148
    %2173 = vmatprep.subr.bf16.mxu0 0
    %2174 = vmatpush1.bf16.msra.mxu0 0
    %2175 = vmatprep.subr.bf16.mxu0 0
    %2176 = vmatpush1.bf16.msra.mxu0 0
    %2177 = vmatprep.subr.bf16.mxu0 0
    %2178 = vmatpush1.bf16.msra.mxu0 0
    %2179 = vmatprep.subr.bf16.mxu0 0
    %2180 = vmatpush1.bf16.msra.mxu0 0
    %2181 = vmatprep.subr.bf16.mxu0 0
    %2182 = vmatpush1.bf16.msra.mxu0 0
    %2183 = vmatprep.subr.bf16.mxu0 0
    %2184 = vmatpush1.bf16.msra.mxu0 0
    %2185 = vmatprep.subr.bf16.mxu0 0
    %2186 = vmatpush1.bf16.msra.mxu0 0
    %2187 = vmatprep.subr.bf16.mxu0 0
    %2188 = vmatpush1.bf16.msra.mxu0 0
    %2189 = vmatprep.mubr.bf16.mxu0 0
    %2190 = vmatmul.mubr.bf16.gmra.mrb[0].mxu0 %v2105
    %v2191 = vpop.f32.mrb[0].mxu0
    %v2192 = vadd.f32 0.0, %v2191
    %v2193 = vpop.f32.mrb[0].mxu0
    %v2194 = vpop.f32.mrb[0].mxu0
    %v2195 = vadd.f32 0.0, %v2194
    %v2196 = vpop.f32.mrb[0].mxu0
    %2197 = vmatprep.mubr.bf16.mxu0 0
    %2198 = vmatmul.mubr.bf16.gmra.mrb[0].mxu0 %v2106
    %v2199 = vpop.f32.mrb[0].mxu0
    %v2200 = vadd.f32 0.0, %v2199
    %v2201 = vpop.f32.mrb[0].mxu0
    %v2202 = vpop.f32.mrb[0].mxu0
    %v2203 = vadd.f32 0.0, %v2202
    %v2204 = vpop.f32.mrb[0].mxu0
    %2205 = vmatprep.mubr.bf16.mxu0 0
    %2206 = vmatmul.mubr.bf16.gmra.mrb[0].mxu0 %v2107
    %v2207 = vpop.f32.mrb[0].mxu0
    %v2208 = vadd.f32 0.0, %v2207
    %v2209 = vpop.f32.mrb[0].mxu0
    %v2210 = vpop.f32.mrb[0].mxu0
    %v2211 = vadd.f32 0.0, %v2210
    %v2212 = vpop.f32.mrb[0].mxu0
    %2213 = vmatprep.mubr.bf16.mxu0 0
    %2214 = vmatmul.mubr.bf16.gmra.mrb[0].mxu0 %v2108
    %v2215 = vpop.f32.mrb[0].mxu0
    %v2216 = vadd.f32 0.0, %v2215
    %v2217 = vpop.f32.mrb[0].mxu0
    %v2218 = vpop.f32.mrb[0].mxu0
    %v2219 = vadd.f32 0.0, %v2218
    %v2220 = vpop.f32.mrb[0].mxu0
    %2221 = vdwg.mxu0
    %v2222 = vadd.f32 %v1974, %v2192
    %v2223 = vadd.f32 %v1975, %v2195
    %v2224 = vadd.f32 %v1976, %v2200
    %v2225 = vadd.f32 %v1977, %v2203
    %v2226 = vadd.f32 %v1978, %v2208
    %v2227 = vadd.f32 %v1979, %v2211
    %v2228 = vadd.f32 %v1980, %v2216
    %v2229 = vadd.f32 %v1981, %v2219
    %s2230 = scalar_lea.vmem [#allocation3], 256
    %v2231 = vld [vmem:[%s2230] sm:$0xf]
    %v2232 = vld [vmem:[%s2230 + $0x4] sm:$0xf]
    %v2233 = vld [vmem:[%s2230 + $0x8] sm:$0xf]
    %v2234 = vld [vmem:[%s2230 + $0xc] sm:$0xf]
    %v2235 = vld [vmem:[%s2230 + $0x10] sm:$0xf]
    %v2236 = vld [vmem:[%s2230 + $0x14] sm:$0xf]
    %v2237 = vld [vmem:[%s2230 + $0x18] sm:$0xf]
    %v2238 = vld [vmem:[%s2230 + $0x1c] sm:$0xf]
    %v2247 = vunpack.c.l.b16 %v2231
    %v2248 = vunpack.c.l.b16 %v2232
    %v2249 = vunpack.c.l.b16 %v2233
    %v2250 = vunpack.c.l.b16 %v2234
    %v2251 = vunpack.c.l.b16 %v2235
    %v2252 = vunpack.c.l.b16 %v2236
    %v2253 = vunpack.c.l.b16 %v2237
    %v2254 = vunpack.c.l.b16 %v2238
    %v2255 = vpack.c.b16 %v2248, %v2247
    %v2256 = vpack.c.b16 %v2250, %v2249
    %v2257 = vpack.c.b16 %v2252, %v2251
    %v2258 = vpack.c.b16 %v2254, %v2253
    %v2260 = vsel %vm291, %v2255, 0
    %v2263 = vsel %vm291, %v2256, 0
    %v2266 = vsel %vm291, %v2257, 0
    %v2269 = vsel %vm291, %v2258, 0
    %2271 = vmatprep.subr.bf16.mxu0 0
    %2272 = vmatpush1.bf16.msra.mxu0 %v259
    %2273 = vmatprep.subr.bf16.mxu0 0
    %2274 = vmatpush1.bf16.msra.mxu0 %v260
    %2275 = vmatprep.subr.bf16.mxu0 0
    %2276 = vmatpush1.bf16.msra.mxu0 %v261
    %2277 = vmatprep.subr.bf16.mxu0 0
    %2278 = vmatpush1.bf16.msra.mxu0 %v262
    %2279 = vmatprep.subr.bf16.mxu0 0
    %2280 = vmatpush1.bf16.msra.mxu0 0
    %2281 = vmatprep.subr.bf16.mxu0 0
    %2282 = vmatpush1.bf16.msra.mxu0 0
    %2283 = vmatprep.subr.bf16.mxu0 0
    %2284 = vmatpush1.bf16.msra.mxu0 0
    %2285 = vmatprep.subr.bf16.mxu0 0
    %2286 = vmatpush1.bf16.msra.mxu0 0
    %2287 = vmatprep.subr.bf16.mxu0 0
    %2288 = vmatpush1.bf16.msra.mxu0 0
    %2289 = vmatprep.subr.bf16.mxu0 0
    %2290 = vmatpush1.bf16.msra.mxu0 0
    %2291 = vmatprep.subr.bf16.mxu0 0
    %2292 = vmatpush1.bf16.msra.mxu0 0
    %2293 = vmatprep.subr.bf16.mxu0 0
    %2294 = vmatpush1.bf16.msra.mxu0 0
    %2295 = vmatprep.subr.bf16.mxu0 0
    %2296 = vmatpush1.bf16.msra.mxu0 0
    %2297 = vmatprep.subr.bf16.mxu0 0
    %2298 = vmatpush1.bf16.msra.mxu0 0
    %2299 = vmatprep.subr.bf16.mxu0 0
    %2300 = vmatpush1.bf16.msra.mxu0 0
    %2301 = vmatprep.subr.bf16.mxu0 0
    %2302 = vmatpush1.bf16.msra.mxu0 0
    %2303 = vmatprep.mubr.bf16.mxu0 0
    %2304 = vmatmul.mubr.bf16.gmra.mrb[0].mxu0 %v2260
    %v2305 = vpop.f32.mrb[0].mxu0
    %v2306 = vadd.f32 0.0, %v2305
    %v2307 = vpop.f32.mrb[0].mxu0
    %v2308 = vpop.f32.mrb[0].mxu0
    %v2309 = vadd.f32 0.0, %v2308
    %v2310 = vpop.f32.mrb[0].mxu0
    %2311 = vmatprep.mubr.bf16.mxu0 0
    %2312 = vmatmul.mubr.bf16.gmra.mrb[0].mxu0 %v2263
    %v2313 = vpop.f32.mrb[0].mxu0
    %v2314 = vadd.f32 0.0, %v2313
    %v2315 = vpop.f32.mrb[0].mxu0
    %v2316 = vpop.f32.mrb[0].mxu0
    %v2317 = vadd.f32 0.0, %v2316
    %v2318 = vpop.f32.mrb[0].mxu0
    %2319 = vmatprep.mubr.bf16.mxu0 0
    %2320 = vmatmul.mubr.bf16.gmra.mrb[0].mxu0 %v2266
    %v2321 = vpop.f32.mrb[0].mxu0
    %v2322 = vadd.f32 0.0, %v2321
    %v2323 = vpop.f32.mrb[0].mxu0
    %v2324 = vpop.f32.mrb[0].mxu0
    %v2325 = vadd.f32 0.0, %v2324
    %v2326 = vpop.f32.mrb[0].mxu0
    %2327 = vmatprep.mubr.bf16.mxu0 0
    %2328 = vmatmul.mubr.bf16.gmra.mrb[0].mxu0 %v2269
    %v2329 = vpop.f32.mrb[0].mxu0
    %v2330 = vadd.f32 0.0, %v2329
    %v2331 = vpop.f32.mrb[0].mxu0
    %v2332 = vpop.f32.mrb[0].mxu0
    %v2333 = vadd.f32 0.0, %v2332
    %v2334 = vpop.f32.mrb[0].mxu0
    %2335 = vdwg.mxu0
    %s2336 = scalar_lea.vmem [#allocation5], 512
    %v2337 = vld [vmem:[%s2336] sm:$0xf]
    %v2338 = vld [vmem:[%s2336 + $0x4] sm:$0xf]
    %v2339 = vld [vmem:[%s2336 + $0x8] sm:$0xf]
    %v2340 = vld [vmem:[%s2336 + $0xc] sm:$0xf]
    %v2341 = vld [vmem:[%s2336 + $0x10] sm:$0xf]
    %v2342 = vld [vmem:[%s2336 + $0x14] sm:$0xf]
    %v2343 = vld [vmem:[%s2336 + $0x18] sm:$0xf]
    %v2344 = vld [vmem:[%s2336 + $0x1c] sm:$0xf]
    %v2345 = vld [vmem:[%s2336 + $0x20] sm:$0xf]
    %v2346 = vld [vmem:[%s2336 + $0x24] sm:$0xf]
    %v2347 = vld [vmem:[%s2336 + $0x28] sm:$0xf]
    %v2348 = vld [vmem:[%s2336 + $0x2c] sm:$0xf]
    %v2349 = vld [vmem:[%s2336 + $0x30] sm:$0xf]
    %v2350 = vld [vmem:[%s2336 + $0x34] sm:$0xf]
    %v2351 = vld [vmem:[%s2336 + $0x38] sm:$0xf]
    %v2352 = vld [vmem:[%s2336 + $0x3c] sm:$0xf]
    %v2353 = vpack.c.bf16 %v2309, %v2306
    %v2354 = vpack.c.bf16 %v2317, %v2314
    %v2355 = vpack.c.bf16 %v2325, %v2322
    %v2356 = vpack.c.bf16 %v2333, %v2330
    %v2373 = vunpack.c.l.b16 %v2337
    %v2374 = vunpack.c.l.b16 %v2338
    %v2375 = vunpack.c.l.b16 %v2339
    %v2376 = vunpack.c.l.b16 %v2340
    %v2377 = vunpack.c.l.b16 %v2341
    %v2378 = vunpack.c.l.b16 %v2342
    %v2379 = vunpack.c.l.b16 %v2343
    %v2380 = vunpack.c.l.b16 %v2344
    %v2381 = vunpack.c.l.b16 %v2345
    %v2382 = vunpack.c.l.b16 %v2346
    %v2383 = vunpack.c.l.b16 %v2347
    %v2384 = vunpack.c.l.b16 %v2348
    %v2385 = vunpack.c.l.b16 %v2349
    %v2386 = vunpack.c.l.b16 %v2350
    %v2387 = vunpack.c.l.b16 %v2351
    %v2388 = vunpack.c.l.b16 %v2352
    %v2389 = vpack.c.b16 %v2374, %v2373
    %v2390 = vpack.c.b16 %v2376, %v2375
    %v2391 = vpack.c.b16 %v2378, %v2377
    %v2392 = vpack.c.b16 %v2380, %v2379
    %v2393 = vpack.c.b16 %v2382, %v2381
    %v2394 = vpack.c.b16 %v2384, %v2383
    %v2395 = vpack.c.b16 %v2386, %v2385
    %v2396 = vpack.c.b16 %v2388, %v2387
    %2405 = vmatprep.subr.bf16.mxu0 0
    %2406 = vmatpush1.bf16.msra.mxu0 %v2389
    %2407 = vmatprep.subr.bf16.mxu0 0
    %2408 = vmatpush1.bf16.msra.mxu0 %v2390
    %2409 = vmatprep.subr.bf16.mxu0 0
    %2410 = vmatpush1.bf16.msra.mxu0 %v2391
    %2411 = vmatprep.subr.bf16.mxu0 0
    %2412 = vmatpush1.bf16.msra.mxu0 %v2392
    %2413 = vmatprep.subr.bf16.mxu0 0
    %2414 = vmatpush1.bf16.msra.mxu0 %v2393
    %2415 = vmatprep.subr.bf16.mxu0 0
    %2416 = vmatpush1.bf16.msra.mxu0 %v2394
    %2417 = vmatprep.subr.bf16.mxu0 0
    %2418 = vmatpush1.bf16.msra.mxu0 %v2395
    %2419 = vmatprep.subr.bf16.mxu0 0
    %2420 = vmatpush1.bf16.msra.mxu0 %v2396
    %2421 = vmatprep.subr.bf16.mxu0 0
    %2422 = vmatpush1.bf16.msra.mxu0 0
    %2423 = vmatprep.subr.bf16.mxu0 0
    %2424 = vmatpush1.bf16.msra.mxu0 0
    %2425 = vmatprep.subr.bf16.mxu0 0
    %2426 = vmatpush1.bf16.msra.mxu0 0
    %2427 = vmatprep.subr.bf16.mxu0 0
    %2428 = vmatpush1.bf16.msra.mxu0 0
    %2429 = vmatprep.subr.bf16.mxu0 0
    %2430 = vmatpush1.bf16.msra.mxu0 0
    %2431 = vmatprep.subr.bf16.mxu0 0
    %2432 = vmatpush1.bf16.msra.mxu0 0
    %2433 = vmatprep.subr.bf16.mxu0 0
    %2434 = vmatpush1.bf16.msra.mxu0 0
    %2435 = vmatprep.subr.bf16.mxu0 0
    %2436 = vmatpush1.bf16.msra.mxu0 0
    %2437 = vmatprep.mubr.bf16.mxu0 0
    %2438 = vmatmul.mubr.bf16.gmra.mrb[0].mxu0 %v2353
    %v2439 = vpop.f32.mrb[0].mxu0
    %v2440 = vadd.f32 0.0, %v2439
    %v2441 = vpop.f32.mrb[0].mxu0
    %v2442 = vpop.f32.mrb[0].mxu0
    %v2443 = vadd.f32 0.0, %v2442
    %v2444 = vpop.f32.mrb[0].mxu0
    %2445 = vmatprep.mubr.bf16.mxu0 0
    %2446 = vmatmul.mubr.bf16.gmra.mrb[0].mxu0 %v2354
    %v2447 = vpop.f32.mrb[0].mxu0
    %v2448 = vadd.f32 0.0, %v2447
    %v2449 = vpop.f32.mrb[0].mxu0
    %v2450 = vpop.f32.mrb[0].mxu0
    %v2451 = vadd.f32 0.0, %v2450
    %v2452 = vpop.f32.mrb[0].mxu0
    %2453 = vmatprep.mubr.bf16.mxu0 0
    %2454 = vmatmul.mubr.bf16.gmra.mrb[0].mxu0 %v2355
    %v2455 = vpop.f32.mrb[0].mxu0
    %v2456 = vadd.f32 0.0, %v2455
    %v2457 = vpop.f32.mrb[0].mxu0
    %v2458 = vpop.f32.mrb[0].mxu0
    %v2459 = vadd.f32 0.0, %v2458
    %v2460 = vpop.f32.mrb[0].mxu0
    %2461 = vmatprep.mubr.bf16.mxu0 0
    %2462 = vmatmul.mubr.bf16.gmra.mrb[0].mxu0 %v2356
    %v2463 = vpop.f32.mrb[0].mxu0
    %v2464 = vadd.f32 0.0, %v2463
    %v2465 = vpop.f32.mrb[0].mxu0
    %v2466 = vpop.f32.mrb[0].mxu0
    %v2467 = vadd.f32 0.0, %v2466
    %v2468 = vpop.f32.mrb[0].mxu0
    %2469 = vdwg.mxu0
    %v2470 = vadd.f32 %v2222, %v2440
    %v2471 = vadd.f32 %v2223, %v2443
    %v2472 = vadd.f32 %v2224, %v2448
    %v2473 = vadd.f32 %v2225, %v2451
    %v2474 = vadd.f32 %v2226, %v2456
    %v2475 = vadd.f32 %v2227, %v2459
    %v2476 = vadd.f32 %v2228, %v2464
    %v2477 = vadd.f32 %v2229, %v2467
    %v2478 = vld [vmem:[%s4] sm:$0xf]
    %v2479 = vld [vmem:[%s4 + $0x4] sm:$0xf]
    %v2480 = vld [vmem:[%s4 + $0x8] sm:$0xf]
    %v2481 = vld [vmem:[%s4 + $0xc] sm:$0xf]
    %v2482 = vld [vmem:[%s4 + $0x10] sm:$0xf]
    %v2483 = vld [vmem:[%s4 + $0x14] sm:$0xf]
    %v2484 = vld [vmem:[%s4 + $0x18] sm:$0xf]
    %v2485 = vld [vmem:[%s4 + $0x1c] sm:$0xf]
    %v2486 = vld [vmem:[%s6] sm:$0xf]
    %v2487 = vld [vmem:[%s6 + $0x4] sm:$0x1]
    %v2496 = vunpack.c.l.b16 %v2478
    %v2497 = vunpack.c.l.b16 %v2479
    %v2498 = vunpack.c.l.b16 %v2480
    %v2499 = vunpack.c.l.b16 %v2481
    %v2500 = vunpack.c.l.b16 %v2482
    %v2501 = vunpack.c.l.b16 %v2483
    %v2502 = vunpack.c.l.b16 %v2484
    %v2503 = vunpack.c.l.b16 %v2485
    %v2504 = vpack.c.b16 %v2497, %v2496
    %v2505 = vpack.c.b16 %v2499, %v2498
    %v2506 = vpack.c.b16 %v2501, %v2500
    %v2507 = vpack.c.b16 %v2503, %v2502
    %v2510 = vunpack.c.l.b16 %v2486
    %v2511 = vunpack.c.l.b16 %v2487
    %v2512 = vpack.c.b16 %v2511, %v2510
    %vm2513 = vcmask 72704
    %v2515 = vsel %vm2513, %v2504, 0
    %v2518 = vsel %vm2513, %v2505, 0
    %v2521 = vsel %vm2513, %v2506, 0
    %v2524 = vsel %vm2513, %v2507, 0
    %vm2526 = vcmask 1043456
    %vm2527 = vcmask 1044480
    %v2528 = vsel %vm2526, 4294967295, 65535
    %v2529 = vsel %vm2527, %v2528, 0
    %v2531 = vand.u32 %v2512, %v2529
    %2533 = vmatprep.subr.bf16.mxu0 0
    %2534 = vmatpush1.bf16.msra.mxu0 %v2531
    %2535 = vmatprep.subr.bf16.mxu0 0
    %2536 = vmatpush1.bf16.msra.mxu0 0
    %2537 = vmatprep.subr.bf16.mxu0 0
    %2538 = vmatpush1.bf16.msra.mxu0 0
    %2539 = vmatprep.subr.bf16.mxu0 0
    %2540 = vmatpush1.bf16.msra.mxu0 0
    %2541 = vmatprep.subr.bf16.mxu0 0
    %2542 = vmatpush1.bf16.msra.mxu0 0
    %2543 = vmatprep.subr.bf16.mxu0 0
    %2544 = vmatpush1.bf16.msra.mxu0 0
    %2545 = vmatprep.subr.bf16.mxu0 0
    %2546 = vmatpush1.bf16.msra.mxu0 0
    %2547 = vmatprep.subr.bf16.mxu0 0
    %2548 = vmatpush1.bf16.msra.mxu0 0
    %2549 = vmatprep.subr.bf16.mxu0 0
    %2550 = vmatpush1.bf16.msra.mxu0 0
    %2551 = vmatprep.subr.bf16.mxu0 0
    %2552 = vmatpush1.bf16.msra.mxu0 0
    %2553 = vmatprep.subr.bf16.mxu0 0
    %2554 = vmatpush1.bf16.msra.mxu0 0
    %2555 = vmatprep.subr.bf16.mxu0 0
    %2556 = vmatpush1.bf16.msra.mxu0 0
    %2557 = vmatprep.subr.bf16.mxu0 0
    %2558 = vmatpush1.bf16.msra.mxu0 0
    %2559 = vmatprep.subr.bf16.mxu0 0
    %2560 = vmatpush1.bf16.msra.mxu0 0
    %2561 = vmatprep.subr.bf16.mxu0 0
    %2562 = vmatpush1.bf16.msra.mxu0 0
    %2563 = vmatprep.subr.bf16.mxu0 0
    %2564 = vmatpush1.bf16.msra.mxu0 0
    %2565 = vmatprep.mubr.bf16.mxu0 0
    %2566 = vmatmul.mubr.bf16.gmra.mrb[0].mxu0 %v2515
    %v2567 = vpop.f32.mrb[0].mxu0
    %v2568 = vadd.f32 0.0, %v2567
    %v2569 = vpop.f32.mrb[0].mxu0
    %v2570 = vpop.f32.mrb[0].mxu0
    %v2571 = vadd.f32 0.0, %v2570
    %v2572 = vpop.f32.mrb[0].mxu0
    %2573 = vmatprep.mubr.bf16.mxu0 0
    %2574 = vmatmul.mubr.bf16.gmra.mrb[0].mxu0 %v2518
    %v2575 = vpop.f32.mrb[0].mxu0
    %v2576 = vadd.f32 0.0, %v2575
    %v2577 = vpop.f32.mrb[0].mxu0
    %v2578 = vpop.f32.mrb[0].mxu0
    %v2579 = vadd.f32 0.0, %v2578
    %v2580 = vpop.f32.mrb[0].mxu0
    %2581 = vmatprep.mubr.bf16.mxu0 0
    %2582 = vmatmul.mubr.bf16.gmra.mrb[0].mxu0 %v2521
    %v2583 = vpop.f32.mrb[0].mxu0
    %v2584 = vadd.f32 0.0, %v2583
    %v2585 = vpop.f32.mrb[0].mxu0
    %v2586 = vpop.f32.mrb[0].mxu0
    %v2587 = vadd.f32 0.0, %v2586
    %v2588 = vpop.f32.mrb[0].mxu0
    %2589 = vmatprep.mubr.bf16.mxu0 0
    %2590 = vmatmul.mubr.bf16.gmra.mrb[0].mxu0 %v2524
    %v2591 = vpop.f32.mrb[0].mxu0
    %v2592 = vadd.f32 0.0, %v2591
    %v2593 = vpop.f32.mrb[0].mxu0
    %v2594 = vpop.f32.mrb[0].mxu0
    %v2595 = vadd.f32 0.0, %v2594
    %v2596 = vpop.f32.mrb[0].mxu0
    %2597 = vdwg.mxu0
    %v2598 = vmul.f32 %v258, %v2568
    %v2599 = vmul.f32 %v258, %v2571
    %v2600 = vmul.f32 %v258, %v2576
    %v2601 = vmul.f32 %v258, %v2579
    %v2602 = vmul.f32 %v258, %v2584
    %v2603 = vmul.f32 %v258, %v2587
    %v2604 = vmul.f32 %v258, %v2592
    %v2605 = vmul.f32 %v258, %v2595
    %v2606 = vadd.f32 %v2470, %v2598
    %v2607 = vadd.f32 %v2471, %v2599
    %v2608 = vadd.f32 %v2472, %v2600
    %v2609 = vadd.f32 %v2473, %v2601
    %v2610 = vadd.f32 %v2474, %v2602
    %v2611 = vadd.f32 %v2475, %v2603
    %v2612 = vadd.f32 %v2476, %v2604
    %v2613 = vadd.f32 %v2477, %v2605
    %v2614 = vld [vmem:[%s7] sm:$0x1]
    %v2616 = vlaneseq
    %v2617 = vshrl.u32 %v2616, 7
    %v2618 = vsub.s32 0, %v2617
    %v2619 = vrot.slane %v2614, %v2618
    %v2621 = vadd.f32 %v2606, %v2619
    %v2622 = vadd.f32 %v2607, %v2619
    %v2623 = vadd.f32 %v2608, %v2619
    %v2624 = vadd.f32 %v2609, %v2619
    %v2625 = vadd.f32 %v2610, %v2619
    %v2626 = vadd.f32 %v2611, %v2619
    %v2627 = vadd.f32 %v2612, %v2619
    %v2628 = vadd.f32 %v2613, %v2619
    %v2629 = vmul.f32 %v2621, %v2621
    %v2630 = vmul.f32 %v2622, %v2622
    %v2631 = vmul.f32 %v2623, %v2623
    %v2632 = vmul.f32 %v2624, %v2624
    %v2633 = vmul.f32 %v2625, %v2625
    %v2634 = vmul.f32 %v2626, %v2626
    %v2635 = vmul.f32 %v2627, %v2627
    %v2636 = vmul.f32 %v2628, %v2628
    %2637 = vadd.xlane.f32.xlu0 %v2629
    %v2638 = vpop.xlane.xlu0 %2637
    %2639 = vadd.xlane.f32.xlu0 %v2630
    %v2640 = vpop.xlane.xlu0 %2639
    %2641 = vadd.xlane.f32.xlu0 %v2631
    %v2642 = vpop.xlane.xlu0 %2641
    %2643 = vadd.xlane.f32.xlu0 %v2632
    %v2644 = vpop.xlane.xlu0 %2643
    %2645 = vadd.xlane.f32.xlu0 %v2633
    %v2646 = vpop.xlane.xlu0 %2645
    %2647 = vadd.xlane.f32.xlu0 %v2634
    %v2648 = vpop.xlane.xlu0 %2647
    %2649 = vadd.xlane.f32.xlu0 %v2635
    %v2650 = vpop.xlane.xlu0 %2649
    %2651 = vadd.xlane.f32.xlu0 %v2636
    %v2652 = vpop.xlane.xlu0 %2651
    %v2653 = vrcp.pop 128.0
    %v2654 = vmul.f32 %v2638, %v2653
    %v2655 = vmul.f32 %v2640, %v2653
    %v2656 = vmul.f32 %v2642, %v2653
    %v2657 = vmul.f32 %v2644, %v2653
    %v2658 = vmul.f32 %v2646, %v2653
    %v2659 = vmul.f32 %v2648, %v2653
    %v2660 = vmul.f32 %v2650, %v2653
    %v2661 = vmul.f32 %v2652, %v2653
    %v2662 = vadd.f32 %v2654, 1e-08
    %v2663 = vadd.f32 %v2655, 1e-08
    %v2664 = vadd.f32 %v2656, 1e-08
    %v2665 = vadd.f32 %v2657, 1e-08
    %v2666 = vadd.f32 %v2658, 1e-08
    %v2667 = vadd.f32 %v2659, 1e-08
    %v2668 = vadd.f32 %v2660, 1e-08
    %v2669 = vadd.f32 %v2661, 1e-08
    %v2670 = vrsqrt.pop %v2662
    %v2671 = vrsqrt.pop %v2663
    %v2672 = vrsqrt.pop %v2664
    %v2673 = vrsqrt.pop %v2665
    %v2674 = vrsqrt.pop %v2666
    %v2675 = vrsqrt.pop %v2667
    %v2676 = vrsqrt.pop %v2668
    %v2677 = vrsqrt.pop %v2669
    %v2678 = vmul.f32 %v2621, %v2670
    %v2679 = vmul.f32 %v2622, %v2671
    %v2680 = vmul.f32 %v2623, %v2672
    %v2681 = vmul.f32 %v2624, %v2673
    %v2682 = vmul.f32 %v2625, %v2674
    %v2683 = vmul.f32 %v2626, %v2675
    %v2684 = vmul.f32 %v2627, %v2676
    %v2685 = vmul.f32 %v2628, %v2677
    %v2686 = vmul.f32 %v2678, 0.1
    %v2687 = vmul.f32 %v2679, 0.1
    %v2688 = vmul.f32 %v2680, 0.1
    %v2689 = vmul.f32 %v2681, 0.1
    %v2690 = vmul.f32 %v2682, 0.1
    %v2691 = vmul.f32 %v2683, 0.1
    %v2692 = vmul.f32 %v2684, 0.1
    %v2693 = vmul.f32 %v2685, 0.1
    %v2694 = vmax.f32 %v2678, %v2686
    %v2695 = vmax.f32 %v2679, %v2687
    %v2696 = vmax.f32 %v2680, %v2688
    %v2697 = vmax.f32 %v2681, %v2689
    %v2698 = vmax.f32 %v2682, %v2690
    %v2699 = vmax.f32 %v2683, %v2691
    %v2700 = vmax.f32 %v2684, %v2692
    %v2701 = vmax.f32 %v2685, %v2693
    %v2702 = vpack.c.bf16 %v2695, %v2694
    %v2703 = vpack.c.bf16 %v2697, %v2696
    %v2704 = vpack.c.bf16 %v2699, %v2698
    %v2705 = vpack.c.bf16 %v2701, %v2700
    %v2706 = vld [vmem:[%s8] sm:$0x3]
    %v2708 = vsel %vm291, %v2706, 0
    %2710 = vmatprep.subr.bf16.mxu0 0
    %2711 = vmatpush1.bf16.msra.mxu0 %v2702
    %2712 = vmatprep.subr.bf16.mxu0 0
    %2713 = vmatpush1.bf16.msra.mxu0 %v2703
    %2714 = vmatprep.subr.bf16.mxu0 0
    %2715 = vmatpush1.bf16.msra.mxu0 %v2704
    %2716 = vmatprep.subr.bf16.mxu0 0
    %2717 = vmatpush1.bf16.msra.mxu0 %v2705
    %2718 = vmatprep.subr.bf16.mxu0 0
    %2719 = vmatpush1.bf16.msra.mxu0 0
    %2720 = vmatprep.subr.bf16.mxu0 0
    %2721 = vmatpush1.bf16.msra.mxu0 0
    %2722 = vmatprep.subr.bf16.mxu0 0
    %2723 = vmatpush1.bf16.msra.mxu0 0
    %2724 = vmatprep.subr.bf16.mxu0 0
    %2725 = vmatpush1.bf16.msra.mxu0 0
    %2726 = vmatprep.subr.bf16.mxu0 0
    %2727 = vmatpush1.bf16.msra.mxu0 0
    %2728 = vmatprep.subr.bf16.mxu0 0
    %2729 = vmatpush1.bf16.msra.mxu0 0
    %2730 = vmatprep.subr.bf16.mxu0 0
    %2731 = vmatpush1.bf16.msra.mxu0 0
    %2732 = vmatprep.subr.bf16.mxu0 0
    %2733 = vmatpush1.bf16.msra.mxu0 0
    %2734 = vmatprep.subr.bf16.mxu0 0
    %2735 = vmatpush1.bf16.msra.mxu0 0
    %2736 = vmatprep.subr.bf16.mxu0 0
    %2737 = vmatpush1.bf16.msra.mxu0 0
    %2738 = vmatprep.subr.bf16.mxu0 0
    %2739 = vmatpush1.bf16.msra.mxu0 0
    %2740 = vmatprep.subr.bf16.mxu0 0
    %2741 = vmatpush1.bf16.msra.mxu0 0
    %2742 = vmatprep.mubr.bf16.mxu0 0
    %2743 = vmatmul.mubr.bf16.gmra.mrb[0].mxu0 %v2708
    %v2744 = vpop.f32.mrb[0].mxu0
    %v2745 = vadd.f32 0.0, %v2744
    %v2746 = vpop.f32.mrb[0].mxu0
    %v2747 = vpop.f32.mrb[0].mxu0
    %v2748 = vpop.f32.mrb[0].mxu0
    %2749 = vdwg.mxu0
    %v2750 = vld [vmem:[#allocation7] sm:$0xf]
    %v2751 = vld [vmem:[#allocation7 + $0x4] sm:$0xf]
    %v2752 = vld [vmem:[#allocation7 + $0x8] sm:$0xf]
    %v2753 = vld [vmem:[#allocation7 + $0xc] sm:$0xf]
    %v2754 = vld [vmem:[#allocation7 + $0x10] sm:$0xf]
    %v2755 = vld [vmem:[#allocation7 + $0x14] sm:$0xf]
    %v2756 = vld [vmem:[#allocation7 + $0x18] sm:$0xf]
    %v2757 = vld [vmem:[#allocation7 + $0x1c] sm:$0xf]
    %v2758 = vld [vmem:[#allocation7 + $0x20] sm:$0xf]
    %v2759 = vld [vmem:[#allocation7 + $0x24] sm:$0xf]
    %v2760 = vld [vmem:[#allocation7 + $0x28] sm:$0xf]
    %v2761 = vld [vmem:[#allocation7 + $0x2c] sm:$0xf]
    %v2762 = vld [vmem:[#allocation7 + $0x30] sm:$0xf]
    %v2763 = vld [vmem:[#allocation7 + $0x34] sm:$0xf]
    %v2764 = vld [vmem:[#allocation7 + $0x38] sm:$0xf]
    %v2765 = vld [vmem:[#allocation7 + $0x3c] sm:$0xf]
    %v2766 = vpack.c.bf16 %v2745, %v2745
    %s2767 = scalar_lea.vmem %s8, 2
    %v2768 = vld [vmem:[%s2767] sm:$0x3]
    %v2770 = vsel %vm291, %v2768, 0
    %2772 = vmatprep.subr.bf16.mxu0 0
    %2773 = vmatpush1.bf16.msra.mxu0 %v2702
    %2774 = vmatprep.subr.bf16.mxu0 0
    %2775 = vmatpush1.bf16.msra.mxu0 %v2703
    %2776 = vmatprep.subr.bf16.mxu0 0
    %2777 = vmatpush1.bf16.msra.mxu0 %v2704
    %2778 = vmatprep.subr.bf16.mxu0 0
    %2779 = vmatpush1.bf16.msra.mxu0 %v2705
    %2780 = vmatprep.subr.bf16.mxu0 0
    %2781 = vmatpush1.bf16.msra.mxu0 0
    %2782 = vmatprep.subr.bf16.mxu0 0
    %2783 = vmatpush1.bf16.msra.mxu0 0
    %2784 = vmatprep.subr.bf16.mxu0 0
    %2785 = vmatpush1.bf16.msra.mxu0 0
    %2786 = vmatprep.subr.bf16.mxu0 0
    %2787 = vmatpush1.bf16.msra.mxu0 0
    %2788 = vmatprep.subr.bf16.mxu0 0
    %2789 = vmatpush1.bf16.msra.mxu0 0
    %2790 = vmatprep.subr.bf16.mxu0 0
    %2791 = vmatpush1.bf16.msra.mxu0 0
    %2792 = vmatprep.subr.bf16.mxu0 0
    %2793 = vmatpush1.bf16.msra.mxu0 0
    %2794 = vmatprep.subr.bf16.mxu0 0
    %2795 = vmatpush1.bf16.msra.mxu0 0
    %2796 = vmatprep.subr.bf16.mxu0 0
    %2797 = vmatpush1.bf16.msra.mxu0 0
    %2798 = vmatprep.subr.bf16.mxu0 0
    %2799 = vmatpush1.bf16.msra.mxu0 0
    %2800 = vmatprep.subr.bf16.mxu0 0
    %2801 = vmatpush1.bf16.msra.mxu0 0
    %2802 = vmatprep.subr.bf16.mxu0 0
    %2803 = vmatpush1.bf16.msra.mxu0 0
    %2804 = vmatprep.mubr.bf16.mxu0 0
    %2805 = vmatmul.mubr.bf16.gmra.mrb[0].mxu0 %v2770
    %v2806 = vpop.f32.mrb[0].mxu0
    %v2807 = vadd.f32 0.0, %v2806
    %v2808 = vpop.f32.mrb[0].mxu0
    %v2809 = vpop.f32.mrb[0].mxu0
    %v2810 = vpop.f32.mrb[0].mxu0
    %2811 = vdwg.mxu0
    %s2812 = scalar_lea.vmem [#allocation7], 64
    %v2813 = vld [vmem:[%s2812] sm:$0xf]
    %v2814 = vld [vmem:[%s2812 + $0x4] sm:$0xf]
    %v2815 = vld [vmem:[%s2812 + $0x8] sm:$0xf]
    %v2816 = vld [vmem:[%s2812 + $0xc] sm:$0xf]
    %v2817 = vld [vmem:[%s2812 + $0x10] sm:$0xf]
    %v2818 = vld [vmem:[%s2812 + $0x14] sm:$0xf]
    %v2819 = vld [vmem:[%s2812 + $0x18] sm:$0xf]
    %v2820 = vld [vmem:[%s2812 + $0x1c] sm:$0xf]
    %v2821 = vld [vmem:[%s2812 + $0x20] sm:$0xf]
    %v2822 = vld [vmem:[%s2812 + $0x24] sm:$0xf]
    %v2823 = vld [vmem:[%s2812 + $0x28] sm:$0xf]
    %v2824 = vld [vmem:[%s2812 + $0x2c] sm:$0xf]
    %v2825 = vld [vmem:[%s2812 + $0x30] sm:$0xf]
    %v2826 = vld [vmem:[%s2812 + $0x34] sm:$0xf]
    %v2827 = vld [vmem:[%s2812 + $0x38] sm:$0xf]
    %v2828 = vld [vmem:[%s2812 + $0x3c] sm:$0xf]
    %v2829 = vpack.c.bf16 %v2807, %v2807
    %v2846 = vunpack.c.l.b16 %v2813
    %v2847 = vunpack.c.l.b16 %v2814
    %v2848 = vunpack.c.l.b16 %v2815
    %v2849 = vunpack.c.l.b16 %v2816
    %v2850 = vunpack.c.l.b16 %v2817
    %v2851 = vunpack.c.l.b16 %v2818
    %v2852 = vunpack.c.l.b16 %v2819
    %v2853 = vunpack.c.l.b16 %v2820
    %v2854 = vunpack.c.l.b16 %v2821
    %v2855 = vunpack.c.l.b16 %v2822
    %v2856 = vunpack.c.l.b16 %v2823
    %v2857 = vunpack.c.l.b16 %v2824
    %v2858 = vunpack.c.l.b16 %v2825
    %v2859 = vunpack.c.l.b16 %v2826
    %v2860 = vunpack.c.l.b16 %v2827
    %v2861 = vunpack.c.l.b16 %v2828
    %v2862 = vpack.c.b16 %v2847, %v2846
    %v2863 = vpack.c.b16 %v2849, %v2848
    %v2864 = vpack.c.b16 %v2851, %v2850
    %v2865 = vpack.c.b16 %v2853, %v2852
    %v2866 = vpack.c.b16 %v2855, %v2854
    %v2867 = vpack.c.b16 %v2857, %v2856
    %v2868 = vpack.c.b16 %v2859, %v2858
    %v2869 = vpack.c.b16 %v2861, %v2860
    %2878 = vmatprep.subr.bf16.mxu0 0
    %2879 = vmatpush1.bf16.msra.mxu0 %v2862
    %2880 = vmatprep.subr.bf16.mxu0 0
    %2881 = vmatpush1.bf16.msra.mxu0 %v2863
    %2882 = vmatprep.subr.bf16.mxu0 0
    %2883 = vmatpush1.bf16.msra.mxu0 %v2864
    %2884 = vmatprep.subr.bf16.mxu0 0
    %2885 = vmatpush1.bf16.msra.mxu0 %v2865
    %2886 = vmatprep.subr.bf16.mxu0 0
    %2887 = vmatpush1.bf16.msra.mxu0 %v2866
    %2888 = vmatprep.subr.bf16.mxu0 0
    %2889 = vmatpush1.bf16.msra.mxu0 %v2867
    %2890 = vmatprep.subr.bf16.mxu0 0
    %2891 = vmatpush1.bf16.msra.mxu0 %v2868
    %2892 = vmatprep.subr.bf16.mxu0 0
    %2893 = vmatpush1.bf16.msra.mxu0 %v2869
    %2894 = vmatprep.subr.bf16.mxu0 0
    %2895 = vmatpush1.bf16.msra.mxu0 0
    %2896 = vmatprep.subr.bf16.mxu0 0
    %2897 = vmatpush1.bf16.msra.mxu0 0
    %2898 = vmatprep.subr.bf16.mxu0 0
    %2899 = vmatpush1.bf16.msra.mxu0 0
    %2900 = vmatprep.subr.bf16.mxu0 0
    %2901 = vmatpush1.bf16.msra.mxu0 0
    %2902 = vmatprep.subr.bf16.mxu0 0
    %2903 = vmatpush1.bf16.msra.mxu0 0
    %2904 = vmatprep.subr.bf16.mxu0 0
    %2905 = vmatpush1.bf16.msra.mxu0 0
    %2906 = vmatprep.subr.bf16.mxu0 0
    %2907 = vmatpush1.bf16.msra.mxu0 0
    %2908 = vmatprep.subr.bf16.mxu0 0
    %2909 = vmatpush1.bf16.msra.mxu0 0
    %2910 = vmatprep.mubr.bf16.mxu0 0
    %2911 = vmatmul.mubr.bf16.gmra.mrb[0].mxu0 %v2829
    %v2912 = vpop.f32.mrb[0].mxu0
    %v2913 = vadd.f32 0.0, %v2912
    %v2914 = vpop.f32.mrb[0].mxu0
    %v2915 = vpop.f32.mrb[0].mxu0
    %v2916 = vpop.f32.mrb[0].mxu0
    %2917 = vdwg.mxu0
    %v2934 = vunpack.c.l.b16 %v2750
    %v2935 = vunpack.c.l.b16 %v2751
    %v2936 = vunpack.c.l.b16 %v2752
    %v2937 = vunpack.c.l.b16 %v2753
    %v2938 = vunpack.c.l.b16 %v2754
    %v2939 = vunpack.c.l.b16 %v2755
    %v2940 = vunpack.c.l.b16 %v2756
    %v2941 = vunpack.c.l.b16 %v2757
    %v2942 = vunpack.c.l.b16 %v2758
    %v2943 = vunpack.c.l.b16 %v2759
    %v2944 = vunpack.c.l.b16 %v2760
    %v2945 = vunpack.c.l.b16 %v2761
    %v2946 = vunpack.c.l.b16 %v2762
    %v2947 = vunpack.c.l.b16 %v2763
    %v2948 = vunpack.c.l.b16 %v2764
    %v2949 = vunpack.c.l.b16 %v2765
    %v2950 = vpack.c.b16 %v2935, %v2934
    %v2951 = vpack.c.b16 %v2937, %v2936
    %v2952 = vpack.c.b16 %v2939, %v2938
    %v2953 = vpack.c.b16 %v2941, %v2940
    %v2954 = vpack.c.b16 %v2943, %v2942
    %v2955 = vpack.c.b16 %v2945, %v2944
    %v2956 = vpack.c.b16 %v2947, %v2946
    %v2957 = vpack.c.b16 %v2949, %v2948
    %2966 = vmatprep.subr.bf16.mxu0 0
    %2967 = vmatpush1.bf16.msra.mxu0 %v2950
    %2968 = vmatprep.subr.bf16.mxu0 0
    %2969 = vmatpush1.bf16.msra.mxu0 %v2951
    %2970 = vmatprep.subr.bf16.mxu0 0
    %2971 = vmatpush1.bf16.msra.mxu0 %v2952
    %2972 = vmatprep.subr.bf16.mxu0 0
    %2973 = vmatpush1.bf16.msra.mxu0 %v2953
    %2974 = vmatprep.subr.bf16.mxu0 0
    %2975 = vmatpush1.bf16.msra.mxu0 %v2954
    %2976 = vmatprep.subr.bf16.mxu0 0
    %2977 = vmatpush1.bf16.msra.mxu0 %v2955
    %2978 = vmatprep.subr.bf16.mxu0 0
    %2979 = vmatpush1.bf16.msra.mxu0 %v2956
    %2980 = vmatprep.subr.bf16.mxu0 0
    %2981 = vmatpush1.bf16.msra.mxu0 %v2957
    %2982 = vmatprep.subr.bf16.mxu0 0
    %2983 = vmatpush1.bf16.msra.mxu0 0
    %2984 = vmatprep.subr.bf16.mxu0 0
    %2985 = vmatpush1.bf16.msra.mxu0 0
    %2986 = vmatprep.subr.bf16.mxu0 0
    %2987 = vmatpush1.bf16.msra.mxu0 0
    %2988 = vmatprep.subr.bf16.mxu0 0
    %2989 = vmatpush1.bf16.msra.mxu0 0
    %2990 = vmatprep.subr.bf16.mxu0 0
    %2991 = vmatpush1.bf16.msra.mxu0 0
    %2992 = vmatprep.subr.bf16.mxu0 0
    %2993 = vmatpush1.bf16.msra.mxu0 0
    %2994 = vmatprep.subr.bf16.mxu0 0
    %2995 = vmatpush1.bf16.msra.mxu0 0
    %2996 = vmatprep.subr.bf16.mxu0 0
    %2997 = vmatpush1.bf16.msra.mxu0 0
    %2998 = vmatprep.mubr.bf16.mxu0 0
    %2999 = vmatmul.mubr.bf16.gmra.mrb[0].mxu0 %v2766
    %v3000 = vpop.f32.mrb[0].mxu0
    %v3001 = vadd.f32 %v2913, %v3000
    %v3002 = vpop.f32.mrb[0].mxu0
    %v3003 = vpop.f32.mrb[0].mxu0
    %v3004 = vpop.f32.mrb[0].mxu0
    %3005 = vdwg.mxu0
    %s3006 = scalar_lea.vmem %s8, 4
    %v3007 = vld [vmem:[%s3006] sm:$0x3]
    %v3009 = vsel %vm291, %v3007, 0
    %3011 = vmatprep.subr.bf16.mxu0 0
    %3012 = vmatpush1.bf16.msra.mxu0 %v2702
    %3013 = vmatprep.subr.bf16.mxu0 0
    %3014 = vmatpush1.bf16.msra.mxu0 %v2703
    %3015 = vmatprep.subr.bf16.mxu0 0
    %3016 = vmatpush1.bf16.msra.mxu0 %v2704
    %3017 = vmatprep.subr.bf16.mxu0 0
    %3018 = vmatpush1.bf16.msra.mxu0 %v2705
    %3019 = vmatprep.subr.bf16.mxu0 0
    %3020 = vmatpush1.bf16.msra.mxu0 0
    %3021 = vmatprep.subr.bf16.mxu0 0
    %3022 = vmatpush1.bf16.msra.mxu0 0
    %3023 = vmatprep.subr.bf16.mxu0 0
    %3024 = vmatpush1.bf16.msra.mxu0 0
    %3025 = vmatprep.subr.bf16.mxu0 0
    %3026 = vmatpush1.bf16.msra.mxu0 0
    %3027 = vmatprep.subr.bf16.mxu0 0
    %3028 = vmatpush1.bf16.msra.mxu0 0
    %3029 = vmatprep.subr.bf16.mxu0 0
    %3030 = vmatpush1.bf16.msra.mxu0 0
    %3031 = vmatprep.subr.bf16.mxu0 0
    %3032 = vmatpush1.bf16.msra.mxu0 0
    %3033 = vmatprep.subr.bf16.mxu0 0
    %3034 = vmatpush1.bf16.msra.mxu0 0
    %3035 = vmatprep.subr.bf16.mxu0 0
    %3036 = vmatpush1.bf16.msra.mxu0 0
    %3037 = vmatprep.subr.bf16.mxu0 0
    %3038 = vmatpush1.bf16.msra.mxu0 0
    %3039 = vmatprep.subr.bf16.mxu0 0
    %3040 = vmatpush1.bf16.msra.mxu0 0
    %3041 = vmatprep.subr.bf16.mxu0 0
    %3042 = vmatpush1.bf16.msra.mxu0 0
    %3043 = vmatprep.mubr.bf16.mxu0 0
    %3044 = vmatmul.mubr.bf16.gmra.mrb[0].mxu0 %v3009
    %v3045 = vpop.f32.mrb[0].mxu0
    %v3046 = vadd.f32 0.0, %v3045
    %v3047 = vpop.f32.mrb[0].mxu0
    %v3048 = vpop.f32.mrb[0].mxu0
    %v3049 = vpop.f32.mrb[0].mxu0
    %3050 = vdwg.mxu0
    %s3051 = scalar_lea.vmem [#allocation7], 128
    %v3052 = vld [vmem:[%s3051] sm:$0xf]
    %v3053 = vld [vmem:[%s3051 + $0x4] sm:$0xf]
    %v3054 = vld [vmem:[%s3051 + $0x8] sm:$0xf]
    %v3055 = vld [vmem:[%s3051 + $0xc] sm:$0xf]
    %v3056 = vld [vmem:[%s3051 + $0x10] sm:$0xf]
    %v3057 = vld [vmem:[%s3051 + $0x14] sm:$0xf]
    %v3058 = vld [vmem:[%s3051 + $0x18] sm:$0xf]
    %v3059 = vld [vmem:[%s3051 + $0x1c] sm:$0xf]
    %v3060 = vld [vmem:[%s3051 + $0x20] sm:$0xf]
    %v3061 = vld [vmem:[%s3051 + $0x24] sm:$0xf]
    %v3062 = vld [vmem:[%s3051 + $0x28] sm:$0xf]
    %v3063 = vld [vmem:[%s3051 + $0x2c] sm:$0xf]
    %v3064 = vld [vmem:[%s3051 + $0x30] sm:$0xf]
    %v3065 = vld [vmem:[%s3051 + $0x34] sm:$0xf]
    %v3066 = vld [vmem:[%s3051 + $0x38] sm:$0xf]
    %v3067 = vld [vmem:[%s3051 + $0x3c] sm:$0xf]
    %v3068 = vpack.c.bf16 %v3046, %v3046
    %v3085 = vunpack.c.l.b16 %v3052
    %v3086 = vunpack.c.l.b16 %v3053
    %v3087 = vunpack.c.l.b16 %v3054
    %v3088 = vunpack.c.l.b16 %v3055
    %v3089 = vunpack.c.l.b16 %v3056
    %v3090 = vunpack.c.l.b16 %v3057
    %v3091 = vunpack.c.l.b16 %v3058
    %v3092 = vunpack.c.l.b16 %v3059
    %v3093 = vunpack.c.l.b16 %v3060
    %v3094 = vunpack.c.l.b16 %v3061
    %v3095 = vunpack.c.l.b16 %v3062
    %v3096 = vunpack.c.l.b16 %v3063
    %v3097 = vunpack.c.l.b16 %v3064
    %v3098 = vunpack.c.l.b16 %v3065
    %v3099 = vunpack.c.l.b16 %v3066
    %v3100 = vunpack.c.l.b16 %v3067
    %v3101 = vpack.c.b16 %v3086, %v3085
    %v3102 = vpack.c.b16 %v3088, %v3087
    %v3103 = vpack.c.b16 %v3090, %v3089
    %v3104 = vpack.c.b16 %v3092, %v3091
    %v3105 = vpack.c.b16 %v3094, %v3093
    %v3106 = vpack.c.b16 %v3096, %v3095
    %v3107 = vpack.c.b16 %v3098, %v3097
    %v3108 = vpack.c.b16 %v3100, %v3099
    %3117 = vmatprep.subr.bf16.mxu0 0
    %3118 = vmatpush1.bf16.msra.mxu0 %v3101
    %3119 = vmatprep.subr.bf16.mxu0 0
    %3120 = vmatpush1.bf16.msra.mxu0 %v3102
    %3121 = vmatprep.subr.bf16.mxu0 0
    %3122 = vmatpush1.bf16.msra.mxu0 %v3103
    %3123 = vmatprep.subr.bf16.mxu0 0
    %3124 = vmatpush1.bf16.msra.mxu0 %v3104
    %3125 = vmatprep.subr.bf16.mxu0 0
    %3126 = vmatpush1.bf16.msra.mxu0 %v3105
    %3127 = vmatprep.subr.bf16.mxu0 0
    %3128 = vmatpush1.bf16.msra.mxu0 %v3106
    %3129 = vmatprep.subr.bf16.mxu0 0
    %3130 = vmatpush1.bf16.msra.mxu0 %v3107
    %3131 = vmatprep.subr.bf16.mxu0 0
    %3132 = vmatpush1.bf16.msra.mxu0 %v3108
    %3133 = vmatprep.subr.bf16.mxu0 0
    %3134 = vmatpush1.bf16.msra.mxu0 0
    %3135 = vmatprep.subr.bf16.mxu0 0
    %3136 = vmatpush1.bf16.msra.mxu0 0
    %3137 = vmatprep.subr.bf16.mxu0 0
    %3138 = vmatpush1.bf16.msra.mxu0 0
    %3139 = vmatprep.subr.bf16.mxu0 0
    %3140 = vmatpush1.bf16.msra.mxu0 0
    %3141 = vmatprep.subr.bf16.mxu0 0
    %3142 = vmatpush1.bf16.msra.mxu0 0
    %3143 = vmatprep.subr.bf16.mxu0 0
    %3144 = vmatpush1.bf16.msra.mxu0 0
    %3145 = vmatprep.subr.bf16.mxu0 0
    %3146 = vmatpush1.bf16.msra.mxu0 0
    %3147 = vmatprep.subr.bf16.mxu0 0
    %3148 = vmatpush1.bf16.msra.mxu0 0
    %3149 = vmatprep.mubr.bf16.mxu0 0
    %3150 = vmatmul.mubr.bf16.gmra.mrb[0].mxu0 %v3068
    %v3151 = vpop.f32.mrb[0].mxu0
    %v3152 = vadd.f32 0.0, %v3151
    %v3153 = vpop.f32.mrb[0].mxu0
    %v3154 = vpop.f32.mrb[0].mxu0
    %v3155 = vpop.f32.mrb[0].mxu0
    %3156 = vdwg.mxu0
    %v3157 = vadd.f32 %v3001, %v3152
    %s3158 = scalar_lea.vmem %s8, 6
    %v3159 = vld [vmem:[%s3158] sm:$0x3]
    %v3161 = vsel %vm291, %v3159, 0
    %3163 = vmatprep.subr.bf16.mxu0 0
    %3164 = vmatpush1.bf16.msra.mxu0 %v2702
    %3165 = vmatprep.subr.bf16.mxu0 0
    %3166 = vmatpush1.bf16.msra.mxu0 %v2703
    %3167 = vmatprep.subr.bf16.mxu0 0
    %3168 = vmatpush1.bf16.msra.mxu0 %v2704
    %3169 = vmatprep.subr.bf16.mxu0 0
    %3170 = vmatpush1.bf16.msra.mxu0 %v2705
    %3171 = vmatprep.subr.bf16.mxu0 0
    %3172 = vmatpush1.bf16.msra.mxu0 0
    %3173 = vmatprep.subr.bf16.mxu0 0
    %3174 = vmatpush1.bf16.msra.mxu0 0
    %3175 = vmatprep.subr.bf16.mxu0 0
    %3176 = vmatpush1.bf16.msra.mxu0 0
    %3177 = vmatprep.subr.bf16.mxu0 0
    %3178 = vmatpush1.bf16.msra.mxu0 0
    %3179 = vmatprep.subr.bf16.mxu0 0
    %3180 = vmatpush1.bf16.msra.mxu0 0
    %3181 = vmatprep.subr.bf16.mxu0 0
    %3182 = vmatpush1.bf16.msra.mxu0 0
    %3183 = vmatprep.subr.bf16.mxu0 0
    %3184 = vmatpush1.bf16.msra.mxu0 0
    %3185 = vmatprep.subr.bf16.mxu0 0
    %3186 = vmatpush1.bf16.msra.mxu0 0
    %3187 = vmatprep.subr.bf16.mxu0 0
    %3188 = vmatpush1.bf16.msra.mxu0 0
    %3189 = vmatprep.subr.bf16.mxu0 0
    %3190 = vmatpush1.bf16.msra.mxu0 0
    %3191 = vmatprep.subr.bf16.mxu0 0
    %3192 = vmatpush1.bf16.msra.mxu0 0
    %3193 = vmatprep.subr.bf16.mxu0 0
    %3194 = vmatpush1.bf16.msra.mxu0 0
    %3195 = vmatprep.mubr.bf16.mxu0 0
    %3196 = vmatmul.mubr.bf16.gmra.mrb[0].mxu0 %v3161
    %v3197 = vpop.f32.mrb[0].mxu0
    %v3198 = vadd.f32 0.0, %v3197
    %v3199 = vpop.f32.mrb[0].mxu0
    %v3200 = vpop.f32.mrb[0].mxu0
    %v3201 = vpop.f32.mrb[0].mxu0
    %3202 = vdwg.mxu0
    %s3203 = scalar_lea.vmem [#allocation7], 192
    %v3204 = vld [vmem:[%s3203] sm:$0xf]
    %v3205 = vld [vmem:[%s3203 + $0x4] sm:$0xf]
    %v3206 = vld [vmem:[%s3203 + $0x8] sm:$0xf]
    %v3207 = vld [vmem:[%s3203 + $0xc] sm:$0xf]
    %v3208 = vld [vmem:[%s3203 + $0x10] sm:$0xf]
    %v3209 = vld [vmem:[%s3203 + $0x14] sm:$0xf]
    %v3210 = vld [vmem:[%s3203 + $0x18] sm:$0xf]
    %v3211 = vld [vmem:[%s3203 + $0x1c] sm:$0xf]
    %v3212 = vld [vmem:[%s3203 + $0x20] sm:$0xf]
    %v3213 = vld [vmem:[%s3203 + $0x24] sm:$0xf]
    %v3214 = vld [vmem:[%s3203 + $0x28] sm:$0xf]
    %v3215 = vld [vmem:[%s3203 + $0x2c] sm:$0xf]
    %v3216 = vld [vmem:[%s3203 + $0x30] sm:$0xf]
    %v3217 = vld [vmem:[%s3203 + $0x34] sm:$0xf]
    %v3218 = vld [vmem:[%s3203 + $0x38] sm:$0xf]
    %v3219 = vld [vmem:[%s3203 + $0x3c] sm:$0xf]
    %v3220 = vpack.c.bf16 %v3198, %v3198
    %v3237 = vunpack.c.l.b16 %v3204
    %v3238 = vunpack.c.l.b16 %v3205
    %v3239 = vunpack.c.l.b16 %v3206
    %v3240 = vunpack.c.l.b16 %v3207
    %v3241 = vunpack.c.l.b16 %v3208
    %v3242 = vunpack.c.l.b16 %v3209
    %v3243 = vunpack.c.l.b16 %v3210
    %v3244 = vunpack.c.l.b16 %v3211
    %v3245 = vunpack.c.l.b16 %v3212
    %v3246 = vunpack.c.l.b16 %v3213
    %v3247 = vunpack.c.l.b16 %v3214
    %v3248 = vunpack.c.l.b16 %v3215
    %v3249 = vunpack.c.l.b16 %v3216
    %v3250 = vunpack.c.l.b16 %v3217
    %v3251 = vunpack.c.l.b16 %v3218
    %v3252 = vunpack.c.l.b16 %v3219
    %v3253 = vpack.c.b16 %v3238, %v3237
    %v3254 = vpack.c.b16 %v3240, %v3239
    %v3255 = vpack.c.b16 %v3242, %v3241
    %v3256 = vpack.c.b16 %v3244, %v3243
    %v3257 = vpack.c.b16 %v3246, %v3245
    %v3258 = vpack.c.b16 %v3248, %v3247
    %v3259 = vpack.c.b16 %v3250, %v3249
    %v3260 = vpack.c.b16 %v3252, %v3251
    %3269 = vmatprep.subr.bf16.mxu0 0
    %3270 = vmatpush1.bf16.msra.mxu0 %v3253
    %3271 = vmatprep.subr.bf16.mxu0 0
    %3272 = vmatpush1.bf16.msra.mxu0 %v3254
    %3273 = vmatprep.subr.bf16.mxu0 0
    %3274 = vmatpush1.bf16.msra.mxu0 %v3255
    %3275 = vmatprep.subr.bf16.mxu0 0
    %3276 = vmatpush1.bf16.msra.mxu0 %v3256
    %3277 = vmatprep.subr.bf16.mxu0 0
    %3278 = vmatpush1.bf16.msra.mxu0 %v3257
    %3279 = vmatprep.subr.bf16.mxu0 0
    %3280 = vmatpush1.bf16.msra.mxu0 %v3258
    %3281 = vmatprep.subr.bf16.mxu0 0
    %3282 = vmatpush1.bf16.msra.mxu0 %v3259
    %3283 = vmatprep.subr.bf16.mxu0 0
    %3284 = vmatpush1.bf16.msra.mxu0 %v3260
    %3285 = vmatprep.subr.bf16.mxu0 0
    %3286 = vmatpush1.bf16.msra.mxu0 0
    %3287 = vmatprep.subr.bf16.mxu0 0
    %3288 = vmatpush1.bf16.msra.mxu0 0
    %3289 = vmatprep.subr.bf16.mxu0 0
    %3290 = vmatpush1.bf16.msra.mxu0 0
    %3291 = vmatprep.subr.bf16.mxu0 0
    %3292 = vmatpush1.bf16.msra.mxu0 0
    %3293 = vmatprep.subr.bf16.mxu0 0
    %3294 = vmatpush1.bf16.msra.mxu0 0
    %3295 = vmatprep.subr.bf16.mxu0 0
    %3296 = vmatpush1.bf16.msra.mxu0 0
    %3297 = vmatprep.subr.bf16.mxu0 0
    %3298 = vmatpush1.bf16.msra.mxu0 0
    %3299 = vmatprep.subr.bf16.mxu0 0
    %3300 = vmatpush1.bf16.msra.mxu0 0
    %3301 = vmatprep.mubr.bf16.mxu0 0
    %3302 = vmatmul.mubr.bf16.gmra.mrb[0].mxu0 %v3220
    %v3303 = vpop.f32.mrb[0].mxu0
    %v3304 = vadd.f32 0.0, %v3303
    %v3305 = vpop.f32.mrb[0].mxu0
    %v3306 = vpop.f32.mrb[0].mxu0
    %v3307 = vpop.f32.mrb[0].mxu0
    %3308 = vdwg.mxu0
    %v3309 = vadd.f32 %v3157, %v3304
    %s3310 = scalar_lea.vmem %s8, 8
    %v3311 = vld [vmem:[%s3310] sm:$0x3]
    %v3313 = vsel %vm291, %v3311, 0
    %3315 = vmatprep.subr.bf16.mxu0 0
    %3316 = vmatpush1.bf16.msra.mxu0 %v2702
    %3317 = vmatprep.subr.bf16.mxu0 0
    %3318 = vmatpush1.bf16.msra.mxu0 %v2703
    %3319 = vmatprep.subr.bf16.mxu0 0
    %3320 = vmatpush1.bf16.msra.mxu0 %v2704
    %3321 = vmatprep.subr.bf16.mxu0 0
    %3322 = vmatpush1.bf16.msra.mxu0 %v2705
    %3323 = vmatprep.subr.bf16.mxu0 0
    %3324 = vmatpush1.bf16.msra.mxu0 0
    %3325 = vmatprep.subr.bf16.mxu0 0
    %3326 = vmatpush1.bf16.msra.mxu0 0
    %3327 = vmatprep.subr.bf16.mxu0 0
    %3328 = vmatpush1.bf16.msra.mxu0 0
    %3329 = vmatprep.subr.bf16.mxu0 0
    %3330 = vmatpush1.bf16.msra.mxu0 0
    %3331 = vmatprep.subr.bf16.mxu0 0
    %3332 = vmatpush1.bf16.msra.mxu0 0
    %3333 = vmatprep.subr.bf16.mxu0 0
    %3334 = vmatpush1.bf16.msra.mxu0 0
    %3335 = vmatprep.subr.bf16.mxu0 0
    %3336 = vmatpush1.bf16.msra.mxu0 0
    %3337 = vmatprep.subr.bf16.mxu0 0
    %3338 = vmatpush1.bf16.msra.mxu0 0
    %3339 = vmatprep.subr.bf16.mxu0 0
    %3340 = vmatpush1.bf16.msra.mxu0 0
    %3341 = vmatprep.subr.bf16.mxu0 0
    %3342 = vmatpush1.bf16.msra.mxu0 0
    %3343 = vmatprep.subr.bf16.mxu0 0
    %3344 = vmatpush1.bf16.msra.mxu0 0
    %3345 = vmatprep.subr.bf16.mxu0 0
    %3346 = vmatpush1.bf16.msra.mxu0 0
    %3347 = vmatprep.mubr.bf16.mxu0 0
    %3348 = vmatmul.mubr.bf16.gmra.mrb[0].mxu0 %v3313
    %v3349 = vpop.f32.mrb[0].mxu0
    %v3350 = vadd.f32 0.0, %v3349
    %v3351 = vpop.f32.mrb[0].mxu0
    %v3352 = vpop.f32.mrb[0].mxu0
    %v3353 = vpop.f32.mrb[0].mxu0
    %3354 = vdwg.mxu0
    %s3355 = scalar_lea.vmem [#allocation7], 256
    %v3356 = vld [vmem:[%s3355] sm:$0xf]
    %v3357 = vld [vmem:[%s3355 + $0x4] sm:$0xf]
    %v3358 = vld [vmem:[%s3355 + $0x8] sm:$0xf]
    %v3359 = vld [vmem:[%s3355 + $0xc] sm:$0xf]
    %v3360 = vld [vmem:[%s3355 + $0x10] sm:$0xf]
    %v3361 = vld [vmem:[%s3355 + $0x14] sm:$0xf]
    %v3362 = vld [vmem:[%s3355 + $0x18] sm:$0xf]
    %v3363 = vld [vmem:[%s3355 + $0x1c] sm:$0xf]
    %v3364 = vld [vmem:[%s3355 + $0x20] sm:$0xf]
    %v3365 = vld [vmem:[%s3355 + $0x24] sm:$0xf]
    %v3366 = vld [vmem:[%s3355 + $0x28] sm:$0xf]
    %v3367 = vld [vmem:[%s3355 + $0x2c] sm:$0xf]
    %v3368 = vld [vmem:[%s3355 + $0x30] sm:$0xf]
    %v3369 = vld [vmem:[%s3355 + $0x34] sm:$0xf]
    %v3370 = vld [vmem:[%s3355 + $0x38] sm:$0xf]
    %v3371 = vld [vmem:[%s3355 + $0x3c] sm:$0xf]
    %v3372 = vpack.c.bf16 %v3350, %v3350
    %v3389 = vunpack.c.l.b16 %v3356
    %v3390 = vunpack.c.l.b16 %v3357
    %v3391 = vunpack.c.l.b16 %v3358
    %v3392 = vunpack.c.l.b16 %v3359
    %v3393 = vunpack.c.l.b16 %v3360
    %v3394 = vunpack.c.l.b16 %v3361
    %v3395 = vunpack.c.l.b16 %v3362
    %v3396 = vunpack.c.l.b16 %v3363
    %v3397 = vunpack.c.l.b16 %v3364
    %v3398 = vunpack.c.l.b16 %v3365
    %v3399 = vunpack.c.l.b16 %v3366
    %v3400 = vunpack.c.l.b16 %v3367
    %v3401 = vunpack.c.l.b16 %v3368
    %v3402 = vunpack.c.l.b16 %v3369
    %v3403 = vunpack.c.l.b16 %v3370
    %v3404 = vunpack.c.l.b16 %v3371
    %v3405 = vpack.c.b16 %v3390, %v3389
    %v3406 = vpack.c.b16 %v3392, %v3391
    %v3407 = vpack.c.b16 %v3394, %v3393
    %v3408 = vpack.c.b16 %v3396, %v3395
    %v3409 = vpack.c.b16 %v3398, %v3397
    %v3410 = vpack.c.b16 %v3400, %v3399
    %v3411 = vpack.c.b16 %v3402, %v3401
    %v3412 = vpack.c.b16 %v3404, %v3403
    %3421 = vmatprep.subr.bf16.mxu0 0
    %3422 = vmatpush1.bf16.msra.mxu0 %v3405
    %3423 = vmatprep.subr.bf16.mxu0 0
    %3424 = vmatpush1.bf16.msra.mxu0 %v3406
    %3425 = vmatprep.subr.bf16.mxu0 0
    %3426 = vmatpush1.bf16.msra.mxu0 %v3407
    %3427 = vmatprep.subr.bf16.mxu0 0
    %3428 = vmatpush1.bf16.msra.mxu0 %v3408
    %3429 = vmatprep.subr.bf16.mxu0 0
    %3430 = vmatpush1.bf16.msra.mxu0 %v3409
    %3431 = vmatprep.subr.bf16.mxu0 0
    %3432 = vmatpush1.bf16.msra.mxu0 %v3410
    %3433 = vmatprep.subr.bf16.mxu0 0
    %3434 = vmatpush1.bf16.msra.mxu0 %v3411
    %3435 = vmatprep.subr.bf16.mxu0 0
    %3436 = vmatpush1.bf16.msra.mxu0 %v3412
    %3437 = vmatprep.subr.bf16.mxu0 0
    %3438 = vmatpush1.bf16.msra.mxu0 0
    %3439 = vmatprep.subr.bf16.mxu0 0
    %3440 = vmatpush1.bf16.msra.mxu0 0
    %3441 = vmatprep.subr.bf16.mxu0 0
    %3442 = vmatpush1.bf16.msra.mxu0 0
    %3443 = vmatprep.subr.bf16.mxu0 0
    %3444 = vmatpush1.bf16.msra.mxu0 0
    %3445 = vmatprep.subr.bf16.mxu0 0
    %3446 = vmatpush1.bf16.msra.mxu0 0
    %3447 = vmatprep.subr.bf16.mxu0 0
    %3448 = vmatpush1.bf16.msra.mxu0 0
    %3449 = vmatprep.subr.bf16.mxu0 0
    %3450 = vmatpush1.bf16.msra.mxu0 0
    %3451 = vmatprep.subr.bf16.mxu0 0
    %3452 = vmatpush1.bf16.msra.mxu0 0
    %3453 = vmatprep.mubr.bf16.mxu0 0
    %3454 = vmatmul.mubr.bf16.gmra.mrb[0].mxu0 %v3372
    %v3455 = vpop.f32.mrb[0].mxu0
    %v3456 = vadd.f32 0.0, %v3455
    %v3457 = vpop.f32.mrb[0].mxu0
    %v3458 = vpop.f32.mrb[0].mxu0
    %v3459 = vpop.f32.mrb[0].mxu0
    %3460 = vdwg.mxu0
    %v3461 = vadd.f32 %v3309, %v3456
    %s3462 = scalar_lea.vmem %s8, 10
    %v3463 = vld [vmem:[%s3462] sm:$0x3]
    %v3465 = vsel %vm291, %v3463, 0
    %3467 = vmatprep.subr.bf16.mxu0 0
    %3468 = vmatpush1.bf16.msra.mxu0 %v2702
    %3469 = vmatprep.subr.bf16.mxu0 0
    %3470 = vmatpush1.bf16.msra.mxu0 %v2703
    %3471 = vmatprep.subr.bf16.mxu0 0
    %3472 = vmatpush1.bf16.msra.mxu0 %v2704
    %3473 = vmatprep.subr.bf16.mxu0 0
    %3474 = vmatpush1.bf16.msra.mxu0 %v2705
    %3475 = vmatprep.subr.bf16.mxu0 0
    %3476 = vmatpush1.bf16.msra.mxu0 0
    %3477 = vmatprep.subr.bf16.mxu0 0
    %3478 = vmatpush1.bf16.msra.mxu0 0
    %3479 = vmatprep.subr.bf16.mxu0 0
    %3480 = vmatpush1.bf16.msra.mxu0 0
    %3481 = vmatprep.subr.bf16.mxu0 0
    %3482 = vmatpush1.bf16.msra.mxu0 0
    %3483 = vmatprep.subr.bf16.mxu0 0
    %3484 = vmatpush1.bf16.msra.mxu0 0
    %3485 = vmatprep.subr.bf16.mxu0 0
    %3486 = vmatpush1.bf16.msra.mxu0 0
    %3487 = vmatprep.subr.bf16.mxu0 0
    %3488 = vmatpush1.bf16.msra.mxu0 0
    %3489 = vmatprep.subr.bf16.mxu0 0
    %3490 = vmatpush1.bf16.msra.mxu0 0
    %3491 = vmatprep.subr.bf16.mxu0 0
    %3492 = vmatpush1.bf16.msra.mxu0 0
    %3493 = vmatprep.subr.bf16.mxu0 0
    %3494 = vmatpush1.bf16.msra.mxu0 0
    %3495 = vmatprep.subr.bf16.mxu0 0
    %3496 = vmatpush1.bf16.msra.mxu0 0
    %3497 = vmatprep.subr.bf16.mxu0 0
    %3498 = vmatpush1.bf16.msra.mxu0 0
    %3499 = vmatprep.mubr.bf16.mxu0 0
    %3500 = vmatmul.mubr.bf16.gmra.mrb[0].mxu0 %v3465
    %v3501 = vpop.f32.mrb[0].mxu0
    %v3502 = vadd.f32 0.0, %v3501
    %v3503 = vpop.f32.mrb[0].mxu0
    %v3504 = vpop.f32.mrb[0].mxu0
    %v3505 = vpop.f32.mrb[0].mxu0
    %3506 = vdwg.mxu0
    %s3507 = scalar_lea.vmem [#allocation7], 320
    %v3508 = vld [vmem:[%s3507] sm:$0xf]
    %v3509 = vld [vmem:[%s3507 + $0x4] sm:$0xf]
    %v3510 = vld [vmem:[%s3507 + $0x8] sm:$0xf]
    %v3511 = vld [vmem:[%s3507 + $0xc] sm:$0xf]
    %v3512 = vld [vmem:[%s3507 + $0x10] sm:$0xf]
    %v3513 = vld [vmem:[%s3507 + $0x14] sm:$0xf]
    %v3514 = vld [vmem:[%s3507 + $0x18] sm:$0xf]
    %v3515 = vld [vmem:[%s3507 + $0x1c] sm:$0xf]
    %v3516 = vld [vmem:[%s3507 + $0x20] sm:$0xf]
    %v3517 = vld [vmem:[%s3507 + $0x24] sm:$0xf]
    %v3518 = vld [vmem:[%s3507 + $0x28] sm:$0xf]
    %v3519 = vld [vmem:[%s3507 + $0x2c] sm:$0xf]
    %v3520 = vld [vmem:[%s3507 + $0x30] sm:$0xf]
    %v3521 = vld [vmem:[%s3507 + $0x34] sm:$0xf]
    %v3522 = vld [vmem:[%s3507 + $0x38] sm:$0xf]
    %v3523 = vld [vmem:[%s3507 + $0x3c] sm:$0xf]
    %v3524 = vpack.c.bf16 %v3502, %v3502
    %v3541 = vunpack.c.l.b16 %v3508
    %v3542 = vunpack.c.l.b16 %v3509
    %v3543 = vunpack.c.l.b16 %v3510
    %v3544 = vunpack.c.l.b16 %v3511
    %v3545 = vunpack.c.l.b16 %v3512
    %v3546 = vunpack.c.l.b16 %v3513
    %v3547 = vunpack.c.l.b16 %v3514
    %v3548 = vunpack.c.l.b16 %v3515
    %v3549 = vunpack.c.l.b16 %v3516
    %v3550 = vunpack.c.l.b16 %v3517
    %v3551 = vunpack.c.l.b16 %v3518
    %v3552 = vunpack.c.l.b16 %v3519
    %v3553 = vunpack.c.l.b16 %v3520
    %v3554 = vunpack.c.l.b16 %v3521
    %v3555 = vunpack.c.l.b16 %v3522
    %v3556 = vunpack.c.l.b16 %v3523
    %v3557 = vpack.c.b16 %v3542, %v3541
    %v3558 = vpack.c.b16 %v3544, %v3543
    %v3559 = vpack.c.b16 %v3546, %v3545
    %v3560 = vpack.c.b16 %v3548, %v3547
    %v3561 = vpack.c.b16 %v3550, %v3549
    %v3562 = vpack.c.b16 %v3552, %v3551
    %v3563 = vpack.c.b16 %v3554, %v3553
    %v3564 = vpack.c.b16 %v3556, %v3555
    %3573 = vmatprep.subr.bf16.mxu0 0
    %3574 = vmatpush1.bf16.msra.mxu0 %v3557
    %3575 = vmatprep.subr.bf16.mxu0 0
    %3576 = vmatpush1.bf16.msra.mxu0 %v3558
    %3577 = vmatprep.subr.bf16.mxu0 0
    %3578 = vmatpush1.bf16.msra.mxu0 %v3559
    %3579 = vmatprep.subr.bf16.mxu0 0
    %3580 = vmatpush1.bf16.msra.mxu0 %v3560
    %3581 = vmatprep.subr.bf16.mxu0 0
    %3582 = vmatpush1.bf16.msra.mxu0 %v3561
    %3583 = vmatprep.subr.bf16.mxu0 0
    %3584 = vmatpush1.bf16.msra.mxu0 %v3562
    %3585 = vmatprep.subr.bf16.mxu0 0
    %3586 = vmatpush1.bf16.msra.mxu0 %v3563
    %3587 = vmatprep.subr.bf16.mxu0 0
    %3588 = vmatpush1.bf16.msra.mxu0 %v3564
    %3589 = vmatprep.subr.bf16.mxu0 0
    %3590 = vmatpush1.bf16.msra.mxu0 0
    %3591 = vmatprep.subr.bf16.mxu0 0
    %3592 = vmatpush1.bf16.msra.mxu0 0
    %3593 = vmatprep.subr.bf16.mxu0 0
    %3594 = vmatpush1.bf16.msra.mxu0 0
    %3595 = vmatprep.subr.bf16.mxu0 0
    %3596 = vmatpush1.bf16.msra.mxu0 0
    %3597 = vmatprep.subr.bf16.mxu0 0
    %3598 = vmatpush1.bf16.msra.mxu0 0
    %3599 = vmatprep.subr.bf16.mxu0 0
    %3600 = vmatpush1.bf16.msra.mxu0 0
    %3601 = vmatprep.subr.bf16.mxu0 0
    %3602 = vmatpush1.bf16.msra.mxu0 0
    %3603 = vmatprep.subr.bf16.mxu0 0
    %3604 = vmatpush1.bf16.msra.mxu0 0
    %3605 = vmatprep.mubr.bf16.mxu0 0
    %3606 = vmatmul.mubr.bf16.gmra.mrb[0].mxu0 %v3524
    %v3607 = vpop.f32.mrb[0].mxu0
    %v3608 = vadd.f32 0.0, %v3607
    %v3609 = vpop.f32.mrb[0].mxu0
    %v3610 = vpop.f32.mrb[0].mxu0
    %v3611 = vpop.f32.mrb[0].mxu0
    %3612 = vdwg.mxu0
    %v3613 = vadd.f32 %v3461, %v3608
    %s3614 = scalar_lea.vmem %s8, 12
    %v3615 = vld [vmem:[%s3614] sm:$0x3]
    %v3617 = vsel %vm291, %v3615, 0
    %3619 = vmatprep.subr.bf16.mxu0 0
    %3620 = vmatpush1.bf16.msra.mxu0 %v2702
    %3621 = vmatprep.subr.bf16.mxu0 0
    %3622 = vmatpush1.bf16.msra.mxu0 %v2703
    %3623 = vmatprep.subr.bf16.mxu0 0
    %3624 = vmatpush1.bf16.msra.mxu0 %v2704
    %3625 = vmatprep.subr.bf16.mxu0 0
    %3626 = vmatpush1.bf16.msra.mxu0 %v2705
    %3627 = vmatprep.subr.bf16.mxu0 0
    %3628 = vmatpush1.bf16.msra.mxu0 0
    %3629 = vmatprep.subr.bf16.mxu0 0
    %3630 = vmatpush1.bf16.msra.mxu0 0
    %3631 = vmatprep.subr.bf16.mxu0 0
    %3632 = vmatpush1.bf16.msra.mxu0 0
    %3633 = vmatprep.subr.bf16.mxu0 0
    %3634 = vmatpush1.bf16.msra.mxu0 0
    %3635 = vmatprep.subr.bf16.mxu0 0
    %3636 = vmatpush1.bf16.msra.mxu0 0
    %3637 = vmatprep.subr.bf16.mxu0 0
    %3638 = vmatpush1.bf16.msra.mxu0 0
    %3639 = vmatprep.subr.bf16.mxu0 0
    %3640 = vmatpush1.bf16.msra.mxu0 0
    %3641 = vmatprep.subr.bf16.mxu0 0
    %3642 = vmatpush1.bf16.msra.mxu0 0
    %3643 = vmatprep.subr.bf16.mxu0 0
    %3644 = vmatpush1.bf16.msra.mxu0 0
    %3645 = vmatprep.subr.bf16.mxu0 0
    %3646 = vmatpush1.bf16.msra.mxu0 0
    %3647 = vmatprep.subr.bf16.mxu0 0
    %3648 = vmatpush1.bf16.msra.mxu0 0
    %3649 = vmatprep.subr.bf16.mxu0 0
    %3650 = vmatpush1.bf16.msra.mxu0 0
    %3651 = vmatprep.mubr.bf16.mxu0 0
    %3652 = vmatmul.mubr.bf16.gmra.mrb[0].mxu0 %v3617
    %v3653 = vpop.f32.mrb[0].mxu0
    %v3654 = vadd.f32 0.0, %v3653
    %v3655 = vpop.f32.mrb[0].mxu0
    %v3656 = vpop.f32.mrb[0].mxu0
    %v3657 = vpop.f32.mrb[0].mxu0
    %3658 = vdwg.mxu0
    %s3659 = scalar_lea.vmem [#allocation7], 384
    %v3660 = vld [vmem:[%s3659] sm:$0xf]
    %v3661 = vld [vmem:[%s3659 + $0x4] sm:$0xf]
    %v3662 = vld [vmem:[%s3659 + $0x8] sm:$0xf]
    %v3663 = vld [vmem:[%s3659 + $0xc] sm:$0xf]
    %v3664 = vld [vmem:[%s3659 + $0x10] sm:$0xf]
    %v3665 = vld [vmem:[%s3659 + $0x14] sm:$0xf]
    %v3666 = vld [vmem:[%s3659 + $0x18] sm:$0xf]
    %v3667 = vld [vmem:[%s3659 + $0x1c] sm:$0xf]
    %v3668 = vld [vmem:[%s3659 + $0x20] sm:$0xf]
    %v3669 = vld [vmem:[%s3659 + $0x24] sm:$0xf]
    %v3670 = vld [vmem:[%s3659 + $0x28] sm:$0xf]
    %v3671 = vld [vmem:[%s3659 + $0x2c] sm:$0xf]
    %v3672 = vld [vmem:[%s3659 + $0x30] sm:$0xf]
    %v3673 = vld [vmem:[%s3659 + $0x34] sm:$0xf]
    %v3674 = vld [vmem:[%s3659 + $0x38] sm:$0xf]
    %v3675 = vld [vmem:[%s3659 + $0x3c] sm:$0xf]
    %v3676 = vpack.c.bf16 %v3654, %v3654
    %v3693 = vunpack.c.l.b16 %v3660
    %v3694 = vunpack.c.l.b16 %v3661
    %v3695 = vunpack.c.l.b16 %v3662
    %v3696 = vunpack.c.l.b16 %v3663
    %v3697 = vunpack.c.l.b16 %v3664
    %v3698 = vunpack.c.l.b16 %v3665
    %v3699 = vunpack.c.l.b16 %v3666
    %v3700 = vunpack.c.l.b16 %v3667
    %v3701 = vunpack.c.l.b16 %v3668
    %v3702 = vunpack.c.l.b16 %v3669
    %v3703 = vunpack.c.l.b16 %v3670
    %v3704 = vunpack.c.l.b16 %v3671
    %v3705 = vunpack.c.l.b16 %v3672
    %v3706 = vunpack.c.l.b16 %v3673
    %v3707 = vunpack.c.l.b16 %v3674
    %v3708 = vunpack.c.l.b16 %v3675
    %v3709 = vpack.c.b16 %v3694, %v3693
    %v3710 = vpack.c.b16 %v3696, %v3695
    %v3711 = vpack.c.b16 %v3698, %v3697
    %v3712 = vpack.c.b16 %v3700, %v3699
    %v3713 = vpack.c.b16 %v3702, %v3701
    %v3714 = vpack.c.b16 %v3704, %v3703
    %v3715 = vpack.c.b16 %v3706, %v3705
    %v3716 = vpack.c.b16 %v3708, %v3707
    %3725 = vmatprep.subr.bf16.mxu0 0
    %3726 = vmatpush1.bf16.msra.mxu0 %v3709
    %3727 = vmatprep.subr.bf16.mxu0 0
    %3728 = vmatpush1.bf16.msra.mxu0 %v3710
    %3729 = vmatprep.subr.bf16.mxu0 0
    %3730 = vmatpush1.bf16.msra.mxu0 %v3711
    %3731 = vmatprep.subr.bf16.mxu0 0
    %3732 = vmatpush1.bf16.msra.mxu0 %v3712
    %3733 = vmatprep.subr.bf16.mxu0 0
    %3734 = vmatpush1.bf16.msra.mxu0 %v3713
    %3735 = vmatprep.subr.bf16.mxu0 0
    %3736 = vmatpush1.bf16.msra.mxu0 %v3714
    %3737 = vmatprep.subr.bf16.mxu0 0
    %3738 = vmatpush1.bf16.msra.mxu0 %v3715
    %3739 = vmatprep.subr.bf16.mxu0 0
    %3740 = vmatpush1.bf16.msra.mxu0 %v3716
    %3741 = vmatprep.subr.bf16.mxu0 0
    %3742 = vmatpush1.bf16.msra.mxu0 0
    %3743 = vmatprep.subr.bf16.mxu0 0
    %3744 = vmatpush1.bf16.msra.mxu0 0
    %3745 = vmatprep.subr.bf16.mxu0 0
    %3746 = vmatpush1.bf16.msra.mxu0 0
    %3747 = vmatprep.subr.bf16.mxu0 0
    %3748 = vmatpush1.bf16.msra.mxu0 0
    %3749 = vmatprep.subr.bf16.mxu0 0
    %3750 = vmatpush1.bf16.msra.mxu0 0
    %3751 = vmatprep.subr.bf16.mxu0 0
    %3752 = vmatpush1.bf16.msra.mxu0 0
    %3753 = vmatprep.subr.bf16.mxu0 0
    %3754 = vmatpush1.bf16.msra.mxu0 0
    %3755 = vmatprep.subr.bf16.mxu0 0
    %3756 = vmatpush1.bf16.msra.mxu0 0
    %3757 = vmatprep.mubr.bf16.mxu0 0
    %3758 = vmatmul.mubr.bf16.gmra.mrb[0].mxu0 %v3676
    %v3759 = vpop.f32.mrb[0].mxu0
    %v3760 = vadd.f32 0.0, %v3759
    %v3761 = vpop.f32.mrb[0].mxu0
    %v3762 = vpop.f32.mrb[0].mxu0
    %v3763 = vpop.f32.mrb[0].mxu0
    %3764 = vdwg.mxu0
    %v3765 = vadd.f32 %v3613, %v3760
    %s3766 = scalar_lea.vmem %s8, 14
    %v3767 = vld [vmem:[%s3766] sm:$0x3]
    %v3769 = vsel %vm291, %v3767, 0
    %3771 = vmatprep.subr.bf16.mxu0 0
    %3772 = vmatpush1.bf16.msra.mxu0 %v2702
    %3773 = vmatprep.subr.bf16.mxu0 0
    %3774 = vmatpush1.bf16.msra.mxu0 %v2703
    %3775 = vmatprep.subr.bf16.mxu0 0
    %3776 = vmatpush1.bf16.msra.mxu0 %v2704
    %3777 = vmatprep.subr.bf16.mxu0 0
    %3778 = vmatpush1.bf16.msra.mxu0 %v2705
    %3779 = vmatprep.subr.bf16.mxu0 0
    %3780 = vmatpush1.bf16.msra.mxu0 0
    %3781 = vmatprep.subr.bf16.mxu0 0
    %3782 = vmatpush1.bf16.msra.mxu0 0
    %3783 = vmatprep.subr.bf16.mxu0 0
    %3784 = vmatpush1.bf16.msra.mxu0 0
    %3785 = vmatprep.subr.bf16.mxu0 0
    %3786 = vmatpush1.bf16.msra.mxu0 0
    %3787 = vmatprep.subr.bf16.mxu0 0
    %3788 = vmatpush1.bf16.msra.mxu0 0
    %3789 = vmatprep.subr.bf16.mxu0 0
    %3790 = vmatpush1.bf16.msra.mxu0 0
    %3791 = vmatprep.subr.bf16.mxu0 0
    %3792 = vmatpush1.bf16.msra.mxu0 0
    %3793 = vmatprep.subr.bf16.mxu0 0
    %3794 = vmatpush1.bf16.msra.mxu0 0
    %3795 = vmatprep.subr.bf16.mxu0 0
    %3796 = vmatpush1.bf16.msra.mxu0 0
    %3797 = vmatprep.subr.bf16.mxu0 0
    %3798 = vmatpush1.bf16.msra.mxu0 0
    %3799 = vmatprep.subr.bf16.mxu0 0
    %3800 = vmatpush1.bf16.msra.mxu0 0
    %3801 = vmatprep.subr.bf16.mxu0 0
    %3802 = vmatpush1.bf16.msra.mxu0 0
    %3803 = vmatprep.mubr.bf16.mxu0 0
    %3804 = vmatmul.mubr.bf16.gmra.mrb[0].mxu0 %v3769
    %v3805 = vpop.f32.mrb[0].mxu0
    %v3806 = vadd.f32 0.0, %v3805
    %v3807 = vpop.f32.mrb[0].mxu0
    %v3808 = vpop.f32.mrb[0].mxu0
    %v3809 = vpop.f32.mrb[0].mxu0
    %3810 = vdwg.mxu0
    %s3811 = scalar_lea.vmem [#allocation7], 448
    %v3812 = vld [vmem:[%s3811] sm:$0xf]
    %v3813 = vld [vmem:[%s3811 + $0x4] sm:$0xf]
    %v3814 = vld [vmem:[%s3811 + $0x8] sm:$0xf]
    %v3815 = vld [vmem:[%s3811 + $0xc] sm:$0xf]
    %v3816 = vld [vmem:[%s3811 + $0x10] sm:$0xf]
    %v3817 = vld [vmem:[%s3811 + $0x14] sm:$0xf]
    %v3818 = vld [vmem:[%s3811 + $0x18] sm:$0xf]
    %v3819 = vld [vmem:[%s3811 + $0x1c] sm:$0xf]
    %v3820 = vld [vmem:[%s3811 + $0x20] sm:$0xf]
    %v3821 = vld [vmem:[%s3811 + $0x24] sm:$0xf]
    %v3822 = vld [vmem:[%s3811 + $0x28] sm:$0xf]
    %v3823 = vld [vmem:[%s3811 + $0x2c] sm:$0xf]
    %v3824 = vld [vmem:[%s3811 + $0x30] sm:$0xf]
    %v3825 = vld [vmem:[%s3811 + $0x34] sm:$0xf]
    %v3826 = vld [vmem:[%s3811 + $0x38] sm:$0xf]
    %v3827 = vld [vmem:[%s3811 + $0x3c] sm:$0xf]
    %v3828 = vpack.c.bf16 %v3806, %v3806
    %v3845 = vunpack.c.l.b16 %v3812
    %v3846 = vunpack.c.l.b16 %v3813
    %v3847 = vunpack.c.l.b16 %v3814
    %v3848 = vunpack.c.l.b16 %v3815
    %v3849 = vunpack.c.l.b16 %v3816
    %v3850 = vunpack.c.l.b16 %v3817
    %v3851 = vunpack.c.l.b16 %v3818
    %v3852 = vunpack.c.l.b16 %v3819
    %v3853 = vunpack.c.l.b16 %v3820
    %v3854 = vunpack.c.l.b16 %v3821
    %v3855 = vunpack.c.l.b16 %v3822
    %v3856 = vunpack.c.l.b16 %v3823
    %v3857 = vunpack.c.l.b16 %v3824
    %v3858 = vunpack.c.l.b16 %v3825
    %v3859 = vunpack.c.l.b16 %v3826
    %v3860 = vunpack.c.l.b16 %v3827
    %v3861 = vpack.c.b16 %v3846, %v3845
    %v3862 = vpack.c.b16 %v3848, %v3847
    %v3863 = vpack.c.b16 %v3850, %v3849
    %v3864 = vpack.c.b16 %v3852, %v3851
    %v3865 = vpack.c.b16 %v3854, %v3853
    %v3866 = vpack.c.b16 %v3856, %v3855
    %v3867 = vpack.c.b16 %v3858, %v3857
    %v3868 = vpack.c.b16 %v3860, %v3859
    %3877 = vmatprep.subr.bf16.mxu0 0
    %3878 = vmatpush1.bf16.msra.mxu0 %v3861
    %3879 = vmatprep.subr.bf16.mxu0 0
    %3880 = vmatpush1.bf16.msra.mxu0 %v3862
    %3881 = vmatprep.subr.bf16.mxu0 0
    %3882 = vmatpush1.bf16.msra.mxu0 %v3863
    %3883 = vmatprep.subr.bf16.mxu0 0
    %3884 = vmatpush1.bf16.msra.mxu0 %v3864
    %3885 = vmatprep.subr.bf16.mxu0 0
    %3886 = vmatpush1.bf16.msra.mxu0 %v3865
    %3887 = vmatprep.subr.bf16.mxu0 0
    %3888 = vmatpush1.bf16.msra.mxu0 %v3866
    %3889 = vmatprep.subr.bf16.mxu0 0
    %3890 = vmatpush1.bf16.msra.mxu0 %v3867
    %3891 = vmatprep.subr.bf16.mxu0 0
    %3892 = vmatpush1.bf16.msra.mxu0 %v3868
    %3893 = vmatprep.subr.bf16.mxu0 0
    %3894 = vmatpush1.bf16.msra.mxu0 0
    %3895 = vmatprep.subr.bf16.mxu0 0
    %3896 = vmatpush1.bf16.msra.mxu0 0
    %3897 = vmatprep.subr.bf16.mxu0 0
    %3898 = vmatpush1.bf16.msra.mxu0 0
    %3899 = vmatprep.subr.bf16.mxu0 0
    %3900 = vmatpush1.bf16.msra.mxu0 0
    %3901 = vmatprep.subr.bf16.mxu0 0
    %3902 = vmatpush1.bf16.msra.mxu0 0
    %3903 = vmatprep.subr.bf16.mxu0 0
    %3904 = vmatpush1.bf16.msra.mxu0 0
    %3905 = vmatprep.subr.bf16.mxu0 0
    %3906 = vmatpush1.bf16.msra.mxu0 0
    %3907 = vmatprep.subr.bf16.mxu0 0
    %3908 = vmatpush1.bf16.msra.mxu0 0
    %3909 = vmatprep.mubr.bf16.mxu0 0
    %3910 = vmatmul.mubr.bf16.gmra.mrb[0].mxu0 %v3828
    %v3911 = vpop.f32.mrb[0].mxu0
    %v3912 = vadd.f32 0.0, %v3911
    %v3913 = vpop.f32.mrb[0].mxu0
    %v3914 = vpop.f32.mrb[0].mxu0
    %v3915 = vpop.f32.mrb[0].mxu0
    %3916 = vdwg.mxu0
    %v3917 = vadd.f32 %v3765, %v3912
    %s3918 = scalar_lea.vmem %s8, 16
    %v3919 = vld [vmem:[%s3918] sm:$0x3]
    %v3921 = vsel %vm291, %v3919, 0
    %3923 = vmatprep.subr.bf16.mxu0 0
    %3924 = vmatpush1.bf16.msra.mxu0 %v2702
    %3925 = vmatprep.subr.bf16.mxu0 0
    %3926 = vmatpush1.bf16.msra.mxu0 %v2703
    %3927 = vmatprep.subr.bf16.mxu0 0
    %3928 = vmatpush1.bf16.msra.mxu0 %v2704
    %3929 = vmatprep.subr.bf16.mxu0 0
    %3930 = vmatpush1.bf16.msra.mxu0 %v2705
    %3931 = vmatprep.subr.bf16.mxu0 0
    %3932 = vmatpush1.bf16.msra.mxu0 0
    %3933 = vmatprep.subr.bf16.mxu0 0
    %3934 = vmatpush1.bf16.msra.mxu0 0
    %3935 = vmatprep.subr.bf16.mxu0 0
    %3936 = vmatpush1.bf16.msra.mxu0 0
    %3937 = vmatprep.subr.bf16.mxu0 0
    %3938 = vmatpush1.bf16.msra.mxu0 0
    %3939 = vmatprep.subr.bf16.mxu0 0
    %3940 = vmatpush1.bf16.msra.mxu0 0
    %3941 = vmatprep.subr.bf16.mxu0 0
    %3942 = vmatpush1.bf16.msra.mxu0 0
    %3943 = vmatprep.subr.bf16.mxu0 0
    %3944 = vmatpush1.bf16.msra.mxu0 0
    %3945 = vmatprep.subr.bf16.mxu0 0
    %3946 = vmatpush1.bf16.msra.mxu0 0
    %3947 = vmatprep.subr.bf16.mxu0 0
    %3948 = vmatpush1.bf16.msra.mxu0 0
    %3949 = vmatprep.subr.bf16.mxu0 0
    %3950 = vmatpush1.bf16.msra.mxu0 0
    %3951 = vmatprep.subr.bf16.mxu0 0
    %3952 = vmatpush1.bf16.msra.mxu0 0
    %3953 = vmatprep.subr.bf16.mxu0 0
    %3954 = vmatpush1.bf16.msra.mxu0 0
    %3955 = vmatprep.mubr.bf16.mxu0 0
    %3956 = vmatmul.mubr.bf16.gmra.mrb[0].mxu0 %v3921
    %v3957 = vpop.f32.mrb[0].mxu0
    %v3958 = vadd.f32 0.0, %v3957
    %v3959 = vpop.f32.mrb[0].mxu0
    %v3960 = vpop.f32.mrb[0].mxu0
    %v3961 = vpop.f32.mrb[0].mxu0
    %3962 = vdwg.mxu0
    %s3963 = scalar_lea.vmem [#allocation7], 512
    %v3964 = vld [vmem:[%s3963] sm:$0xf]
    %v3965 = vld [vmem:[%s3963 + $0x4] sm:$0xf]
    %v3966 = vld [vmem:[%s3963 + $0x8] sm:$0xf]
    %v3967 = vld [vmem:[%s3963 + $0xc] sm:$0xf]
    %v3968 = vld [vmem:[%s3963 + $0x10] sm:$0xf]
    %v3969 = vld [vmem:[%s3963 + $0x14] sm:$0xf]
    %v3970 = vld [vmem:[%s3963 + $0x18] sm:$0xf]
    %v3971 = vld [vmem:[%s3963 + $0x1c] sm:$0xf]
    %v3972 = vld [vmem:[%s3963 + $0x20] sm:$0xf]
    %v3973 = vld [vmem:[%s3963 + $0x24] sm:$0xf]
    %v3974 = vld [vmem:[%s3963 + $0x28] sm:$0xf]
    %v3975 = vld [vmem:[%s3963 + $0x2c] sm:$0xf]
    %v3976 = vld [vmem:[%s3963 + $0x30] sm:$0xf]
    %v3977 = vld [vmem:[%s3963 + $0x34] sm:$0xf]
    %v3978 = vld [vmem:[%s3963 + $0x38] sm:$0xf]
    %v3979 = vld [vmem:[%s3963 + $0x3c] sm:$0xf]
    %v3980 = vpack.c.bf16 %v3958, %v3958
    %v3997 = vunpack.c.l.b16 %v3964
    %v3998 = vunpack.c.l.b16 %v3965
    %v3999 = vunpack.c.l.b16 %v3966
    %v4000 = vunpack.c.l.b16 %v3967
    %v4001 = vunpack.c.l.b16 %v3968
    %v4002 = vunpack.c.l.b16 %v3969
    %v4003 = vunpack.c.l.b16 %v3970
    %v4004 = vunpack.c.l.b16 %v3971
    %v4005 = vunpack.c.l.b16 %v3972
    %v4006 = vunpack.c.l.b16 %v3973
    %v4007 = vunpack.c.l.b16 %v3974
    %v4008 = vunpack.c.l.b16 %v3975
    %v4009 = vunpack.c.l.b16 %v3976
    %v4010 = vunpack.c.l.b16 %v3977
    %v4011 = vunpack.c.l.b16 %v3978
    %v4012 = vunpack.c.l.b16 %v3979
    %v4013 = vpack.c.b16 %v3998, %v3997
    %v4014 = vpack.c.b16 %v4000, %v3999
    %v4015 = vpack.c.b16 %v4002, %v4001
    %v4016 = vpack.c.b16 %v4004, %v4003
    %v4017 = vpack.c.b16 %v4006, %v4005
    %v4018 = vpack.c.b16 %v4008, %v4007
    %v4019 = vpack.c.b16 %v4010, %v4009
    %v4020 = vpack.c.b16 %v4012, %v4011
    %4029 = vmatprep.subr.bf16.mxu0 0
    %4030 = vmatpush1.bf16.msra.mxu0 %v4013
    %4031 = vmatprep.subr.bf16.mxu0 0
    %4032 = vmatpush1.bf16.msra.mxu0 %v4014
    %4033 = vmatprep.subr.bf16.mxu0 0
    %4034 = vmatpush1.bf16.msra.mxu0 %v4015
    %4035 = vmatprep.subr.bf16.mxu0 0
    %4036 = vmatpush1.bf16.msra.mxu0 %v4016
    %4037 = vmatprep.subr.bf16.mxu0 0
    %4038 = vmatpush1.bf16.msra.mxu0 %v4017
    %4039 = vmatprep.subr.bf16.mxu0 0
    %4040 = vmatpush1.bf16.msra.mxu0 %v4018
    %4041 = vmatprep.subr.bf16.mxu0 0
    %4042 = vmatpush1.bf16.msra.mxu0 %v4019
    %4043 = vmatprep.subr.bf16.mxu0 0
    %4044 = vmatpush1.bf16.msra.mxu0 %v4020
    %4045 = vmatprep.subr.bf16.mxu0 0
    %4046 = vmatpush1.bf16.msra.mxu0 0
    %4047 = vmatprep.subr.bf16.mxu0 0
    %4048 = vmatpush1.bf16.msra.mxu0 0
    %4049 = vmatprep.subr.bf16.mxu0 0
    %4050 = vmatpush1.bf16.msra.mxu0 0
    %4051 = vmatprep.subr.bf16.mxu0 0
    %4052 = vmatpush1.bf16.msra.mxu0 0
    %4053 = vmatprep.subr.bf16.mxu0 0
    %4054 = vmatpush1.bf16.msra.mxu0 0
    %4055 = vmatprep.subr.bf16.mxu0 0
    %4056 = vmatpush1.bf16.msra.mxu0 0
    %4057 = vmatprep.subr.bf16.mxu0 0
    %4058 = vmatpush1.bf16.msra.mxu0 0
    %4059 = vmatprep.subr.bf16.mxu0 0
    %4060 = vmatpush1.bf16.msra.mxu0 0
    %4061 = vmatprep.mubr.bf16.mxu0 0
    %4062 = vmatmul.mubr.bf16.gmra.mrb[0].mxu0 %v3980
    %v4063 = vpop.f32.mrb[0].mxu0
    %v4064 = vadd.f32 0.0, %v4063
    %v4065 = vpop.f32.mrb[0].mxu0
    %v4066 = vpop.f32.mrb[0].mxu0
    %v4067 = vpop.f32.mrb[0].mxu0
    %4068 = vdwg.mxu0
    %v4069 = vadd.f32 %v3917, %v4064
    %s4070 = scalar_lea.vmem %s8, 18
    %v4071 = vld [vmem:[%s4070] sm:$0x3]
    %v4073 = vsel %vm291, %v4071, 0
    %4075 = vmatprep.subr.bf16.mxu0 0
    %4076 = vmatpush1.bf16.msra.mxu0 %v2702
    %4077 = vmatprep.subr.bf16.mxu0 0
    %4078 = vmatpush1.bf16.msra.mxu0 %v2703
    %4079 = vmatprep.subr.bf16.mxu0 0
    %4080 = vmatpush1.bf16.msra.mxu0 %v2704
    %4081 = vmatprep.subr.bf16.mxu0 0
    %4082 = vmatpush1.bf16.msra.mxu0 %v2705
    %4083 = vmatprep.subr.bf16.mxu0 0
    %4084 = vmatpush1.bf16.msra.mxu0 0
    %4085 = vmatprep.subr.bf16.mxu0 0
    %4086 = vmatpush1.bf16.msra.mxu0 0
    %4087 = vmatprep.subr.bf16.mxu0 0
    %4088 = vmatpush1.bf16.msra.mxu0 0
    %4089 = vmatprep.subr.bf16.mxu0 0
    %4090 = vmatpush1.bf16.msra.mxu0 0
    %4091 = vmatprep.subr.bf16.mxu0 0
    %4092 = vmatpush1.bf16.msra.mxu0 0
    %4093 = vmatprep.subr.bf16.mxu0 0
    %4094 = vmatpush1.bf16.msra.mxu0 0
    %4095 = vmatprep.subr.bf16.mxu0 0
    %4096 = vmatpush1.bf16.msra.mxu0 0
    %4097 = vmatprep.subr.bf16.mxu0 0
    %4098 = vmatpush1.bf16.msra.mxu0 0
    %4099 = vmatprep.subr.bf16.mxu0 0
    %4100 = vmatpush1.bf16.msra.mxu0 0
    %4101 = vmatprep.subr.bf16.mxu0 0
    %4102 = vmatpush1.bf16.msra.mxu0 0
    %4103 = vmatprep.subr.bf16.mxu0 0
    %4104 = vmatpush1.bf16.msra.mxu0 0
    %4105 = vmatprep.subr.bf16.mxu0 0
    %4106 = vmatpush1.bf16.msra.mxu0 0
    %4107 = vmatprep.mubr.bf16.mxu0 0
    %4108 = vmatmul.mubr.bf16.gmra.mrb[0].mxu0 %v4073
    %v4109 = vpop.f32.mrb[0].mxu0
    %v4110 = vadd.f32 0.0, %v4109
    %v4111 = vpop.f32.mrb[0].mxu0
    %v4112 = vpop.f32.mrb[0].mxu0
    %v4113 = vpop.f32.mrb[0].mxu0
    %4114 = vdwg.mxu0
    %s4115 = scalar_lea.vmem [#allocation7], 576
    %v4116 = vld [vmem:[%s4115] sm:$0xf]
    %v4117 = vld [vmem:[%s4115 + $0x4] sm:$0xf]
    %v4118 = vld [vmem:[%s4115 + $0x8] sm:$0xf]
    %v4119 = vld [vmem:[%s4115 + $0xc] sm:$0xf]
    %v4120 = vld [vmem:[%s4115 + $0x10] sm:$0xf]
    %v4121 = vld [vmem:[%s4115 + $0x14] sm:$0xf]
    %v4122 = vld [vmem:[%s4115 + $0x18] sm:$0xf]
    %v4123 = vld [vmem:[%s4115 + $0x1c] sm:$0xf]
    %v4124 = vld [vmem:[%s4115 + $0x20] sm:$0xf]
    %v4125 = vld [vmem:[%s4115 + $0x24] sm:$0xf]
    %v4126 = vld [vmem:[%s4115 + $0x28] sm:$0xf]
    %v4127 = vld [vmem:[%s4115 + $0x2c] sm:$0xf]
    %v4128 = vld [vmem:[%s4115 + $0x30] sm:$0xf]
    %v4129 = vld [vmem:[%s4115 + $0x34] sm:$0xf]
    %v4130 = vld [vmem:[%s4115 + $0x38] sm:$0xf]
    %v4131 = vld [vmem:[%s4115 + $0x3c] sm:$0xf]
    %v4132 = vpack.c.bf16 %v4110, %v4110
    %v4149 = vunpack.c.l.b16 %v4116
    %v4150 = vunpack.c.l.b16 %v4117
    %v4151 = vunpack.c.l.b16 %v4118
    %v4152 = vunpack.c.l.b16 %v4119
    %v4153 = vunpack.c.l.b16 %v4120
    %v4154 = vunpack.c.l.b16 %v4121
    %v4155 = vunpack.c.l.b16 %v4122
    %v4156 = vunpack.c.l.b16 %v4123
    %v4157 = vunpack.c.l.b16 %v4124
    %v4158 = vunpack.c.l.b16 %v4125
    %v4159 = vunpack.c.l.b16 %v4126
    %v4160 = vunpack.c.l.b16 %v4127
    %v4161 = vunpack.c.l.b16 %v4128
    %v4162 = vunpack.c.l.b16 %v4129
    %v4163 = vunpack.c.l.b16 %v4130
    %v4164 = vunpack.c.l.b16 %v4131
    %v4165 = vpack.c.b16 %v4150, %v4149
    %v4166 = vpack.c.b16 %v4152, %v4151
    %v4167 = vpack.c.b16 %v4154, %v4153
    %v4168 = vpack.c.b16 %v4156, %v4155
    %v4169 = vpack.c.b16 %v4158, %v4157
    %v4170 = vpack.c.b16 %v4160, %v4159
    %v4171 = vpack.c.b16 %v4162, %v4161
    %v4172 = vpack.c.b16 %v4164, %v4163
    %4181 = vmatprep.subr.bf16.mxu0 0
    %4182 = vmatpush1.bf16.msra.mxu0 %v4165
    %4183 = vmatprep.subr.bf16.mxu0 0
    %4184 = vmatpush1.bf16.msra.mxu0 %v4166
    %4185 = vmatprep.subr.bf16.mxu0 0
    %4186 = vmatpush1.bf16.msra.mxu0 %v4167
    %4187 = vmatprep.subr.bf16.mxu0 0
    %4188 = vmatpush1.bf16.msra.mxu0 %v4168
    %4189 = vmatprep.subr.bf16.mxu0 0
    %4190 = vmatpush1.bf16.msra.mxu0 %v4169
    %4191 = vmatprep.subr.bf16.mxu0 0
    %4192 = vmatpush1.bf16.msra.mxu0 %v4170
    %4193 = vmatprep.subr.bf16.mxu0 0
    %4194 = vmatpush1.bf16.msra.mxu0 %v4171
    %4195 = vmatprep.subr.bf16.mxu0 0
    %4196 = vmatpush1.bf16.msra.mxu0 %v4172
    %4197 = vmatprep.subr.bf16.mxu0 0
    %4198 = vmatpush1.bf16.msra.mxu0 0
    %4199 = vmatprep.subr.bf16.mxu0 0
    %4200 = vmatpush1.bf16.msra.mxu0 0
    %4201 = vmatprep.subr.bf16.mxu0 0
    %4202 = vmatpush1.bf16.msra.mxu0 0
    %4203 = vmatprep.subr.bf16.mxu0 0
    %4204 = vmatpush1.bf16.msra.mxu0 0
    %4205 = vmatprep.subr.bf16.mxu0 0
    %4206 = vmatpush1.bf16.msra.mxu0 0
    %4207 = vmatprep.subr.bf16.mxu0 0
    %4208 = vmatpush1.bf16.msra.mxu0 0
    %4209 = vmatprep.subr.bf16.mxu0 0
    %4210 = vmatpush1.bf16.msra.mxu0 0
    %4211 = vmatprep.subr.bf16.mxu0 0
    %4212 = vmatpush1.bf16.msra.mxu0 0
    %4213 = vmatprep.mubr.bf16.mxu0 0
    %4214 = vmatmul.mubr.bf16.gmra.mrb[0].mxu0 %v4132
    %v4215 = vpop.f32.mrb[0].mxu0
    %v4216 = vadd.f32 0.0, %v4215
    %v4217 = vpop.f32.mrb[0].mxu0
    %v4218 = vpop.f32.mrb[0].mxu0
    %v4219 = vpop.f32.mrb[0].mxu0
    %4220 = vdwg.mxu0
    %v4221 = vadd.f32 %v4069, %v4216
    %s4222 = scalar_lea.vmem %s8, 20
    %v4223 = vld [vmem:[%s4222] sm:$0x3]
    %v4225 = vsel %vm291, %v4223, 0
    %4227 = vmatprep.subr.bf16.mxu0 0
    %4228 = vmatpush1.bf16.msra.mxu0 %v2702
    %4229 = vmatprep.subr.bf16.mxu0 0
    %4230 = vmatpush1.bf16.msra.mxu0 %v2703
    %4231 = vmatprep.subr.bf16.mxu0 0
    %4232 = vmatpush1.bf16.msra.mxu0 %v2704
    %4233 = vmatprep.subr.bf16.mxu0 0
    %4234 = vmatpush1.bf16.msra.mxu0 %v2705
    %4235 = vmatprep.subr.bf16.mxu0 0
    %4236 = vmatpush1.bf16.msra.mxu0 0
    %4237 = vmatprep.subr.bf16.mxu0 0
    %4238 = vmatpush1.bf16.msra.mxu0 0
    %4239 = vmatprep.subr.bf16.mxu0 0
    %4240 = vmatpush1.bf16.msra.mxu0 0
    %4241 = vmatprep.subr.bf16.mxu0 0
    %4242 = vmatpush1.bf16.msra.mxu0 0
    %4243 = vmatprep.subr.bf16.mxu0 0
    %4244 = vmatpush1.bf16.msra.mxu0 0
    %4245 = vmatprep.subr.bf16.mxu0 0
    %4246 = vmatpush1.bf16.msra.mxu0 0
    %4247 = vmatprep.subr.bf16.mxu0 0
    %4248 = vmatpush1.bf16.msra.mxu0 0
    %4249 = vmatprep.subr.bf16.mxu0 0
    %4250 = vmatpush1.bf16.msra.mxu0 0
    %4251 = vmatprep.subr.bf16.mxu0 0
    %4252 = vmatpush1.bf16.msra.mxu0 0
    %4253 = vmatprep.subr.bf16.mxu0 0
    %4254 = vmatpush1.bf16.msra.mxu0 0
    %4255 = vmatprep.subr.bf16.mxu0 0
    %4256 = vmatpush1.bf16.msra.mxu0 0
    %4257 = vmatprep.subr.bf16.mxu0 0
    %4258 = vmatpush1.bf16.msra.mxu0 0
    %4259 = vmatprep.mubr.bf16.mxu0 0
    %4260 = vmatmul.mubr.bf16.gmra.mrb[0].mxu0 %v4225
    %v4261 = vpop.f32.mrb[0].mxu0
    %v4262 = vadd.f32 0.0, %v4261
    %v4263 = vpop.f32.mrb[0].mxu0
    %v4264 = vpop.f32.mrb[0].mxu0
    %v4265 = vpop.f32.mrb[0].mxu0
    %4266 = vdwg.mxu0
    %s4267 = scalar_lea.vmem [#allocation7], 640
    %v4268 = vld [vmem:[%s4267] sm:$0xf]
    %v4269 = vld [vmem:[%s4267 + $0x4] sm:$0xf]
    %v4270 = vld [vmem:[%s4267 + $0x8] sm:$0xf]
    %v4271 = vld [vmem:[%s4267 + $0xc] sm:$0xf]
    %v4272 = vld [vmem:[%s4267 + $0x10] sm:$0xf]
    %v4273 = vld [vmem:[%s4267 + $0x14] sm:$0xf]
    %v4274 = vld [vmem:[%s4267 + $0x18] sm:$0xf]
    %v4275 = vld [vmem:[%s4267 + $0x1c] sm:$0xf]
    %v4276 = vld [vmem:[%s4267 + $0x20] sm:$0xf]
    %v4277 = vld [vmem:[%s4267 + $0x24] sm:$0xf]
    %v4278 = vld [vmem:[%s4267 + $0x28] sm:$0xf]
    %v4279 = vld [vmem:[%s4267 + $0x2c] sm:$0xf]
    %v4280 = vld [vmem:[%s4267 + $0x30] sm:$0xf]
    %v4281 = vld [vmem:[%s4267 + $0x34] sm:$0xf]
    %v4282 = vld [vmem:[%s4267 + $0x38] sm:$0xf]
    %v4283 = vld [vmem:[%s4267 + $0x3c] sm:$0xf]
    %v4284 = vpack.c.bf16 %v4262, %v4262
    %v4301 = vunpack.c.l.b16 %v4268
    %v4302 = vunpack.c.l.b16 %v4269
    %v4303 = vunpack.c.l.b16 %v4270
    %v4304 = vunpack.c.l.b16 %v4271
    %v4305 = vunpack.c.l.b16 %v4272
    %v4306 = vunpack.c.l.b16 %v4273
    %v4307 = vunpack.c.l.b16 %v4274
    %v4308 = vunpack.c.l.b16 %v4275
    %v4309 = vunpack.c.l.b16 %v4276
    %v4310 = vunpack.c.l.b16 %v4277
    %v4311 = vunpack.c.l.b16 %v4278
    %v4312 = vunpack.c.l.b16 %v4279
    %v4313 = vunpack.c.l.b16 %v4280
    %v4314 = vunpack.c.l.b16 %v4281
    %v4315 = vunpack.c.l.b16 %v4282
    %v4316 = vunpack.c.l.b16 %v4283
    %v4317 = vpack.c.b16 %v4302, %v4301
    %v4318 = vpack.c.b16 %v4304, %v4303
    %v4319 = vpack.c.b16 %v4306, %v4305
    %v4320 = vpack.c.b16 %v4308, %v4307
    %v4321 = vpack.c.b16 %v4310, %v4309
    %v4322 = vpack.c.b16 %v4312, %v4311
    %v4323 = vpack.c.b16 %v4314, %v4313
    %v4324 = vpack.c.b16 %v4316, %v4315
    %4333 = vmatprep.subr.bf16.mxu0 0
    %4334 = vmatpush1.bf16.msra.mxu0 %v4317
    %4335 = vmatprep.subr.bf16.mxu0 0
    %4336 = vmatpush1.bf16.msra.mxu0 %v4318
    %4337 = vmatprep.subr.bf16.mxu0 0
    %4338 = vmatpush1.bf16.msra.mxu0 %v4319
    %4339 = vmatprep.subr.bf16.mxu0 0
    %4340 = vmatpush1.bf16.msra.mxu0 %v4320
    %4341 = vmatprep.subr.bf16.mxu0 0
    %4342 = vmatpush1.bf16.msra.mxu0 %v4321
    %4343 = vmatprep.subr.bf16.mxu0 0
    %4344 = vmatpush1.bf16.msra.mxu0 %v4322
    %4345 = vmatprep.subr.bf16.mxu0 0
    %4346 = vmatpush1.bf16.msra.mxu0 %v4323
    %4347 = vmatprep.subr.bf16.mxu0 0
    %4348 = vmatpush1.bf16.msra.mxu0 %v4324
    %4349 = vmatprep.subr.bf16.mxu0 0
    %4350 = vmatpush1.bf16.msra.mxu0 0
    %4351 = vmatprep.subr.bf16.mxu0 0
    %4352 = vmatpush1.bf16.msra.mxu0 0
    %4353 = vmatprep.subr.bf16.mxu0 0
    %4354 = vmatpush1.bf16.msra.mxu0 0
    %4355 = vmatprep.subr.bf16.mxu0 0
    %4356 = vmatpush1.bf16.msra.mxu0 0
    %4357 = vmatprep.subr.bf16.mxu0 0
    %4358 = vmatpush1.bf16.msra.mxu0 0
    %4359 = vmatprep.subr.bf16.mxu0 0
    %4360 = vmatpush1.bf16.msra.mxu0 0
    %4361 = vmatprep.subr.bf16.mxu0 0
    %4362 = vmatpush1.bf16.msra.mxu0 0
    %4363 = vmatprep.subr.bf16.mxu0 0
    %4364 = vmatpush1.bf16.msra.mxu0 0
    %4365 = vmatprep.mubr.bf16.mxu0 0
    %4366 = vmatmul.mubr.bf16.gmra.mrb[0].mxu0 %v4284
    %v4367 = vpop.f32.mrb[0].mxu0
    %v4368 = vadd.f32 0.0, %v4367
    %v4369 = vpop.f32.mrb[0].mxu0
    %v4370 = vpop.f32.mrb[0].mxu0
    %v4371 = vpop.f32.mrb[0].mxu0
    %4372 = vdwg.mxu0
    %v4373 = vadd.f32 %v4221, %v4368
    %s4374 = scalar_lea.vmem %s8, 22
    %v4375 = vld [vmem:[%s4374] sm:$0x3]
    %v4377 = vsel %vm291, %v4375, 0
    %4379 = vmatprep.subr.bf16.mxu0 0
    %4380 = vmatpush1.bf16.msra.mxu0 %v2702
    %4381 = vmatprep.subr.bf16.mxu0 0
    %4382 = vmatpush1.bf16.msra.mxu0 %v2703
    %4383 = vmatprep.subr.bf16.mxu0 0
    %4384 = vmatpush1.bf16.msra.mxu0 %v2704
    %4385 = vmatprep.subr.bf16.mxu0 0
    %4386 = vmatpush1.bf16.msra.mxu0 %v2705
    %4387 = vmatprep.subr.bf16.mxu0 0
    %4388 = vmatpush1.bf16.msra.mxu0 0
    %4389 = vmatprep.subr.bf16.mxu0 0
    %4390 = vmatpush1.bf16.msra.mxu0 0
    %4391 = vmatprep.subr.bf16.mxu0 0
    %4392 = vmatpush1.bf16.msra.mxu0 0
    %4393 = vmatprep.subr.bf16.mxu0 0
    %4394 = vmatpush1.bf16.msra.mxu0 0
    %4395 = vmatprep.subr.bf16.mxu0 0
    %4396 = vmatpush1.bf16.msra.mxu0 0
    %4397 = vmatprep.subr.bf16.mxu0 0
    %4398 = vmatpush1.bf16.msra.mxu0 0
    %4399 = vmatprep.subr.bf16.mxu0 0
    %4400 = vmatpush1.bf16.msra.mxu0 0
    %4401 = vmatprep.subr.bf16.mxu0 0
    %4402 = vmatpush1.bf16.msra.mxu0 0
    %4403 = vmatprep.subr.bf16.mxu0 0
    %4404 = vmatpush1.bf16.msra.mxu0 0
    %4405 = vmatprep.subr.bf16.mxu0 0
    %4406 = vmatpush1.bf16.msra.mxu0 0
    %4407 = vmatprep.subr.bf16.mxu0 0
    %4408 = vmatpush1.bf16.msra.mxu0 0
    %4409 = vmatprep.subr.bf16.mxu0 0
    %4410 = vmatpush1.bf16.msra.mxu0 0
    %4411 = vmatprep.mubr.bf16.mxu0 0
    %4412 = vmatmul.mubr.bf16.gmra.mrb[0].mxu0 %v4377
    %v4413 = vpop.f32.mrb[0].mxu0
    %v4414 = vadd.f32 0.0, %v4413
    %v4415 = vpop.f32.mrb[0].mxu0
    %v4416 = vpop.f32.mrb[0].mxu0
    %v4417 = vpop.f32.mrb[0].mxu0
    %4418 = vdwg.mxu0
    %s4419 = scalar_lea.vmem [#allocation7], 704
    %v4420 = vld [vmem:[%s4419] sm:$0xf]
    %v4421 = vld [vmem:[%s4419 + $0x4] sm:$0xf]
    %v4422 = vld [vmem:[%s4419 + $0x8] sm:$0xf]
    %v4423 = vld [vmem:[%s4419 + $0xc] sm:$0xf]
    %v4424 = vld [vmem:[%s4419 + $0x10] sm:$0xf]
    %v4425 = vld [vmem:[%s4419 + $0x14] sm:$0xf]
    %v4426 = vld [vmem:[%s4419 + $0x18] sm:$0xf]
    %v4427 = vld [vmem:[%s4419 + $0x1c] sm:$0xf]
    %v4428 = vld [vmem:[%s4419 + $0x20] sm:$0xf]
    %v4429 = vld [vmem:[%s4419 + $0x24] sm:$0xf]
    %v4430 = vld [vmem:[%s4419 + $0x28] sm:$0xf]
    %v4431 = vld [vmem:[%s4419 + $0x2c] sm:$0xf]
    %v4432 = vld [vmem:[%s4419 + $0x30] sm:$0xf]
    %v4433 = vld [vmem:[%s4419 + $0x34] sm:$0xf]
    %v4434 = vld [vmem:[%s4419 + $0x38] sm:$0xf]
    %v4435 = vld [vmem:[%s4419 + $0x3c] sm:$0xf]
    %v4436 = vpack.c.bf16 %v4414, %v4414
    %v4453 = vunpack.c.l.b16 %v4420
    %v4454 = vunpack.c.l.b16 %v4421
    %v4455 = vunpack.c.l.b16 %v4422
    %v4456 = vunpack.c.l.b16 %v4423
    %v4457 = vunpack.c.l.b16 %v4424
    %v4458 = vunpack.c.l.b16 %v4425
    %v4459 = vunpack.c.l.b16 %v4426
    %v4460 = vunpack.c.l.b16 %v4427
    %v4461 = vunpack.c.l.b16 %v4428
    %v4462 = vunpack.c.l.b16 %v4429
    %v4463 = vunpack.c.l.b16 %v4430
    %v4464 = vunpack.c.l.b16 %v4431
    %v4465 = vunpack.c.l.b16 %v4432
    %v4466 = vunpack.c.l.b16 %v4433
    %v4467 = vunpack.c.l.b16 %v4434
    %v4468 = vunpack.c.l.b16 %v4435
    %v4469 = vpack.c.b16 %v4454, %v4453
    %v4470 = vpack.c.b16 %v4456, %v4455
    %v4471 = vpack.c.b16 %v4458, %v4457
    %v4472 = vpack.c.b16 %v4460, %v4459
    %v4473 = vpack.c.b16 %v4462, %v4461
    %v4474 = vpack.c.b16 %v4464, %v4463
    %v4475 = vpack.c.b16 %v4466, %v4465
    %v4476 = vpack.c.b16 %v4468, %v4467
    %4485 = vmatprep.subr.bf16.mxu0 0
    %4486 = vmatpush1.bf16.msra.mxu0 %v4469
    %4487 = vmatprep.subr.bf16.mxu0 0
    %4488 = vmatpush1.bf16.msra.mxu0 %v4470
    %4489 = vmatprep.subr.bf16.mxu0 0
    %4490 = vmatpush1.bf16.msra.mxu0 %v4471
    %4491 = vmatprep.subr.bf16.mxu0 0
    %4492 = vmatpush1.bf16.msra.mxu0 %v4472
    %4493 = vmatprep.subr.bf16.mxu0 0
    %4494 = vmatpush1.bf16.msra.mxu0 %v4473
    %4495 = vmatprep.subr.bf16.mxu0 0
    %4496 = vmatpush1.bf16.msra.mxu0 %v4474
    %4497 = vmatprep.subr.bf16.mxu0 0
    %4498 = vmatpush1.bf16.msra.mxu0 %v4475
    %4499 = vmatprep.subr.bf16.mxu0 0
    %4500 = vmatpush1.bf16.msra.mxu0 %v4476
    %4501 = vmatprep.subr.bf16.mxu0 0
    %4502 = vmatpush1.bf16.msra.mxu0 0
    %4503 = vmatprep.subr.bf16.mxu0 0
    %4504 = vmatpush1.bf16.msra.mxu0 0
    %4505 = vmatprep.subr.bf16.mxu0 0
    %4506 = vmatpush1.bf16.msra.mxu0 0
    %4507 = vmatprep.subr.bf16.mxu0 0
    %4508 = vmatpush1.bf16.msra.mxu0 0
    %4509 = vmatprep.subr.bf16.mxu0 0
    %4510 = vmatpush1.bf16.msra.mxu0 0
    %4511 = vmatprep.subr.bf16.mxu0 0
    %4512 = vmatpush1.bf16.msra.mxu0 0
    %4513 = vmatprep.subr.bf16.mxu0 0
    %4514 = vmatpush1.bf16.msra.mxu0 0
    %4515 = vmatprep.subr.bf16.mxu0 0
    %4516 = vmatpush1.bf16.msra.mxu0 0
    %4517 = vmatprep.mubr.bf16.mxu0 0
    %4518 = vmatmul.mubr.bf16.gmra.mrb[0].mxu0 %v4436
    %v4519 = vpop.f32.mrb[0].mxu0
    %v4520 = vadd.f32 0.0, %v4519
    %v4521 = vpop.f32.mrb[0].mxu0
    %v4522 = vpop.f32.mrb[0].mxu0
    %v4523 = vpop.f32.mrb[0].mxu0
    %4524 = vdwg.mxu0
    %v4525 = vadd.f32 %v4373, %v4520
    %s4526 = scalar_lea.vmem %s8, 24
    %v4527 = vld [vmem:[%s4526] sm:$0x3]
    %v4529 = vsel %vm291, %v4527, 0
    %4531 = vmatprep.subr.bf16.mxu0 0
    %4532 = vmatpush1.bf16.msra.mxu0 %v2702
    %4533 = vmatprep.subr.bf16.mxu0 0
    %4534 = vmatpush1.bf16.msra.mxu0 %v2703
    %4535 = vmatprep.subr.bf16.mxu0 0
    %4536 = vmatpush1.bf16.msra.mxu0 %v2704
    %4537 = vmatprep.subr.bf16.mxu0 0
    %4538 = vmatpush1.bf16.msra.mxu0 %v2705
    %4539 = vmatprep.subr.bf16.mxu0 0
    %4540 = vmatpush1.bf16.msra.mxu0 0
    %4541 = vmatprep.subr.bf16.mxu0 0
    %4542 = vmatpush1.bf16.msra.mxu0 0
    %4543 = vmatprep.subr.bf16.mxu0 0
    %4544 = vmatpush1.bf16.msra.mxu0 0
    %4545 = vmatprep.subr.bf16.mxu0 0
    %4546 = vmatpush1.bf16.msra.mxu0 0
    %4547 = vmatprep.subr.bf16.mxu0 0
    %4548 = vmatpush1.bf16.msra.mxu0 0
    %4549 = vmatprep.subr.bf16.mxu0 0
    %4550 = vmatpush1.bf16.msra.mxu0 0
    %4551 = vmatprep.subr.bf16.mxu0 0
    %4552 = vmatpush1.bf16.msra.mxu0 0
    %4553 = vmatprep.subr.bf16.mxu0 0
    %4554 = vmatpush1.bf16.msra.mxu0 0
    %4555 = vmatprep.subr.bf16.mxu0 0
    %4556 = vmatpush1.bf16.msra.mxu0 0
    %4557 = vmatprep.subr.bf16.mxu0 0
    %4558 = vmatpush1.bf16.msra.mxu0 0
    %4559 = vmatprep.subr.bf16.mxu0 0
    %4560 = vmatpush1.bf16.msra.mxu0 0
    %4561 = vmatprep.subr.bf16.mxu0 0
    %4562 = vmatpush1.bf16.msra.mxu0 0
    %4563 = vmatprep.mubr.bf16.mxu0 0
    %4564 = vmatmul.mubr.bf16.gmra.mrb[0].mxu0 %v4529
    %v4565 = vpop.f32.mrb[0].mxu0
    %v4566 = vadd.f32 0.0, %v4565
    %v4567 = vpop.f32.mrb[0].mxu0
    %v4568 = vpop.f32.mrb[0].mxu0
    %v4569 = vpop.f32.mrb[0].mxu0
    %4570 = vdwg.mxu0
    %s4571 = scalar_lea.vmem [#allocation7], 768
    %v4572 = vld [vmem:[%s4571] sm:$0xf]
    %v4573 = vld [vmem:[%s4571 + $0x4] sm:$0xf]
    %v4574 = vld [vmem:[%s4571 + $0x8] sm:$0xf]
    %v4575 = vld [vmem:[%s4571 + $0xc] sm:$0xf]
    %v4576 = vld [vmem:[%s4571 + $0x10] sm:$0xf]
    %v4577 = vld [vmem:[%s4571 + $0x14] sm:$0xf]
    %v4578 = vld [vmem:[%s4571 + $0x18] sm:$0xf]
    %v4579 = vld [vmem:[%s4571 + $0x1c] sm:$0xf]
    %v4580 = vld [vmem:[%s4571 + $0x20] sm:$0xf]
    %v4581 = vld [vmem:[%s4571 + $0x24] sm:$0xf]
    %v4582 = vld [vmem:[%s4571 + $0x28] sm:$0xf]
    %v4583 = vld [vmem:[%s4571 + $0x2c] sm:$0xf]
    %v4584 = vld [vmem:[%s4571 + $0x30] sm:$0xf]
    %v4585 = vld [vmem:[%s4571 + $0x34] sm:$0xf]
    %v4586 = vld [vmem:[%s4571 + $0x38] sm:$0xf]
    %v4587 = vld [vmem:[%s4571 + $0x3c] sm:$0xf]
    %v4588 = vpack.c.bf16 %v4566, %v4566
    %v4605 = vunpack.c.l.b16 %v4572
    %v4606 = vunpack.c.l.b16 %v4573
    %v4607 = vunpack.c.l.b16 %v4574
    %v4608 = vunpack.c.l.b16 %v4575
    %v4609 = vunpack.c.l.b16 %v4576
    %v4610 = vunpack.c.l.b16 %v4577
    %v4611 = vunpack.c.l.b16 %v4578
    %v4612 = vunpack.c.l.b16 %v4579
    %v4613 = vunpack.c.l.b16 %v4580
    %v4614 = vunpack.c.l.b16 %v4581
    %v4615 = vunpack.c.l.b16 %v4582
    %v4616 = vunpack.c.l.b16 %v4583
    %v4617 = vunpack.c.l.b16 %v4584
    %v4618 = vunpack.c.l.b16 %v4585
    %v4619 = vunpack.c.l.b16 %v4586
    %v4620 = vunpack.c.l.b16 %v4587
    %v4621 = vpack.c.b16 %v4606, %v4605
    %v4622 = vpack.c.b16 %v4608, %v4607
    %v4623 = vpack.c.b16 %v4610, %v4609
    %v4624 = vpack.c.b16 %v4612, %v4611
    %v4625 = vpack.c.b16 %v4614, %v4613
    %v4626 = vpack.c.b16 %v4616, %v4615
    %v4627 = vpack.c.b16 %v4618, %v4617
    %v4628 = vpack.c.b16 %v4620, %v4619
    %4637 = vmatprep.subr.bf16.mxu0 0
    %4638 = vmatpush1.bf16.msra.mxu0 %v4621
    %4639 = vmatprep.subr.bf16.mxu0 0
    %4640 = vmatpush1.bf16.msra.mxu0 %v4622
    %4641 = vmatprep.subr.bf16.mxu0 0
    %4642 = vmatpush1.bf16.msra.mxu0 %v4623
    %4643 = vmatprep.subr.bf16.mxu0 0
    %4644 = vmatpush1.bf16.msra.mxu0 %v4624
    %4645 = vmatprep.subr.bf16.mxu0 0
    %4646 = vmatpush1.bf16.msra.mxu0 %v4625
    %4647 = vmatprep.subr.bf16.mxu0 0
    %4648 = vmatpush1.bf16.msra.mxu0 %v4626
    %4649 = vmatprep.subr.bf16.mxu0 0
    %4650 = vmatpush1.bf16.msra.mxu0 %v4627
    %4651 = vmatprep.subr.bf16.mxu0 0
    %4652 = vmatpush1.bf16.msra.mxu0 %v4628
    %4653 = vmatprep.subr.bf16.mxu0 0
    %4654 = vmatpush1.bf16.msra.mxu0 0
    %4655 = vmatprep.subr.bf16.mxu0 0
    %4656 = vmatpush1.bf16.msra.mxu0 0
    %4657 = vmatprep.subr.bf16.mxu0 0
    %4658 = vmatpush1.bf16.msra.mxu0 0
    %4659 = vmatprep.subr.bf16.mxu0 0
    %4660 = vmatpush1.bf16.msra.mxu0 0
    %4661 = vmatprep.subr.bf16.mxu0 0
    %4662 = vmatpush1.bf16.msra.mxu0 0
    %4663 = vmatprep.subr.bf16.mxu0 0
    %4664 = vmatpush1.bf16.msra.mxu0 0
    %4665 = vmatprep.subr.bf16.mxu0 0
    %4666 = vmatpush1.bf16.msra.mxu0 0
    %4667 = vmatprep.subr.bf16.mxu0 0
    %4668 = vmatpush1.bf16.msra.mxu0 0
    %4669 = vmatprep.mubr.bf16.mxu0 0
    %4670 = vmatmul.mubr.bf16.gmra.mrb[0].mxu0 %v4588
    %v4671 = vpop.f32.mrb[0].mxu0
    %v4672 = vadd.f32 0.0, %v4671
    %v4673 = vpop.f32.mrb[0].mxu0
    %v4674 = vpop.f32.mrb[0].mxu0
    %v4675 = vpop.f32.mrb[0].mxu0
    %4676 = vdwg.mxu0
    %v4677 = vadd.f32 %v4525, %v4672
    %s4678 = scalar_lea.vmem %s8, 26
    %v4679 = vld [vmem:[%s4678] sm:$0x3]
    %v4681 = vsel %vm291, %v4679, 0
    %4683 = vmatprep.subr.bf16.mxu0 0
    %4684 = vmatpush1.bf16.msra.mxu0 %v2702
    %4685 = vmatprep.subr.bf16.mxu0 0
    %4686 = vmatpush1.bf16.msra.mxu0 %v2703
    %4687 = vmatprep.subr.bf16.mxu0 0
    %4688 = vmatpush1.bf16.msra.mxu0 %v2704
    %4689 = vmatprep.subr.bf16.mxu0 0
    %4690 = vmatpush1.bf16.msra.mxu0 %v2705
    %4691 = vmatprep.subr.bf16.mxu0 0
    %4692 = vmatpush1.bf16.msra.mxu0 0
    %4693 = vmatprep.subr.bf16.mxu0 0
    %4694 = vmatpush1.bf16.msra.mxu0 0
    %4695 = vmatprep.subr.bf16.mxu0 0
    %4696 = vmatpush1.bf16.msra.mxu0 0
    %4697 = vmatprep.subr.bf16.mxu0 0
    %4698 = vmatpush1.bf16.msra.mxu0 0
    %4699 = vmatprep.subr.bf16.mxu0 0
    %4700 = vmatpush1.bf16.msra.mxu0 0
    %4701 = vmatprep.subr.bf16.mxu0 0
    %4702 = vmatpush1.bf16.msra.mxu0 0
    %4703 = vmatprep.subr.bf16.mxu0 0
    %4704 = vmatpush1.bf16.msra.mxu0 0
    %4705 = vmatprep.subr.bf16.mxu0 0
    %4706 = vmatpush1.bf16.msra.mxu0 0
    %4707 = vmatprep.subr.bf16.mxu0 0
    %4708 = vmatpush1.bf16.msra.mxu0 0
    %4709 = vmatprep.subr.bf16.mxu0 0
    %4710 = vmatpush1.bf16.msra.mxu0 0
    %4711 = vmatprep.subr.bf16.mxu0 0
    %4712 = vmatpush1.bf16.msra.mxu0 0
    %4713 = vmatprep.subr.bf16.mxu0 0
    %4714 = vmatpush1.bf16.msra.mxu0 0
    %4715 = vmatprep.mubr.bf16.mxu0 0
    %4716 = vmatmul.mubr.bf16.gmra.mrb[0].mxu0 %v4681
    %v4717 = vpop.f32.mrb[0].mxu0
    %v4718 = vadd.f32 0.0, %v4717
    %v4719 = vpop.f32.mrb[0].mxu0
    %v4720 = vpop.f32.mrb[0].mxu0
    %v4721 = vpop.f32.mrb[0].mxu0
    %4722 = vdwg.mxu0
    %s4723 = scalar_lea.vmem [#allocation7], 832
    %v4724 = vld [vmem:[%s4723] sm:$0xf]
    %v4725 = vld [vmem:[%s4723 + $0x4] sm:$0xf]
    %v4726 = vld [vmem:[%s4723 + $0x8] sm:$0xf]
    %v4727 = vld [vmem:[%s4723 + $0xc] sm:$0xf]
    %v4728 = vld [vmem:[%s4723 + $0x10] sm:$0xf]
    %v4729 = vld [vmem:[%s4723 + $0x14] sm:$0xf]
    %v4730 = vld [vmem:[%s4723 + $0x18] sm:$0xf]
    %v4731 = vld [vmem:[%s4723 + $0x1c] sm:$0xf]
    %v4732 = vld [vmem:[%s4723 + $0x20] sm:$0xf]
    %v4733 = vld [vmem:[%s4723 + $0x24] sm:$0xf]
    %v4734 = vld [vmem:[%s4723 + $0x28] sm:$0xf]
    %v4735 = vld [vmem:[%s4723 + $0x2c] sm:$0xf]
    %v4736 = vld [vmem:[%s4723 + $0x30] sm:$0xf]
    %v4737 = vld [vmem:[%s4723 + $0x34] sm:$0xf]
    %v4738 = vld [vmem:[%s4723 + $0x38] sm:$0xf]
    %v4739 = vld [vmem:[%s4723 + $0x3c] sm:$0xf]
    %v4740 = vpack.c.bf16 %v4718, %v4718
    %v4757 = vunpack.c.l.b16 %v4724
    %v4758 = vunpack.c.l.b16 %v4725
    %v4759 = vunpack.c.l.b16 %v4726
    %v4760 = vunpack.c.l.b16 %v4727
    %v4761 = vunpack.c.l.b16 %v4728
    %v4762 = vunpack.c.l.b16 %v4729
    %v4763 = vunpack.c.l.b16 %v4730
    %v4764 = vunpack.c.l.b16 %v4731
    %v4765 = vunpack.c.l.b16 %v4732
    %v4766 = vunpack.c.l.b16 %v4733
    %v4767 = vunpack.c.l.b16 %v4734
    %v4768 = vunpack.c.l.b16 %v4735
    %v4769 = vunpack.c.l.b16 %v4736
    %v4770 = vunpack.c.l.b16 %v4737
    %v4771 = vunpack.c.l.b16 %v4738
    %v4772 = vunpack.c.l.b16 %v4739
    %v4773 = vpack.c.b16 %v4758, %v4757
    %v4774 = vpack.c.b16 %v4760, %v4759
    %v4775 = vpack.c.b16 %v4762, %v4761
    %v4776 = vpack.c.b16 %v4764, %v4763
    %v4777 = vpack.c.b16 %v4766, %v4765
    %v4778 = vpack.c.b16 %v4768, %v4767
    %v4779 = vpack.c.b16 %v4770, %v4769
    %v4780 = vpack.c.b16 %v4772, %v4771
    %4789 = vmatprep.subr.bf16.mxu0 0
    %4790 = vmatpush1.bf16.msra.mxu0 %v4773
    %4791 = vmatprep.subr.bf16.mxu0 0
    %4792 = vmatpush1.bf16.msra.mxu0 %v4774
    %4793 = vmatprep.subr.bf16.mxu0 0
    %4794 = vmatpush1.bf16.msra.mxu0 %v4775
    %4795 = vmatprep.subr.bf16.mxu0 0
    %4796 = vmatpush1.bf16.msra.mxu0 %v4776
    %4797 = vmatprep.subr.bf16.mxu0 0
    %4798 = vmatpush1.bf16.msra.mxu0 %v4777
    %4799 = vmatprep.subr.bf16.mxu0 0
    %4800 = vmatpush1.bf16.msra.mxu0 %v4778
    %4801 = vmatprep.subr.bf16.mxu0 0
    %4802 = vmatpush1.bf16.msra.mxu0 %v4779
    %4803 = vmatprep.subr.bf16.mxu0 0
    %4804 = vmatpush1.bf16.msra.mxu0 %v4780
    %4805 = vmatprep.subr.bf16.mxu0 0
    %4806 = vmatpush1.bf16.msra.mxu0 0
    %4807 = vmatprep.subr.bf16.mxu0 0
    %4808 = vmatpush1.bf16.msra.mxu0 0
    %4809 = vmatprep.subr.bf16.mxu0 0
    %4810 = vmatpush1.bf16.msra.mxu0 0
    %4811 = vmatprep.subr.bf16.mxu0 0
    %4812 = vmatpush1.bf16.msra.mxu0 0
    %4813 = vmatprep.subr.bf16.mxu0 0
    %4814 = vmatpush1.bf16.msra.mxu0 0
    %4815 = vmatprep.subr.bf16.mxu0 0
    %4816 = vmatpush1.bf16.msra.mxu0 0
    %4817 = vmatprep.subr.bf16.mxu0 0
    %4818 = vmatpush1.bf16.msra.mxu0 0
    %4819 = vmatprep.subr.bf16.mxu0 0
    %4820 = vmatpush1.bf16.msra.mxu0 0
    %4821 = vmatprep.mubr.bf16.mxu0 0
    %4822 = vmatmul.mubr.bf16.gmra.mrb[0].mxu0 %v4740
    %v4823 = vpop.f32.mrb[0].mxu0
    %v4824 = vadd.f32 0.0, %v4823
    %v4825 = vpop.f32.mrb[0].mxu0
    %v4826 = vpop.f32.mrb[0].mxu0
    %v4827 = vpop.f32.mrb[0].mxu0
    %4828 = vdwg.mxu0
    %v4829 = vadd.f32 %v4677, %v4824
    %s4830 = scalar_lea.vmem %s8, 28
    %v4831 = vld [vmem:[%s4830] sm:$0x3]
    %v4833 = vsel %vm291, %v4831, 0
    %4835 = vmatprep.subr.bf16.mxu0 0
    %4836 = vmatpush1.bf16.msra.mxu0 %v2702
    %4837 = vmatprep.subr.bf16.mxu0 0
    %4838 = vmatpush1.bf16.msra.mxu0 %v2703
    %4839 = vmatprep.subr.bf16.mxu0 0
    %4840 = vmatpush1.bf16.msra.mxu0 %v2704
    %4841 = vmatprep.subr.bf16.mxu0 0
    %4842 = vmatpush1.bf16.msra.mxu0 %v2705
    %4843 = vmatprep.subr.bf16.mxu0 0
    %4844 = vmatpush1.bf16.msra.mxu0 0
    %4845 = vmatprep.subr.bf16.mxu0 0
    %4846 = vmatpush1.bf16.msra.mxu0 0
    %4847 = vmatprep.subr.bf16.mxu0 0
    %4848 = vmatpush1.bf16.msra.mxu0 0
    %4849 = vmatprep.subr.bf16.mxu0 0
    %4850 = vmatpush1.bf16.msra.mxu0 0
    %4851 = vmatprep.subr.bf16.mxu0 0
    %4852 = vmatpush1.bf16.msra.mxu0 0
    %4853 = vmatprep.subr.bf16.mxu0 0
    %4854 = vmatpush1.bf16.msra.mxu0 0
    %4855 = vmatprep.subr.bf16.mxu0 0
    %4856 = vmatpush1.bf16.msra.mxu0 0
    %4857 = vmatprep.subr.bf16.mxu0 0
    %4858 = vmatpush1.bf16.msra.mxu0 0
    %4859 = vmatprep.subr.bf16.mxu0 0
    %4860 = vmatpush1.bf16.msra.mxu0 0
    %4861 = vmatprep.subr.bf16.mxu0 0
    %4862 = vmatpush1.bf16.msra.mxu0 0
    %4863 = vmatprep.subr.bf16.mxu0 0
    %4864 = vmatpush1.bf16.msra.mxu0 0
    %4865 = vmatprep.subr.bf16.mxu0 0
    %4866 = vmatpush1.bf16.msra.mxu0 0
    %4867 = vmatprep.mubr.bf16.mxu0 0
    %4868 = vmatmul.mubr.bf16.gmra.mrb[0].mxu0 %v4833
    %v4869 = vpop.f32.mrb[0].mxu0
    %v4870 = vadd.f32 0.0, %v4869
    %v4871 = vpop.f32.mrb[0].mxu0
    %v4872 = vpop.f32.mrb[0].mxu0
    %v4873 = vpop.f32.mrb[0].mxu0
    %4874 = vdwg.mxu0
    %s4875 = scalar_lea.vmem [#allocation7], 896
    %v4876 = vld [vmem:[%s4875] sm:$0xf]
    %v4877 = vld [vmem:[%s4875 + $0x4] sm:$0xf]
    %v4878 = vld [vmem:[%s4875 + $0x8] sm:$0xf]
    %v4879 = vld [vmem:[%s4875 + $0xc] sm:$0xf]
    %v4880 = vld [vmem:[%s4875 + $0x10] sm:$0xf]
    %v4881 = vld [vmem:[%s4875 + $0x14] sm:$0xf]
    %v4882 = vld [vmem:[%s4875 + $0x18] sm:$0xf]
    %v4883 = vld [vmem:[%s4875 + $0x1c] sm:$0xf]
    %v4884 = vld [vmem:[%s4875 + $0x20] sm:$0xf]
    %v4885 = vld [vmem:[%s4875 + $0x24] sm:$0xf]
    %v4886 = vld [vmem:[%s4875 + $0x28] sm:$0xf]
    %v4887 = vld [vmem:[%s4875 + $0x2c] sm:$0xf]
    %v4888 = vld [vmem:[%s4875 + $0x30] sm:$0xf]
    %v4889 = vld [vmem:[%s4875 + $0x34] sm:$0xf]
    %v4890 = vld [vmem:[%s4875 + $0x38] sm:$0xf]
    %v4891 = vld [vmem:[%s4875 + $0x3c] sm:$0xf]
    %v4892 = vpack.c.bf16 %v4870, %v4870
    %v4909 = vunpack.c.l.b16 %v4876
    %v4910 = vunpack.c.l.b16 %v4877
    %v4911 = vunpack.c.l.b16 %v4878
    %v4912 = vunpack.c.l.b16 %v4879
    %v4913 = vunpack.c.l.b16 %v4880
    %v4914 = vunpack.c.l.b16 %v4881
    %v4915 = vunpack.c.l.b16 %v4882
    %v4916 = vunpack.c.l.b16 %v4883
    %v4917 = vunpack.c.l.b16 %v4884
    %v4918 = vunpack.c.l.b16 %v4885
    %v4919 = vunpack.c.l.b16 %v4886
    %v4920 = vunpack.c.l.b16 %v4887
    %v4921 = vunpack.c.l.b16 %v4888
    %v4922 = vunpack.c.l.b16 %v4889
    %v4923 = vunpack.c.l.b16 %v4890
    %v4924 = vunpack.c.l.b16 %v4891
    %v4925 = vpack.c.b16 %v4910, %v4909
    %v4926 = vpack.c.b16 %v4912, %v4911
    %v4927 = vpack.c.b16 %v4914, %v4913
    %v4928 = vpack.c.b16 %v4916, %v4915
    %v4929 = vpack.c.b16 %v4918, %v4917
    %v4930 = vpack.c.b16 %v4920, %v4919
    %v4931 = vpack.c.b16 %v4922, %v4921
    %v4932 = vpack.c.b16 %v4924, %v4923
    %4941 = vmatprep.subr.bf16.mxu0 0
    %4942 = vmatpush1.bf16.msra.mxu0 %v4925
    %4943 = vmatprep.subr.bf16.mxu0 0
    %4944 = vmatpush1.bf16.msra.mxu0 %v4926
    %4945 = vmatprep.subr.bf16.mxu0 0
    %4946 = vmatpush1.bf16.msra.mxu0 %v4927
    %4947 = vmatprep.subr.bf16.mxu0 0
    %4948 = vmatpush1.bf16.msra.mxu0 %v4928
    %4949 = vmatprep.subr.bf16.mxu0 0
    %4950 = vmatpush1.bf16.msra.mxu0 %v4929
    %4951 = vmatprep.subr.bf16.mxu0 0
    %4952 = vmatpush1.bf16.msra.mxu0 %v4930
    %4953 = vmatprep.subr.bf16.mxu0 0
    %4954 = vmatpush1.bf16.msra.mxu0 %v4931
    %4955 = vmatprep.subr.bf16.mxu0 0
    %4956 = vmatpush1.bf16.msra.mxu0 %v4932
    %4957 = vmatprep.subr.bf16.mxu0 0
    %4958 = vmatpush1.bf16.msra.mxu0 0
    %4959 = vmatprep.subr.bf16.mxu0 0
    %4960 = vmatpush1.bf16.msra.mxu0 0
    %4961 = vmatprep.subr.bf16.mxu0 0
    %4962 = vmatpush1.bf16.msra.mxu0 0
    %4963 = vmatprep.subr.bf16.mxu0 0
    %4964 = vmatpush1.bf16.msra.mxu0 0
    %4965 = vmatprep.subr.bf16.mxu0 0
    %4966 = vmatpush1.bf16.msra.mxu0 0
    %4967 = vmatprep.subr.bf16.mxu0 0
    %4968 = vmatpush1.bf16.msra.mxu0 0
    %4969 = vmatprep.subr.bf16.mxu0 0
    %4970 = vmatpush1.bf16.msra.mxu0 0
    %4971 = vmatprep.subr.bf16.mxu0 0
    %4972 = vmatpush1.bf16.msra.mxu0 0
    %4973 = vmatprep.mubr.bf16.mxu0 0
    %4974 = vmatmul.mubr.bf16.gmra.mrb[0].mxu0 %v4892
    %v4975 = vpop.f32.mrb[0].mxu0
    %v4976 = vadd.f32 0.0, %v4975
    %v4977 = vpop.f32.mrb[0].mxu0
    %v4978 = vpop.f32.mrb[0].mxu0
    %v4979 = vpop.f32.mrb[0].mxu0
    %4980 = vdwg.mxu0
    %v4981 = vadd.f32 %v4829, %v4976
    %s4982 = scalar_lea.vmem %s8, 30
    %v4983 = vld [vmem:[%s4982] sm:$0x3]
    %v4985 = vsel %vm291, %v4983, 0
    %4987 = vmatprep.subr.bf16.mxu0 0
    %4988 = vmatpush1.bf16.msra.mxu0 %v2702
    %4989 = vmatprep.subr.bf16.mxu0 0
    %4990 = vmatpush1.bf16.msra.mxu0 %v2703
    %4991 = vmatprep.subr.bf16.mxu0 0
    %4992 = vmatpush1.bf16.msra.mxu0 %v2704
    %4993 = vmatprep.subr.bf16.mxu0 0
    %4994 = vmatpush1.bf16.msra.mxu0 %v2705
    %4995 = vmatprep.subr.bf16.mxu0 0
    %4996 = vmatpush1.bf16.msra.mxu0 0
    %4997 = vmatprep.subr.bf16.mxu0 0
    %4998 = vmatpush1.bf16.msra.mxu0 0
    %4999 = vmatprep.subr.bf16.mxu0 0
    %5000 = vmatpush1.bf16.msra.mxu0 0
    %5001 = vmatprep.subr.bf16.mxu0 0
    %5002 = vmatpush1.bf16.msra.mxu0 0
    %5003 = vmatprep.subr.bf16.mxu0 0
    %5004 = vmatpush1.bf16.msra.mxu0 0
    %5005 = vmatprep.subr.bf16.mxu0 0
    %5006 = vmatpush1.bf16.msra.mxu0 0
    %5007 = vmatprep.subr.bf16.mxu0 0
    %5008 = vmatpush1.bf16.msra.mxu0 0
    %5009 = vmatprep.subr.bf16.mxu0 0
    %5010 = vmatpush1.bf16.msra.mxu0 0
    %5011 = vmatprep.subr.bf16.mxu0 0
    %5012 = vmatpush1.bf16.msra.mxu0 0
    %5013 = vmatprep.subr.bf16.mxu0 0
    %5014 = vmatpush1.bf16.msra.mxu0 0
    %5015 = vmatprep.subr.bf16.mxu0 0
    %5016 = vmatpush1.bf16.msra.mxu0 0
    %5017 = vmatprep.subr.bf16.mxu0 0
    %5018 = vmatpush1.bf16.msra.mxu0 0
    %5019 = vmatprep.mubr.bf16.mxu0 0
    %5020 = vmatmul.mubr.bf16.gmra.mrb[0].mxu0 %v4985
    %v5021 = vpop.f32.mrb[0].mxu0
    %v5022 = vadd.f32 0.0, %v5021
    %v5023 = vpop.f32.mrb[0].mxu0
    %v5024 = vpop.f32.mrb[0].mxu0
    %v5025 = vpop.f32.mrb[0].mxu0
    %5026 = vdwg.mxu0
    %s5027 = scalar_lea.vmem [#allocation7], 960
    %v5028 = vld [vmem:[%s5027] sm:$0xf]
    %v5029 = vld [vmem:[%s5027 + $0x4] sm:$0xf]
    %v5030 = vld [vmem:[%s5027 + $0x8] sm:$0xf]
    %v5031 = vld [vmem:[%s5027 + $0xc] sm:$0xf]
    %v5032 = vld [vmem:[%s5027 + $0x10] sm:$0xf]
    %v5033 = vld [vmem:[%s5027 + $0x14] sm:$0xf]
    %v5034 = vld [vmem:[%s5027 + $0x18] sm:$0xf]
    %v5035 = vld [vmem:[%s5027 + $0x1c] sm:$0xf]
    %v5036 = vld [vmem:[%s5027 + $0x20] sm:$0xf]
    %v5037 = vld [vmem:[%s5027 + $0x24] sm:$0xf]
    %v5038 = vld [vmem:[%s5027 + $0x28] sm:$0xf]
    %v5039 = vld [vmem:[%s5027 + $0x2c] sm:$0xf]
    %v5040 = vld [vmem:[%s5027 + $0x30] sm:$0xf]
    %v5041 = vld [vmem:[%s5027 + $0x34] sm:$0xf]
    %v5042 = vld [vmem:[%s5027 + $0x38] sm:$0xf]
    %v5043 = vld [vmem:[%s5027 + $0x3c] sm:$0xf]
    %v5044 = vpack.c.bf16 %v5022, %v5022
    %v5061 = vunpack.c.l.b16 %v5028
    %v5062 = vunpack.c.l.b16 %v5029
    %v5063 = vunpack.c.l.b16 %v5030
    %v5064 = vunpack.c.l.b16 %v5031
    %v5065 = vunpack.c.l.b16 %v5032
    %v5066 = vunpack.c.l.b16 %v5033
    %v5067 = vunpack.c.l.b16 %v5034
    %v5068 = vunpack.c.l.b16 %v5035
    %v5069 = vunpack.c.l.b16 %v5036
    %v5070 = vunpack.c.l.b16 %v5037
    %v5071 = vunpack.c.l.b16 %v5038
    %v5072 = vunpack.c.l.b16 %v5039
    %v5073 = vunpack.c.l.b16 %v5040
    %v5074 = vunpack.c.l.b16 %v5041
    %v5075 = vunpack.c.l.b16 %v5042
    %v5076 = vunpack.c.l.b16 %v5043
    %v5077 = vpack.c.b16 %v5062, %v5061
    %v5078 = vpack.c.b16 %v5064, %v5063
    %v5079 = vpack.c.b16 %v5066, %v5065
    %v5080 = vpack.c.b16 %v5068, %v5067
    %v5081 = vpack.c.b16 %v5070, %v5069
    %v5082 = vpack.c.b16 %v5072, %v5071
    %v5083 = vpack.c.b16 %v5074, %v5073
    %v5084 = vpack.c.b16 %v5076, %v5075
    %5093 = vmatprep.subr.bf16.mxu0 0
    %5094 = vmatpush1.bf16.msra.mxu0 %v5077
    %5095 = vmatprep.subr.bf16.mxu0 0
    %5096 = vmatpush1.bf16.msra.mxu0 %v5078
    %5097 = vmatprep.subr.bf16.mxu0 0
    %5098 = vmatpush1.bf16.msra.mxu0 %v5079
    %5099 = vmatprep.subr.bf16.mxu0 0
    %5100 = vmatpush1.bf16.msra.mxu0 %v5080
    %5101 = vmatprep.subr.bf16.mxu0 0
    %5102 = vmatpush1.bf16.msra.mxu0 %v5081
    %5103 = vmatprep.subr.bf16.mxu0 0
    %5104 = vmatpush1.bf16.msra.mxu0 %v5082
    %5105 = vmatprep.subr.bf16.mxu0 0
    %5106 = vmatpush1.bf16.msra.mxu0 %v5083
    %5107 = vmatprep.subr.bf16.mxu0 0
    %5108 = vmatpush1.bf16.msra.mxu0 %v5084
    %5109 = vmatprep.subr.bf16.mxu0 0
    %5110 = vmatpush1.bf16.msra.mxu0 0
    %5111 = vmatprep.subr.bf16.mxu0 0
    %5112 = vmatpush1.bf16.msra.mxu0 0
    %5113 = vmatprep.subr.bf16.mxu0 0
    %5114 = vmatpush1.bf16.msra.mxu0 0
    %5115 = vmatprep.subr.bf16.mxu0 0
    %5116 = vmatpush1.bf16.msra.mxu0 0
    %5117 = vmatprep.subr.bf16.mxu0 0
    %5118 = vmatpush1.bf16.msra.mxu0 0
    %5119 = vmatprep.subr.bf16.mxu0 0
    %5120 = vmatpush1.bf16.msra.mxu0 0
    %5121 = vmatprep.subr.bf16.mxu0 0
    %5122 = vmatpush1.bf16.msra.mxu0 0
    %5123 = vmatprep.subr.bf16.mxu0 0
    %5124 = vmatpush1.bf16.msra.mxu0 0
    %5125 = vmatprep.mubr.bf16.mxu0 0
    %5126 = vmatmul.mubr.bf16.gmra.mrb[0].mxu0 %v5044
    %v5127 = vpop.f32.mrb[0].mxu0
    %v5128 = vadd.f32 0.0, %v5127
    %v5129 = vpop.f32.mrb[0].mxu0
    %v5130 = vpop.f32.mrb[0].mxu0
    %v5131 = vpop.f32.mrb[0].mxu0
    %5132 = vdwg.mxu0
    %v5133 = vadd.f32 %v4981, %v5128
    %v5134 = vld [vmem:[%s10] sm:$0x1]
    %v5136 = vlaneseq
    %v5137 = vshrl.u32 %v5136, 7
    %v5138 = vsub.s32 0, %v5137
    %v5139 = vrot.slane %v5134, %v5138
    %v5141 = vadd.f32 %v5133, %v5139
    %v5142 = vmul.f32 %v5141, %v5141
    %v5143 = vsel %vm2526, %v5142, 0.0
    %5144 = vadd.xlane.f32.xlu0 %v5143
    %v5145 = vpop.xlane.xlu0 %5144
    %v5146 = vmul.f32 %v5145, %v2653
    %v5147 = vadd.f32 %v5146, 1e-08
    %v5148 = vrsqrt.pop %v5147
    %v5149 = vmul.f32 %v5141, %v5148
    %v5150 = vmul.f32 %v5149, 0.1
    %v5151 = vmax.f32 %v5149, %v5150
    %v5152 = vld [vmem:[%s11] sm:$0x1]
    %v5153 = vunpack.c.l.bf16 %v5152
    %v5154 = vlaneseq
    %v5155 = vshrl.u32 %v5154, 7
    %v5156 = vsub.s32 0, %v5155
    %v5157 = vrot.slane %v5153, %v5156
    %v5158 = vmul.f32 %v5151, %v5157
    %v5159 = vsel %vm2526, %v5158, 0.0
    %5160 = vadd.xlane.f32.xlu0 %v5159
    %v5161 = vpop.xlane.xlu0 %5160
    %v5162 = vld [vmem:[#allocation2] sm:$0x1]
    %v5164 = vlaneseq
    %v5165 = vshrl.u32 %v5164, 7
    %v5166 = vsub.s32 0, %v5165
    %v5167 = vrot.slane %v5162, %v5166
    %v5169 = vadd.f32 %v5161, %v5167
    %vm5170 = vcmask 3072
    %5171 = vst.msk [vmem:[%s13] sm:$0xf] %vm5170, %v5169
    // Predicated region
    $region66: #{tpu_custom_call.1} parent=1 // pred_check
      _
    $region67: #{tpu_custom_call.1} parent=1 // pred_check_branch
      %5173 = sbr.rel (0) target = $region69
    $region68: #{tpu_custom_call.1} parent=1 // pred_region
      _
    $region69: #{tpu_custom_call.1} parent=1 // pred_fallthru
      _
    // Predicated region
    $region70: #{tpu_custom_call.1} parent=1 // pred_check
      _
    $region71: #{tpu_custom_call.1} parent=1 // pred_check_branch
      %5175 = sbr.rel (0) target = $region73
    $region72: #{tpu_custom_call.1} parent=1 // pred_region
      _
    $region73: #{tpu_custom_call.1} parent=1 // pred_fallthru
      _
    %5176 = vsyncpa [#allocation4], 1
    %5177 = vsyncpa [#allocation6], 1

</llo_original>
